<compile_context>
chip_gen: v5e
topology: v5e:2x2
jax: 0.10.0
libtpu: 0.0.40
codegen_flags: <defaults>
</compile_context>

<pallas_src>
import functools
import math

import jax
import jax.numpy as jnp
from jax import lax
from jax.experimental import pallas as pl
from jax.experimental.pallas import tpu as pltpu


def _gelu_exact(x):
    # nn.GELU() default: exact erf-based GELU.
    return 0.5 * x * (1.0 + lax.erf(x * (1.0 / math.sqrt(2.0))))


def mlp_kernel(x_ref, w1_ref, b1_ref, wdw_ref, bdw_ref, w2_ref, b2_ref,
               o_ref, hf_ref, *, W, Th, win_rows):
    t = pl.program_id(1)                       # band index within the image
    n_bands = pl.num_programs(1)
    Tn = Th * W                                # tokens in this band
    pad = W                                    # staging-buffer pad rows per end
    N = x_ref.shape[1]
    C_h = w1_ref.shape[1]

    # ---- fused fc1: band + 1-row halos in a single MXU pass ----------------
    # hf_ref layout (rows): [pad | halo_top (W) | band (Tn) | halo_bot (W) | pad]
    # The window of `win_rows` tokens is clamped to stay inside the image; the
    # store offset shifts so the band always lands at rows [pad+W, pad+W+Tn).
    if win_rows == Tn:                         # single band: no in-image halo
        win_start = 0
        dst0 = pad + W
    else:
        band_start = t * Tn
        win_start = jnp.clip(band_start - W, 0, N - win_rows)
        win_start = pl.multiple_of(win_start, W)         # W % 8 == 0 (aligned)
        dst0 = pl.multiple_of(pad + W + win_start - band_start, W)

    w1 = w1_ref[...]
    x_win = x_ref[0, pl.ds(win_start, win_rows), :]
    h_win = jnp.dot(x_win.astype(w1.dtype), w1,
                    preferred_element_type=jnp.float32) + b1_ref[...]
    hf_ref[pl.ds(dst0, win_rows), :] = h_win              # single staging store

    # Zero only the halo rows that lie *outside* the image (SAME zero padding);
    # interior-band halos were already filled by the window store above.
    zrow = jnp.zeros((W, C_h), jnp.float32)

    @pl.when(t == 0)
    def _():
        hf_ref[pad:pad + W, :] = zrow                     # above image row 0

    @pl.when(t == n_bands - 1)
    def _():
        hf_ref[pad + W + Tn:pad + 2 * W + Tn, :] = zrow   # below image row H-1

    # ---- depthwise 3x3 conv (padding=1, stride=1) ---------------------------
    # 3 sublane-aligned dy-slab loads; dx shifts via XLU rolls.  `mid` doubles
    # as the residual and the centre tap (one load, reused; the fused/shifted
    # fc1 store makes an in-register extraction a dynamic value slice, so a
    # single static aligned reload is cheaper and simpler).
    wdw = wdw_ref[...]                                    # (9, C_h): [(dy+1)*3+(dx+1), c]
    up = hf_ref[pad:pad + Tn, :]                          # h at (y-1, x)
    mid = hf_ref[pad + W:pad + W + Tn, :]                 # h at (y,   x)
    down = hf_ref[pad + 2 * W:pad + 2 * W + Tn, :]        # h at (y+1, x)

    def comb(dx):                                         # weighted dy-sum for one dx
        kx = dx + 1
        return (up * wdw[kx:kx + 1, :]
                + mid * wdw[3 + kx:4 + kx, :]
                + down * wdw[6 + kx:7 + kx, :])

    col = lax.broadcasted_iota(jnp.int32, (Tn, 1), 0) % W
    mask_l = col >= 1                                     # x-1 inside the image
    mask_r = col <= W - 2                                 # x+1 inside the image

    # roll is linear -> combine the dy taps first, then roll once per dx.
    # Wrap-around rows land only on masked columns (x==0 / x==W-1).
    left = pltpu.roll(comb(-1), shift=1, axis=0)          # value from (., x-1)
    right = pltpu.roll(comb(+1), shift=Tn - 1, axis=0)    # value from (., x+1)

    acc = mid + bdw_ref[...] + comb(0)                    # residual + conv bias folded in
    acc = acc + jnp.where(mask_l, left, 0.0)
    acc = acc + jnp.where(mask_r, right, 0.0)

    # ---- GELU (exact, matches nn.GELU default) + fc2 ------------------------
    a = _gelu_exact(acc)
    w2 = w2_ref[...]
    out = jnp.dot(a.astype(w2.dtype), w2,
                  preferred_element_type=jnp.float32) + b2_ref[...]
    o_ref[0] = out.astype(o_ref.dtype)


def _pick_band_rows(H, W, C_hidden, batch=1, budget_bytes=8 << 20):
    """Largest row-band Th dividing H whose f32 band temporaries fit the budget.

    Bigger bands fill the 256-tall MXU, cut per-grid-step overhead and amortize
    the 1-row halo recompute (<= 2/Th of fc1 FLOPs).  Also keeps >= 2 total
    grid steps when `batch` is small so both v7x TensorCores get work.
    """
    divisors = [th for th in range(H, 0, -1)
                if H % th == 0 and (th == H or th + 2 <= H)]

    def footprint(th):
        tn = th * W
        win = tn + (0 if th == H else 2 * W)
        # staging scratch (win + 2 pad rows) + ~4 band-sized f32 temporaries
        return (win + 2 * W + 4 * tn) * C_hidden * 4

    fitting = [th for th in divisors if footprint(th) <= budget_bytes]
    if not fitting:
        return divisors[-1]
    th = fitting[0]
    if batch * (H // th) < 2:                  # load-balance the two v7x TCs
        for cand in fitting:
            if batch * (H // cand) >= 2:
                th = cand
                break
    return th


def _vmem_limit_bytes():
    """Generation-aware VMEM limit: ~112 MiB on 128 MiB parts, ~48 MiB on v7x."""
    try:
        cap = pltpu.get_tpu_info().vmem_capacity_bytes
    except Exception:
        cap = 64 * 1024 * 1024                 # v7x-safe fallback
    return int(max(32 << 20, min(cap - (16 << 20), 112 << 20)))


def mlp_pallas(x, params, H, W, band_rows=None, band_budget_bytes=8 << 20):
    """x: (B, N, C_in) with N == H*W. Returns (B, N, C_out)."""
    B, N, C_in = x.shape
    assert N == H * W
    assert W % 8 == 0, "W must be a multiple of 8 (sublane-aligned image rows)"
    w1, b1, wdw, bdw, w2, b2 = (params["w1"], params["b1"], params["wdw"],
                                params["bdw"], params["w2"], params["b2"])
    C_hidden = w1.shape[1]
    C_out = w2.shape[1]

    if band_rows is None:
        band_rows = _pick_band_rows(H, W, C_hidden, batch=B,
                                    budget_bytes=band_budget_bytes)
    Th = band_rows
    assert H % Th == 0, "band_rows must divide H"
    assert Th == H or Th + 2 <= H, "fused fc1 window must fit inside the image"
    Tn = Th * W
    n_bands = H // Th
    win_rows = Tn if n_bands == 1 else Tn + 2 * W

    kernel = functools.partial(mlp_kernel, W=W, Th=Th, win_rows=win_rows)

    itemsize = jnp.dtype(x.dtype).itemsize
    cost = pl.CostEstimate(
        flops=int(2 * B * N * C_hidden * (C_in + C_out) + 20 * B * N * C_hidden),
        transcendentals=int(B * N * C_hidden),
        bytes_accessed=int(B * N * C_in * itemsize + B * N * C_out * itemsize
                           + w1.size * jnp.dtype(w1.dtype).itemsize
                           + w2.size * jnp.dtype(w2.dtype).itemsize
                           + wdw.size * jnp.dtype(wdw.dtype).itemsize),
    )

    def build_and_run(single_buffer_weights):
        def wspec(shape):
            # constant-index weight blocks: VMEM-resident across the whole grid
            imap = lambda b, t: (0,) * len(shape)
            if single_buffer_weights:
                return pl.BlockSpec(shape, imap, pipeline_mode=pl.Buffered(1))
            return pl.BlockSpec(shape, imap)

        grid_spec = pltpu.PrefetchScalarGridSpec(
            num_scalar_prefetch=0,
            grid=(B, n_bands),
            in_specs=[
                # Full per-batch x stays resident across the band axis.
                # TODO(synk): window x to band+halo rows via manual DMA
                # (memory_space=pl.ANY + make_async_copy) for very large images.
                pl.BlockSpec((1, N, C_in), lambda b, t: (b, 0, 0)),
                wspec((C_in, C_hidden)),     # w1
                wspec((1, C_hidden)),        # b1
                wspec((9, C_hidden)),        # dwconv weights [ky*3+kx, c]
                wspec((1, C_hidden)),        # dwconv bias
                wspec((C_hidden, C_out)),    # w2
                wspec((1, C_out)),           # b2
            ],
            out_specs=pl.BlockSpec((1, Tn, C_out), lambda b, t: (b, t, 0)),
            scratch_shapes=[
                # staged fc1 activations: band + halos + W pad rows per end
                pltpu.VMEM((Tn + 4 * W, C_hidden), jnp.float32),
            ],
        )
        return pl.pallas_call(
            kernel,
            out_shape=jax.ShapeDtypeStruct((B, N, C_out), x.dtype),
            grid_spec=grid_spec,
            compiler_params=pltpu.CompilerParams(
                dimension_semantics=("parallel", "parallel"),
                vmem_limit_bytes=_vmem_limit_bytes(),
            ),
            cost_estimate=cost,
        )(x, w1, b1, wdw, bdw, w2, b2)

    try:
        return build_and_run(True)
    except Exception:
        # Fallback for jax versions without BlockSpec(pipeline_mode=...) /
        # Buffered(1): default double-buffered weight blocks.
        return build_and_run(False)


def make_params(key, in_features, hidden_features, out_features,
                matmul_dtype=jnp.bfloat16):
    k1, k2, k3 = jax.random.split(key, 3)
    # Linear: trunc_normal(std=0.02) approximated with normal*0.02, bias 0.
    # fc weights stored in bf16 -> fast MXU path; f32 accumulation is kept via
    # preferred_element_type inside the kernel.
    w1 = (jax.random.normal(k1, (in_features, hidden_features), jnp.float32)
          * 0.02).astype(matmul_dtype)
    b1 = jnp.zeros((1, hidden_features), jnp.float32)
    w2 = (jax.random.normal(k2, (hidden_features, out_features), jnp.float32)
          * 0.02).astype(matmul_dtype)
    b2 = jnp.zeros((1, out_features), jnp.float32)
    # Depthwise Conv2d(dim, dim, 3, groups=dim): fan_out = 3*3*dim/dim = 9.
    std = math.sqrt(2.0 / 9.0)
    wdw = jax.random.normal(k3, (9, hidden_features), jnp.float32) * std
    bdw = jnp.zeros((1, hidden_features), jnp.float32)
    return dict(w1=w1, b1=b1, wdw=wdw, bdw=bdw, w2=w2, b2=b2)


def mlp_reference(x, params, H, W):
    """Pure-JAX reference mirroring the PyTorch forward (channels-last), using
    the same mixed precision as the kernel (bf16 matmul operands, f32 accum)."""
    B, N, _ = x.shape
    w1, w2 = params["w1"], params["w2"]
    h = jnp.dot(x.astype(w1.dtype), w1,
                preferred_element_type=jnp.float32) + params["b1"]      # (B,N,Ch)
    Ch = h.shape[-1]
    h_img = h.reshape(B, H, W, Ch)                                      # NHWC
    wdw = params["wdw"].reshape(3, 3, 1, Ch)                            # HWIO depthwise
    conv = lax.conv_general_dilated(
        h_img, wdw, window_strides=(1, 1), padding="SAME",
        dimension_numbers=("NHWC", "HWIO", "NHWC"),
        feature_group_count=Ch) + params["bdw"]
    conv = conv.reshape(B, N, Ch)
    pre = h + conv
    a = 0.5 * pre * (1.0 + lax.erf(pre / math.sqrt(2.0)))
    out = jnp.dot(a.astype(w2.dtype), w2,
                  preferred_element_type=jnp.float32) + params["b2"]
    return out.astype(x.dtype)


if __name__ == "__main__":
    B, H, W = 2, 16, 16
    N = H * W
    in_features, hidden_features = 128, 256      # lane-aligned (multiples of 128)
    out_features = in_features

    key = jax.random.PRNGKey(0)
    kx, kp = jax.random.split(key)
    x = jax.random.normal(kx, (B, N, in_features), jnp.float32)
    params = make_params(kp, in_features, hidden_features, out_features)

    ref = mlp_reference(x, params, H, W)

    # Multi-band config: 4 bands -> exercises first / interior / last band halo
    # handling of the fused-window + roll-based conv path.
    out_banded = jax.block_until_ready(mlp_pallas(x, params, H, W, band_rows=4))
    # Auto-picked config: single large band (full-MXU fill path).
    out_auto = jax.block_until_ready(mlp_pallas(x, params, H, W))

    assert out_banded.shape == (B, N, out_features)
    assert out_auto.shape == (B, N, out_features)
    assert jnp.allclose(out_banded, ref, atol=1e-3, rtol=1e-3), "banded mismatch"
    assert jnp.allclose(out_auto, ref, atol=1e-3, rtol=1e-3), "auto mismatch"

    print("KERNEL_OK")
</pallas_src>

<mosaic_0001>
module attributes {stable_mosaic.version = 11 : i64} {
  func.func @mlp_kernel(%arg0: i32, %arg1: i32, %arg2: memref<1x256x128xf32, #tpu.memory_space<vmem>>, %arg3: memref<128x256xbf16, #tpu.memory_space<vmem>>, %arg4: memref<1x256xf32, #tpu.memory_space<vmem>>, %arg5: memref<9x256xf32, #tpu.memory_space<vmem>>, %arg6: memref<1x256xf32, #tpu.memory_space<vmem>>, %arg7: memref<256x128xbf16, #tpu.memory_space<vmem>>, %arg8: memref<1x128xf32, #tpu.memory_space<vmem>>, %arg9: memref<1x64x128xf32, #tpu.memory_space<vmem>>, %arg10: memref<128x256xf32, #tpu.memory_space<vmem>>) attributes {dimension_semantics = [#tpu.dimension_semantics<parallel>, #tpu.dimension_semantics<parallel>], iteration_bounds = array<i64: 2, 4>, scalar_prefetch = 0 : i64, scratch_operands = 1 : i64, tpu.core_type = #tpu.core_type<tc>, window_params = [{transform_indices = @transform_0, window_bounds = array<i64: 1, 256, 128>}, {pipeline_mode = #tpu.pipeline_mode<synchronous>, transform_indices = @transform_1, window_bounds = array<i64: 128, 256>}, {pipeline_mode = #tpu.pipeline_mode<synchronous>, transform_indices = @transform_2, window_bounds = array<i64: 1, 256>}, {pipeline_mode = #tpu.pipeline_mode<synchronous>, transform_indices = @transform_3, window_bounds = array<i64: 9, 256>}, {pipeline_mode = #tpu.pipeline_mode<synchronous>, transform_indices = @transform_4, window_bounds = array<i64: 1, 256>}, {pipeline_mode = #tpu.pipeline_mode<synchronous>, transform_indices = @transform_5, window_bounds = array<i64: 256, 128>}, {pipeline_mode = #tpu.pipeline_mode<synchronous>, transform_indices = @transform_6, window_bounds = array<i64: 1, 128>}, {transform_indices = @transform_7, window_bounds = array<i64: 1, 64, 128>}]} {
    %c64_i32 = arith.constant 64 : i32
    %0 = arith.muli %arg1, %c64_i32 : i32
    %c16_i32 = arith.constant 16 : i32
    %1 = arith.subi %0, %c16_i32 : i32
    %c0_i32 = arith.constant 0 : i32
    %c160_i32 = arith.constant 160 : i32
    %2 = arith.maxsi %c0_i32, %1 : i32
    %3 = arith.minsi %c160_i32, %2 : i32
    %4 = tpu.assume_multiple %3, 16 : i32
    %c32_i32 = arith.constant 32 : i32
    %5 = arith.addi %c32_i32, %4 : i32
    %6 = arith.subi %5, %0 : i32
    %7 = tpu.assume_multiple %6, 16 : i32
    %c0 = arith.constant 0 : index
    %c0_0 = arith.constant 0 : index
    %8 = vector.load %arg3[%c0, %c0_0] : memref<128x256xbf16, #tpu.memory_space<vmem>>, vector<128x256xbf16>
    %c0_1 = arith.constant 0 : index
    %9 = arith.index_cast %4 : i32 to index
    %c0_2 = arith.constant 0 : index
    %10 = vector.load %arg2[%c0_1, %9, %c0_2] : memref<1x256x128xf32, #tpu.memory_space<vmem>>, vector<1x96x128xf32>
    %11 = vector.shape_cast %10 : vector<1x96x128xf32> to vector<96x128xf32>
    %12 = arith.truncf %11 : vector<96x128xf32> to vector<96x128xbf16>
    %cst = arith.constant dense<0.000000e+00> : vector<96x256xf32>
    %13 = tpu.matmul %12, %8, %cst {dimension_numbers = #tpu.dot_dimension_numbers<[1], [0], [0], [1], [0, 0, 1, 1], [], []>} : vector<96x128xbf16>, vector<128x256xbf16>, vector<96x256xf32> -> vector<96x256xf32>
    %c0_3 = arith.constant 0 : index
    %c0_4 = arith.constant 0 : index
    %14 = vector.load %arg4[%c0_3, %c0_4] : memref<1x256xf32, #tpu.memory_space<vmem>>, vector<1x256xf32>
    %15 = vector.broadcast %14 : vector<1x256xf32> to vector<96x256xf32>
    %16 = arith.addf %13, %15 : vector<96x256xf32>
    %17 = arith.index_cast %7 : i32 to index
    %c0_5 = arith.constant 0 : index
    %18 = vector.load %arg10[%17, %c0_5] : memref<128x256xf32, #tpu.memory_space<vmem>>, vector<96x256xf32>
    tpu.vector_store %arg10[%17, %c0_5], %16 {strides = array<i32>} : memref<128x256xf32, #tpu.memory_space<vmem>>, vector<96x256xf32>,
    %cst_6 = arith.constant 0.000000e+00 : f32
    %19 = vector.broadcast %cst_6 : f32 to vector<16x256xf32>
    %c0_i32_7 = arith.constant 0 : i32
    %20 = arith.cmpi eq, %arg1, %c0_i32_7 : i32
    %21 = arith.extui %20 : i1 to i32
    %c0_i32_8 = arith.constant 0 : i32
    %22 = arith.cmpi ne, %21, %c0_i32_8 : i32
    scf.if %22 {
      %c16_37 = arith.constant 16 : index
      %c0_38 = arith.constant 0 : index
      %117 = vector.load %arg10[%c16_37, %c0_38] : memref<128x256xf32, #tpu.memory_space<vmem>>, vector<16x256xf32>
      tpu.vector_store %arg10[%c16_37, %c0_38], %19 {strides = array<i32>} : memref<128x256xf32, #tpu.memory_space<vmem>>, vector<16x256xf32>,
    } else {
    }
    %c3_i32 = arith.constant 3 : i32
    %23 = arith.cmpi eq, %arg1, %c3_i32 : i32
    %24 = arith.extui %23 : i1 to i32
    %c0_i32_9 = arith.constant 0 : i32
    %25 = arith.cmpi ne, %24, %c0_i32_9 : i32
    scf.if %25 {
      %c96 = arith.constant 96 : index
      %c0_37 = arith.constant 0 : index
      %117 = vector.load %arg10[%c96, %c0_37] : memref<128x256xf32, #tpu.memory_space<vmem>>, vector<16x256xf32>
      tpu.vector_store %arg10[%c96, %c0_37], %19 {strides = array<i32>} : memref<128x256xf32, #tpu.memory_space<vmem>>, vector<16x256xf32>,
    } else {
    }
    %c0_10 = arith.constant 0 : index
    %c0_11 = arith.constant 0 : index
    %26 = vector.load %arg5[%c0_10, %c0_11] : memref<9x256xf32, #tpu.memory_space<vmem>>, vector<9x256xf32>
    %c16 = arith.constant 16 : index
    %c0_12 = arith.constant 0 : index
    %27 = vector.load %arg10[%c16, %c0_12] : memref<128x256xf32, #tpu.memory_space<vmem>>, vector<64x256xf32>
    %c32 = arith.constant 32 : index
    %c0_13 = arith.constant 0 : index
    %28 = vector.load %arg10[%c32, %c0_13] : memref<128x256xf32, #tpu.memory_space<vmem>>, vector<64x256xf32>
    %c48 = arith.constant 48 : index
    %c0_14 = arith.constant 0 : index
    %29 = vector.load %arg10[%c48, %c0_14] : memref<128x256xf32, #tpu.memory_space<vmem>>, vector<64x256xf32>
    %30 = tpu.iota {dimensions = array<i32: 0>} : vector<64x1xi32>
    %c16_i32_15 = arith.constant 16 : i32
    %c0_i32_16 = arith.constant 0 : i32
    %31 = arith.cmpi eq, %c16_i32_15, %c0_i32_16 : i32
    %c1_i32 = arith.constant 1 : i32
    %32 = arith.select %31, %c1_i32, %c16_i32_15 : i32
    %33 = vector.broadcast %32 : i32 to vector<64x1xi32>
    %34 = arith.remsi %30, %33 : vector<64x1xi32>
    %c0_i32_17 = arith.constant 0 : i32
    %35 = vector.broadcast %c0_i32_17 : i32 to vector<64x1xi32>
    %36 = arith.cmpi ne, %34, %35 : vector<64x1xi32>
    %c0_i32_18 = arith.constant 0 : i32
    %37 = vector.broadcast %c0_i32_18 : i32 to vector<64x1xi32>
    %38 = arith.cmpi slt, %34, %37 : vector<64x1xi32>
    %c0_i32_19 = arith.constant 0 : i32
    %39 = arith.cmpi slt, %32, %c0_i32_19 : i32
    %40 = vector.broadcast %39 : i1 to vector<64x1xi1>
    %41 = vector.broadcast %40 : vector<64x1xi1> to vector<64x1xi1>
    %42 = arith.xori %38, %41 : vector<64x1xi1>
    %43 = arith.andi %42, %36 : vector<64x1xi1>
    %44 = vector.broadcast %32 : i32 to vector<64x1xi32>
    %45 = arith.addi %34, %44 : vector<64x1xi32>
    %46 = arith.select %43, %45, %34 : vector<64x1xi1>, vector<64x1xi32>
    %c1_i32_20 = arith.constant 1 : i32
    %47 = vector.broadcast %c1_i32_20 : i32 to vector<64x1xi32>
    %48 = arith.cmpi sge, %46, %47 : vector<64x1xi32>
    %c14_i32 = arith.constant 14 : i32
    %49 = vector.broadcast %c14_i32 : i32 to vector<64x1xi32>
    %50 = arith.cmpi sle, %46, %49 : vector<64x1xi32>
    %51 = vector.extract_strided_slice %26 {offsets = [0, 0], sizes = [1, 256], strides = [1, 1]} : vector<9x256xf32> to vector<1x256xf32>
    %52 = vector.broadcast %51 : vector<1x256xf32> to vector<64x256xf32>
    %53 = arith.mulf %27, %52 : vector<64x256xf32>
    %54 = vector.extract_strided_slice %26 {offsets = [3, 0], sizes = [1, 256], strides = [1, 1]} : vector<9x256xf32> to vector<1x256xf32>
    %55 = vector.broadcast %54 : vector<1x256xf32> to vector<64x256xf32>
    %56 = arith.mulf %28, %55 : vector<64x256xf32>
    %57 = arith.addf %53, %56 : vector<64x256xf32>
    %58 = vector.extract_strided_slice %26 {offsets = [6, 0], sizes = [1, 256], strides = [1, 1]} : vector<9x256xf32> to vector<1x256xf32>
    %59 = vector.broadcast %58 : vector<1x256xf32> to vector<64x256xf32>
    %60 = arith.mulf %29, %59 : vector<64x256xf32>
    %61 = arith.addf %57, %60 : vector<64x256xf32>
    %c1_i32_21 = arith.constant 1 : i32
    %62 = tpu.dynamic_rotate %61 by %c1_i32_21 dim 0 : vector<64x256xf32>, i32 -> vector<64x256xf32>
    %63 = vector.extract_strided_slice %26 {offsets = [2, 0], sizes = [1, 256], strides = [1, 1]} : vector<9x256xf32> to vector<1x256xf32>
    %64 = vector.broadcast %63 : vector<1x256xf32> to vector<64x256xf32>
    %65 = arith.mulf %27, %64 : vector<64x256xf32>
    %66 = vector.extract_strided_slice %26 {offsets = [5, 0], sizes = [1, 256], strides = [1, 1]} : vector<9x256xf32> to vector<1x256xf32>
    %67 = vector.broadcast %66 : vector<1x256xf32> to vector<64x256xf32>
    %68 = arith.mulf %28, %67 : vector<64x256xf32>
    %69 = arith.addf %65, %68 : vector<64x256xf32>
    %70 = vector.extract_strided_slice %26 {offsets = [8, 0], sizes = [1, 256], strides = [1, 1]} : vector<9x256xf32> to vector<1x256xf32>
    %71 = vector.broadcast %70 : vector<1x256xf32> to vector<64x256xf32>
    %72 = arith.mulf %29, %71 : vector<64x256xf32>
    %73 = arith.addf %69, %72 : vector<64x256xf32>
    %c63_i32 = arith.constant 63 : i32
    %74 = tpu.dynamic_rotate %73 by %c63_i32 dim 0 : vector<64x256xf32>, i32 -> vector<64x256xf32>
    %c0_22 = arith.constant 0 : index
    %c0_23 = arith.constant 0 : index
    %75 = vector.load %arg6[%c0_22, %c0_23] : memref<1x256xf32, #tpu.memory_space<vmem>>, vector<1x256xf32>
    %76 = vector.broadcast %75 : vector<1x256xf32> to vector<64x256xf32>
    %77 = arith.addf %28, %76 : vector<64x256xf32>
    %78 = vector.extract_strided_slice %26 {offsets = [1, 0], sizes = [1, 256], strides = [1, 1]} : vector<9x256xf32> to vector<1x256xf32>
    %79 = vector.broadcast %78 : vector<1x256xf32> to vector<64x256xf32>
    %80 = arith.mulf %27, %79 : vector<64x256xf32>
    %81 = vector.extract_strided_slice %26 {offsets = [4, 0], sizes = [1, 256], strides = [1, 1]} : vector<9x256xf32> to vector<1x256xf32>
    %82 = vector.broadcast %81 : vector<1x256xf32> to vector<64x256xf32>
    %83 = arith.mulf %28, %82 : vector<64x256xf32>
    %84 = arith.addf %80, %83 : vector<64x256xf32>
    %85 = vector.extract_strided_slice %26 {offsets = [7, 0], sizes = [1, 256], strides = [1, 1]} : vector<9x256xf32> to vector<1x256xf32>
    %86 = vector.broadcast %85 : vector<1x256xf32> to vector<64x256xf32>
    %87 = arith.mulf %29, %86 : vector<64x256xf32>
    %88 = arith.addf %84, %87 : vector<64x256xf32>
    %89 = arith.addf %77, %88 : vector<64x256xf32>
    %cst_24 = arith.constant 0.000000e+00 : f32
    %90 = vector.shape_cast %48 : vector<64x1xi1> to vector<64x1xi1>
    %91 = vector.broadcast %90 : vector<64x1xi1> to vector<64x256xi1>
    %92 = vector.broadcast %cst_24 : f32 to vector<64x256xf32>
    %93 = arith.select %91, %62, %92 : vector<64x256xi1>, vector<64x256xf32>
    %94 = arith.addf %89, %93 : vector<64x256xf32>
    %cst_25 = arith.constant 0.000000e+00 : f32
    %95 = vector.shape_cast %50 : vector<64x1xi1> to vector<64x1xi1>
    %96 = vector.broadcast %95 : vector<64x1xi1> to vector<64x256xi1>
    %97 = vector.broadcast %cst_25 : f32 to vector<64x256xf32>
    %98 = arith.select %96, %74, %97 : vector<64x256xi1>, vector<64x256xf32>
    %99 = arith.addf %94, %98 : vector<64x256xf32>
    %cst_26 = arith.constant 5.000000e-01 : f32
    %100 = vector.broadcast %cst_26 : f32 to vector<64x256xf32>
    %101 = arith.mulf %100, %99 : vector<64x256xf32>
    %cst_27 = arith.constant 0.707106769 : f32
    %102 = vector.broadcast %cst_27 : f32 to vector<64x256xf32>
    %103 = arith.mulf %99, %102 : vector<64x256xf32>
    %104 = math.erf %103 : vector<64x256xf32>
    %cst_28 = arith.constant 1.000000e+00 : f32
    %105 = vector.broadcast %cst_28 : f32 to vector<64x256xf32>
    %106 = arith.addf %105, %104 : vector<64x256xf32>
    %107 = arith.mulf %101, %106 : vector<64x256xf32>
    %c0_29 = arith.constant 0 : index
    %c0_30 = arith.constant 0 : index
    %108 = vector.load %arg7[%c0_29, %c0_30] : memref<256x128xbf16, #tpu.memory_space<vmem>>, vector<256x128xbf16>
    %109 = arith.truncf %107 : vector<64x256xf32> to vector<64x256xbf16>
    %cst_31 = arith.constant dense<0.000000e+00> : vector<64x128xf32>
    %110 = tpu.matmul %109, %108, %cst_31 {dimension_numbers = #tpu.dot_dimension_numbers<[1], [0], [0], [1], [0, 0, 1, 1], [], []>} : vector<64x256xbf16>, vector<256x128xbf16>, vector<64x128xf32> -> vector<64x128xf32>
    %c0_32 = arith.constant 0 : index
    %c0_33 = arith.constant 0 : index
    %111 = vector.load %arg8[%c0_32, %c0_33] : memref<1x128xf32, #tpu.memory_space<vmem>>, vector<1x128xf32>
    %112 = vector.broadcast %111 : vector<1x128xf32> to vector<64x128xf32>
    %113 = arith.addf %110, %112 : vector<64x128xf32>
    %c0_34 = arith.constant 0 : index
    %c0_35 = arith.constant 0 : index
    %c0_36 = arith.constant 0 : index
    %114 = vector.load %arg9[%c0_34, %c0_35, %c0_36] : memref<1x64x128xf32, #tpu.memory_space<vmem>>, vector<1x64x128xf32>
    %115 = vector.shape_cast %114 : vector<1x64x128xf32> to vector<64x128xf32>
    %116 = vector.shape_cast %113 : vector<64x128xf32> to vector<1x64x128xf32>
    tpu.vector_store %arg9[%c0_34, %c0_35, %c0_36], %116 {strides = array<i32>} : memref<1x64x128xf32, #tpu.memory_space<vmem>>, vector<1x64x128xf32>,
    return
  }
  func.func @transform_0(%arg0: i32, %arg1: i32) -> (i32, i32, i32) {
    %c0_i32 = arith.constant 0 : i32
    %c0_i32_0 = arith.constant 0 : i32
    %c0_i32_1 = arith.constant 0 : i32
    return %arg0, %c0_i32, %c0_i32_0 : i32, i32, i32
  }
  func.func @transform_1(%arg0: i32, %arg1: i32) -> (i32, i32) {
    %c0_i32 = arith.constant 0 : i32
    %c0_i32_0 = arith.constant 0 : i32
    %c0_i32_1 = arith.constant 0 : i32
    return %c0_i32, %c0_i32_0 : i32, i32
  }
  func.func @transform_2(%arg0: i32, %arg1: i32) -> (i32, i32) {
    %c0_i32 = arith.constant 0 : i32
    %c0_i32_0 = arith.constant 0 : i32
    %c0_i32_1 = arith.constant 0 : i32
    return %c0_i32, %c0_i32_0 : i32, i32
  }
  func.func @transform_3(%arg0: i32, %arg1: i32) -> (i32, i32) {
    %c0_i32 = arith.constant 0 : i32
    %c0_i32_0 = arith.constant 0 : i32
    %c0_i32_1 = arith.constant 0 : i32
    return %c0_i32, %c0_i32_0 : i32, i32
  }
  func.func @transform_4(%arg0: i32, %arg1: i32) -> (i32, i32) {
    %c0_i32 = arith.constant 0 : i32
    %c0_i32_0 = arith.constant 0 : i32
    %c0_i32_1 = arith.constant 0 : i32
    return %c0_i32, %c0_i32_0 : i32, i32
  }
  func.func @transform_5(%arg0: i32, %arg1: i32) -> (i32, i32) {
    %c0_i32 = arith.constant 0 : i32
    %c0_i32_0 = arith.constant 0 : i32
    %c0_i32_1 = arith.constant 0 : i32
    return %c0_i32, %c0_i32_0 : i32, i32
  }
  func.func @transform_6(%arg0: i32, %arg1: i32) -> (i32, i32) {
    %c0_i32 = arith.constant 0 : i32
    %c0_i32_0 = arith.constant 0 : i32
    %c0_i32_1 = arith.constant 0 : i32
    return %c0_i32, %c0_i32_0 : i32, i32
  }
  func.func @transform_7(%arg0: i32, %arg1: i32) -> (i32, i32, i32) {
    %c0_i32 = arith.constant 0 : i32
    %c0_i32_0 = arith.constant 0 : i32
    return %arg0, %arg1, %c0_i32 : i32, i32, i32
  }
}

module attributes {stable_mosaic.version = 11 : i64} {
  func.func @mlp_kernel(%arg0: i32, %arg1: i32, %arg2: memref<1x256x128xf32, #tpu.memory_space<vmem>>, %arg3: memref<128x256xbf16, #tpu.memory_space<vmem>>, %arg4: memref<1x256xf32, #tpu.memory_space<vmem>>, %arg5: memref<9x256xf32, #tpu.memory_space<vmem>>, %arg6: memref<1x256xf32, #tpu.memory_space<vmem>>, %arg7: memref<256x128xbf16, #tpu.memory_space<vmem>>, %arg8: memref<1x128xf32, #tpu.memory_space<vmem>>, %arg9: memref<1x64x128xf32, #tpu.memory_space<vmem>>, %arg10: memref<128x256xf32, #tpu.memory_space<vmem>>) attributes {dimension_semantics = [#tpu.dimension_semantics<parallel>, #tpu.dimension_semantics<parallel>], iteration_bounds = array<i64: 2, 4>, scalar_prefetch = 0 : i64, scratch_operands = 1 : i64, tpu.core_type = #tpu.core_type<tc>, window_params = [{transform_indices = @transform_0, window_bounds = array<i64: 1, 256, 128>}, {pipeline_mode = #tpu.pipeline_mode<synchronous>, transform_indices = @transform_1, window_bounds = array<i64: 128, 256>}, {pipeline_mode = #tpu.pipeline_mode<synchronous>, transform_indices = @transform_2, window_bounds = array<i64: 1, 256>}, {pipeline_mode = #tpu.pipeline_mode<synchronous>, transform_indices = @transform_3, window_bounds = array<i64: 9, 256>}, {pipeline_mode = #tpu.pipeline_mode<synchronous>, transform_indices = @transform_4, window_bounds = array<i64: 1, 256>}, {pipeline_mode = #tpu.pipeline_mode<synchronous>, transform_indices = @transform_5, window_bounds = array<i64: 256, 128>}, {pipeline_mode = #tpu.pipeline_mode<synchronous>, transform_indices = @transform_6, window_bounds = array<i64: 1, 128>}, {transform_indices = @transform_7, window_bounds = array<i64: 1, 64, 128>}]} {
    %c64_i32 = arith.constant 64 : i32
    %0 = arith.muli %arg1, %c64_i32 : i32
    %c16_i32 = arith.constant 16 : i32
    %1 = arith.subi %0, %c16_i32 : i32
    %c0_i32 = arith.constant 0 : i32
    %c160_i32 = arith.constant 160 : i32
    %2 = arith.maxsi %c0_i32, %1 : i32
    %3 = arith.minsi %c160_i32, %2 : i32
    %4 = tpu.assume_multiple %3, 16 : i32
    %c32_i32 = arith.constant 32 : i32
    %5 = arith.addi %c32_i32, %4 : i32
    %6 = arith.subi %5, %0 : i32
    %7 = tpu.assume_multiple %6, 16 : i32
    %c0 = arith.constant 0 : index
    %c0_0 = arith.constant 0 : index
    %8 = vector.load %arg3[%c0, %c0_0] : memref<128x256xbf16, #tpu.memory_space<vmem>>, vector<128x256xbf16>
    %c0_1 = arith.constant 0 : index
    %9 = arith.index_cast %4 : i32 to index
    %c0_2 = arith.constant 0 : index
    %10 = vector.load %arg2[%c0_1, %9, %c0_2] : memref<1x256x128xf32, #tpu.memory_space<vmem>>, vector<1x96x128xf32>
    %11 = vector.shape_cast %10 : vector<1x96x128xf32> to vector<96x128xf32>
    %12 = arith.truncf %11 : vector<96x128xf32> to vector<96x128xbf16>
    %cst = arith.constant dense<0.000000e+00> : vector<96x256xf32>
    %13 = tpu.matmul %12, %8, %cst {dimension_numbers = #tpu.dot_dimension_numbers<[1], [0], [0], [1], [0, 0, 1, 1], [], []>} : vector<96x128xbf16>, vector<128x256xbf16>, vector<96x256xf32> -> vector<96x256xf32>
    %c0_3 = arith.constant 0 : index
    %c0_4 = arith.constant 0 : index
    %14 = vector.load %arg4[%c0_3, %c0_4] : memref<1x256xf32, #tpu.memory_space<vmem>>, vector<1x256xf32>
    %15 = vector.broadcast %14 : vector<1x256xf32> to vector<96x256xf32>
    %16 = arith.addf %13, %15 : vector<96x256xf32>
    %17 = arith.index_cast %7 : i32 to index
    %c0_5 = arith.constant 0 : index
    %18 = vector.load %arg10[%17, %c0_5] : memref<128x256xf32, #tpu.memory_space<vmem>>, vector<96x256xf32>
    tpu.vector_store %arg10[%17, %c0_5], %16 {strides = array<i32>} : memref<128x256xf32, #tpu.memory_space<vmem>>, vector<96x256xf32>,
    %cst_6 = arith.constant 0.000000e+00 : f32
    %19 = vector.broadcast %cst_6 : f32 to vector<16x256xf32>
    %c0_i32_7 = arith.constant 0 : i32
    %20 = arith.cmpi eq, %arg1, %c0_i32_7 : i32
    %21 = arith.extui %20 : i1 to i32
    %c0_i32_8 = arith.constant 0 : i32
    %22 = arith.cmpi ne, %21, %c0_i32_8 : i32
    scf.if %22 {
      %c16_37 = arith.constant 16 : index
      %c0_38 = arith.constant 0 : index
      %117 = vector.load %arg10[%c16_37, %c0_38] : memref<128x256xf32, #tpu.memory_space<vmem>>, vector<16x256xf32>
      tpu.vector_store %arg10[%c16_37, %c0_38], %19 {strides = array<i32>} : memref<128x256xf32, #tpu.memory_space<vmem>>, vector<16x256xf32>,
    } else {
    }
    %c3_i32 = arith.constant 3 : i32
    %23 = arith.cmpi eq, %arg1, %c3_i32 : i32
    %24 = arith.extui %23 : i1 to i32
    %c0_i32_9 = arith.constant 0 : i32
    %25 = arith.cmpi ne, %24, %c0_i32_9 : i32
    scf.if %25 {
      %c96 = arith.constant 96 : index
      %c0_37 = arith.constant 0 : index
      %117 = vector.load %arg10[%c96, %c0_37] : memref<128x256xf32, #tpu.memory_space<vmem>>, vector<16x256xf32>
      tpu.vector_store %arg10[%c96, %c0_37], %19 {strides = array<i32>} : memref<128x256xf32, #tpu.memory_space<vmem>>, vector<16x256xf32>,
    } else {
    }
    %c0_10 = arith.constant 0 : index
    %c0_11 = arith.constant 0 : index
    %26 = vector.load %arg5[%c0_10, %c0_11] : memref<9x256xf32, #tpu.memory_space<vmem>>, vector<9x256xf32>
    %c16 = arith.constant 16 : index
    %c0_12 = arith.constant 0 : index
    %27 = vector.load %arg10[%c16, %c0_12] : memref<128x256xf32, #tpu.memory_space<vmem>>, vector<64x256xf32>
    %c32 = arith.constant 32 : index
    %c0_13 = arith.constant 0 : index
    %28 = vector.load %arg10[%c32, %c0_13] : memref<128x256xf32, #tpu.memory_space<vmem>>, vector<64x256xf32>
    %c48 = arith.constant 48 : index
    %c0_14 = arith.constant 0 : index
    %29 = vector.load %arg10[%c48, %c0_14] : memref<128x256xf32, #tpu.memory_space<vmem>>, vector<64x256xf32>
    %30 = tpu.iota {dimensions = array<i32: 0>} : vector<64x1xi32>
    %c16_i32_15 = arith.constant 16 : i32
    %c0_i32_16 = arith.constant 0 : i32
    %31 = arith.cmpi eq, %c16_i32_15, %c0_i32_16 : i32
    %c1_i32 = arith.constant 1 : i32
    %32 = arith.select %31, %c1_i32, %c16_i32_15 : i32
    %33 = vector.broadcast %32 : i32 to vector<64x1xi32>
    %34 = arith.remsi %30, %33 : vector<64x1xi32>
    %c0_i32_17 = arith.constant 0 : i32
    %35 = vector.broadcast %c0_i32_17 : i32 to vector<64x1xi32>
    %36 = arith.cmpi ne, %34, %35 : vector<64x1xi32>
    %c0_i32_18 = arith.constant 0 : i32
    %37 = vector.broadcast %c0_i32_18 : i32 to vector<64x1xi32>
    %38 = arith.cmpi slt, %34, %37 : vector<64x1xi32>
    %c0_i32_19 = arith.constant 0 : i32
    %39 = arith.cmpi slt, %32, %c0_i32_19 : i32
    %40 = vector.broadcast %39 : i1 to vector<64x1xi1>
    %41 = vector.broadcast %40 : vector<64x1xi1> to vector<64x1xi1>
    %42 = arith.xori %38, %41 : vector<64x1xi1>
    %43 = arith.andi %42, %36 : vector<64x1xi1>
    %44 = vector.broadcast %32 : i32 to vector<64x1xi32>
    %45 = arith.addi %34, %44 : vector<64x1xi32>
    %46 = arith.select %43, %45, %34 : vector<64x1xi1>, vector<64x1xi32>
    %c1_i32_20 = arith.constant 1 : i32
    %47 = vector.broadcast %c1_i32_20 : i32 to vector<64x1xi32>
    %48 = arith.cmpi sge, %46, %47 : vector<64x1xi32>
    %c14_i32 = arith.constant 14 : i32
    %49 = vector.broadcast %c14_i32 : i32 to vector<64x1xi32>
    %50 = arith.cmpi sle, %46, %49 : vector<64x1xi32>
    %51 = vector.extract_strided_slice %26 {offsets = [0, 0], sizes = [1, 256], strides = [1, 1]} : vector<9x256xf32> to vector<1x256xf32>
    %52 = vector.broadcast %51 : vector<1x256xf32> to vector<64x256xf32>
    %53 = arith.mulf %27, %52 : vector<64x256xf32>
    %54 = vector.extract_strided_slice %26 {offsets = [3, 0], sizes = [1, 256], strides = [1, 1]} : vector<9x256xf32> to vector<1x256xf32>
    %55 = vector.broadcast %54 : vector<1x256xf32> to vector<64x256xf32>
    %56 = arith.mulf %28, %55 : vector<64x256xf32>
    %57 = arith.addf %53, %56 : vector<64x256xf32>
    %58 = vector.extract_strided_slice %26 {offsets = [6, 0], sizes = [1, 256], strides = [1, 1]} : vector<9x256xf32> to vector<1x256xf32>
    %59 = vector.broadcast %58 : vector<1x256xf32> to vector<64x256xf32>
    %60 = arith.mulf %29, %59 : vector<64x256xf32>
    %61 = arith.addf %57, %60 : vector<64x256xf32>
    %c1_i32_21 = arith.constant 1 : i32
    %62 = tpu.dynamic_rotate %61 by %c1_i32_21 dim 0 : vector<64x256xf32>, i32 -> vector<64x256xf32>
    %63 = vector.extract_strided_slice %26 {offsets = [2, 0], sizes = [1, 256], strides = [1, 1]} : vector<9x256xf32> to vector<1x256xf32>
    %64 = vector.broadcast %63 : vector<1x256xf32> to vector<64x256xf32>
    %65 = arith.mulf %27, %64 : vector<64x256xf32>
    %66 = vector.extract_strided_slice %26 {offsets = [5, 0], sizes = [1, 256], strides = [1, 1]} : vector<9x256xf32> to vector<1x256xf32>
    %67 = vector.broadcast %66 : vector<1x256xf32> to vector<64x256xf32>
    %68 = arith.mulf %28, %67 : vector<64x256xf32>
    %69 = arith.addf %65, %68 : vector<64x256xf32>
    %70 = vector.extract_strided_slice %26 {offsets = [8, 0], sizes = [1, 256], strides = [1, 1]} : vector<9x256xf32> to vector<1x256xf32>
    %71 = vector.broadcast %70 : vector<1x256xf32> to vector<64x256xf32>
    %72 = arith.mulf %29, %71 : vector<64x256xf32>
    %73 = arith.addf %69, %72 : vector<64x256xf32>
    %c63_i32 = arith.constant 63 : i32
    %74 = tpu.dynamic_rotate %73 by %c63_i32 dim 0 : vector<64x256xf32>, i32 -> vector<64x256xf32>
    %c0_22 = arith.constant 0 : index
    %c0_23 = arith.constant 0 : index
    %75 = vector.load %arg6[%c0_22, %c0_23] : memref<1x256xf32, #tpu.memory_space<vmem>>, vector<1x256xf32>
    %76 = vector.broadcast %75 : vector<1x256xf32> to vector<64x256xf32>
    %77 = arith.addf %28, %76 : vector<64x256xf32>
    %78 = vector.extract_strided_slice %26 {offsets = [1, 0], sizes = [1, 256], strides = [1, 1]} : vector<9x256xf32> to vector<1x256xf32>
    %79 = vector.broadcast %78 : vector<1x256xf32> to vector<64x256xf32>
    %80 = arith.mulf %27, %79 : vector<64x256xf32>
    %81 = vector.extract_strided_slice %26 {offsets = [4, 0], sizes = [1, 256], strides = [1, 1]} : vector<9x256xf32> to vector<1x256xf32>
    %82 = vector.broadcast %81 : vector<1x256xf32> to vector<64x256xf32>
    %83 = arith.mulf %28, %82 : vector<64x256xf32>
    %84 = arith.addf %80, %83 : vector<64x256xf32>
    %85 = vector.extract_strided_slice %26 {offsets = [7, 0], sizes = [1, 256], strides = [1, 1]} : vector<9x256xf32> to vector<1x256xf32>
    %86 = vector.broadcast %85 : vector<1x256xf32> to vector<64x256xf32>
    %87 = arith.mulf %29, %86 : vector<64x256xf32>
    %88 = arith.addf %84, %87 : vector<64x256xf32>
    %89 = arith.addf %77, %88 : vector<64x256xf32>
    %cst_24 = arith.constant 0.000000e+00 : f32
    %90 = vector.shape_cast %48 : vector<64x1xi1> to vector<64x1xi1>
    %91 = vector.broadcast %90 : vector<64x1xi1> to vector<64x256xi1>
    %92 = vector.broadcast %cst_24 : f32 to vector<64x256xf32>
    %93 = arith.select %91, %62, %92 : vector<64x256xi1>, vector<64x256xf32>
    %94 = arith.addf %89, %93 : vector<64x256xf32>
    %cst_25 = arith.constant 0.000000e+00 : f32
    %95 = vector.shape_cast %50 : vector<64x1xi1> to vector<64x1xi1>
    %96 = vector.broadcast %95 : vector<64x1xi1> to vector<64x256xi1>
    %97 = vector.broadcast %cst_25 : f32 to vector<64x256xf32>
    %98 = arith.select %96, %74, %97 : vector<64x256xi1>, vector<64x256xf32>
    %99 = arith.addf %94, %98 : vector<64x256xf32>
    %cst_26 = arith.constant 5.000000e-01 : f32
    %100 = vector.broadcast %cst_26 : f32 to vector<64x256xf32>
    %101 = arith.mulf %100, %99 : vector<64x256xf32>
    %cst_27 = arith.constant 0.707106769 : f32
    %102 = vector.broadcast %cst_27 : f32 to vector<64x256xf32>
    %103 = arith.mulf %99, %102 : vector<64x256xf32>
    %104 = math.erf %103 : vector<64x256xf32>
    %cst_28 = arith.constant 1.000000e+00 : f32
    %105 = vector.broadcast %cst_28 : f32 to vector<64x256xf32>
    %106 = arith.addf %105, %104 : vector<64x256xf32>
    %107 = arith.mulf %101, %106 : vector<64x256xf32>
    %c0_29 = arith.constant 0 : index
    %c0_30 = arith.constant 0 : index
    %108 = vector.load %arg7[%c0_29, %c0_30] : memref<256x128xbf16, #tpu.memory_space<vmem>>, vector<256x128xbf16>
    %109 = arith.truncf %107 : vector<64x256xf32> to vector<64x256xbf16>
    %cst_31 = arith.constant dense<0.000000e+00> : vector<64x128xf32>
    %110 = tpu.matmul %109, %108, %cst_31 {dimension_numbers = #tpu.dot_dimension_numbers<[1], [0], [0], [1], [0, 0, 1, 1], [], []>} : vector<64x256xbf16>, vector<256x128xbf16>, vector<64x128xf32> -> vector<64x128xf32>
    %c0_32 = arith.constant 0 : index
    %c0_33 = arith.constant 0 : index
    %111 = vector.load %arg8[%c0_32, %c0_33] : memref<1x128xf32, #tpu.memory_space<vmem>>, vector<1x128xf32>
    %112 = vector.broadcast %111 : vector<1x128xf32> to vector<64x128xf32>
    %113 = arith.addf %110, %112 : vector<64x128xf32>
    %c0_34 = arith.constant 0 : index
    %c0_35 = arith.constant 0 : index
    %c0_36 = arith.constant 0 : index
    %114 = vector.load %arg9[%c0_34, %c0_35, %c0_36] : memref<1x64x128xf32, #tpu.memory_space<vmem>>, vector<1x64x128xf32>
    %115 = vector.shape_cast %114 : vector<1x64x128xf32> to vector<64x128xf32>
    %116 = vector.shape_cast %113 : vector<64x128xf32> to vector<1x64x128xf32>
    tpu.vector_store %arg9[%c0_34, %c0_35, %c0_36], %116 {strides = array<i32>} : memref<1x64x128xf32, #tpu.memory_space<vmem>>, vector<1x64x128xf32>,
    return
  }
  func.func @transform_0(%arg0: i32, %arg1: i32) -> (i32, i32, i32) {
    %c0_i32 = arith.constant 0 : i32
    %c0_i32_0 = arith.constant 0 : i32
    %c0_i32_1 = arith.constant 0 : i32
    return %arg0, %c0_i32, %c0_i32_0 : i32, i32, i32
  }
  func.func @transform_1(%arg0: i32, %arg1: i32) -> (i32, i32) {
    %c0_i32 = arith.constant 0 : i32
    %c0_i32_0 = arith.constant 0 : i32
    %c0_i32_1 = arith.constant 0 : i32
    return %c0_i32, %c0_i32_0 : i32, i32
  }
  func.func @transform_2(%arg0: i32, %arg1: i32) -> (i32, i32) {
    %c0_i32 = arith.constant 0 : i32
    %c0_i32_0 = arith.constant 0 : i32
    %c0_i32_1 = arith.constant 0 : i32
    return %c0_i32, %c0_i32_0 : i32, i32
  }
  func.func @transform_3(%arg0: i32, %arg1: i32) -> (i32, i32) {
    %c0_i32 = arith.constant 0 : i32
    %c0_i32_0 = arith.constant 0 : i32
    %c0_i32_1 = arith.constant 0 : i32
    return %c0_i32, %c0_i32_0 : i32, i32
  }
  func.func @transform_4(%arg0: i32, %arg1: i32) -> (i32, i32) {
    %c0_i32 = arith.constant 0 : i32
    %c0_i32_0 = arith.constant 0 : i32
    %c0_i32_1 = arith.constant 0 : i32
    return %c0_i32, %c0_i32_0 : i32, i32
  }
  func.func @transform_5(%arg0: i32, %arg1: i32) -> (i32, i32) {
    %c0_i32 = arith.constant 0 : i32
    %c0_i32_0 = arith.constant 0 : i32
    %c0_i32_1 = arith.constant 0 : i32
    return %c0_i32, %c0_i32_0 : i32, i32
  }
  func.func @transform_6(%arg0: i32, %arg1: i32) -> (i32, i32) {
    %c0_i32 = arith.constant 0 : i32
    %c0_i32_0 = arith.constant 0 : i32
    %c0_i32_1 = arith.constant 0 : i32
    return %c0_i32, %c0_i32_0 : i32, i32
  }
  func.func @transform_7(%arg0: i32, %arg1: i32) -> (i32, i32, i32) {
    %c0_i32 = arith.constant 0 : i32
    %c0_i32_0 = arith.constant 0 : i32
    return %arg0, %arg1, %c0_i32 : i32, i32, i32
  }
}

</mosaic_0001>

<llo_original>
// kernel: tpu_custom_call.1
$region0: #{tpu_custom_call.1}
  #allocation0 [shape = 'u32[]', space=smem, size = 0x4, offset = 0x4, fixed_abs, tag = 'smem constant byte address 0x4 - core index']
  #allocation1 [shape = 'u32[72,128]{1,0:T(1,128)}', space=vmem, size = 0x9000, scoped, tag = 'internal scratch']
  #allocation2 [shape = 'f32[128,256]{1,0:T(8,128)}', space=vmem, size = 0x20000, scoped, tag = 'scratch operand']
  %s0 = inlined_call_operand.hbm [shape: f32[2,256,128], index: 0, kind: input, shape index: {}]
  %s1 = inlined_call_operand.hbm [shape: bf16[128,256], index: 1, kind: input, shape index: {}]
  %s2 = inlined_call_operand.hbm [shape: f32[1,256], index: 2, kind: input, shape index: {}]
  %s3 = inlined_call_operand.hbm [shape: f32[9,256], index: 3, kind: input, shape index: {}]
  %s4 = inlined_call_operand.vmem [shape: f32[1,256], index: 4, kind: input, shape index: {}]
  %s5 = inlined_call_operand.hbm [shape: bf16[256,128], index: 5, kind: input, shape index: {}]
  %s6 = inlined_call_operand.vmem [shape: f32[1,128], index: 6, kind: input, shape index: {}]
  %s7 = inlined_call_operand.hbm [shape: f32[2,256,128], index: 7, kind: output, shape index: {}]
  %s8 = sld [smem:[#allocation0]]
  $region89: #{tpu_custom_call.1} parent=0
    _
  %s10 = ssub.s32 1, %s8
  %s11 = scalar_select 0, %s10, %s8
  $region1: #{tpu_custom_call.1} parent=0
    #allocation3 [shape = 'u8[262144]{0}', space=vmem, size = 0x40000, scoped, tag = 'input window, operand 0']
    #allocation4 [shape = 's32[2]{0}', space=sflag, size = 0x8, scoped, tag = 'scoped memory for tpu_custom_call.1']
    #allocation5 [shape = 's32[2]{0}', space=sflag, size = 0x8, scoped, tag = 'scoped memory for tpu_custom_call.1']
    #allocation6 [shape = 'u8[65536]{0}', space=vmem, size = 0x10000, scoped, tag = 'input window, operand 1, single buffered']
    #allocation7 [shape = 's32[1]{0}', space=sflag, size = 0x4, scoped, tag = 'scoped memory for tpu_custom_call.1']
    #allocation8 [shape = 'u8[1024]{0}', space=vmem, size = 0x400, scoped, tag = 'input window, operand 2, single buffered']
    #allocation9 [shape = 'u8[16384]{0}', space=vmem, size = 0x4000, scoped, tag = 'input window, operand 3, single buffered']
    #allocation10 [shape = 's32[1]{0}', space=sflag, size = 0x4, scoped, tag = 'scoped memory for tpu_custom_call.1']
    #allocation11 [shape = 'u8[65536]{0}', space=vmem, size = 0x10000, scoped, tag = 'input window, operand 5, single buffered']
    #allocation12 [shape = 'u8[65536]{0}', space=vmem, size = 0x10000, scoped, tag = 'output window, operand 0']
    %12 = vsyncpa [#allocation4], 0
    %s13 = scalar_lea.sflag [#allocation4], 1
    %14 = vsyncpa %s13, 0
    %15 = vsyncpa [#allocation7], 0
    %16 = vsyncpa [#allocation10], 0
    %17 = vsyncpa [#allocation5], 0
    %s18 = scalar_lea.sflag [#allocation5], 1
    %19 = vsyncpa %s18, 0
    loop: start=0, step=1, limit=10
    $region2: #{tpu_custom_call.1} parent=1 // loop_pre_header
      _
    $region3: #{tpu_custom_call.1} parent=1 // loop_header
      %s21 = sphi 0, %s25
      %p22 = scmp.ge.s32.totalorder %s21, 10
      %s28 = sphi 0, %s40
      %s29 = sphi 0, %s36
      %s30 = sphi 0, %s28
      %s31 = sphi 0, %s29
      %s32 = sphi 0, %s30
      %s33 = sphi 0, %s31
      %s43 = sphi 0, %s45
      %s46 = sphi 0, %s43
      %s47 = sphi 0, %s46
      %s63 = sphi 0, %s47
      %s67 = sphi 0, %s67
      %s69 = sphi 0, %s67
      %s70 = sphi 0, %s69
      %s84 = sphi 0, %s70
      %s88 = sphi 0, %s88
      %s90 = sphi 0, %s88
      %s91 = sphi 0, %s90
      %s105 = sphi 0, %s91
      %s109 = sphi 0, %s109
      %s111 = sphi 0, %s109
      %s112 = sphi 0, %s111
      %s126 = sphi 0, %s112
      %s130 = sphi 0, %s130
      %s132 = sphi 0, %s130
      %s133 = sphi 0, %s132
      %s147 = sphi 0, %s133
      %s151 = sphi 0, %s151
      %s153 = sphi 0, %s151
      %s154 = sphi 0, %s153
      %s168 = sphi 0, %s154
      %s172 = sphi 0, %s172
      %s174 = sphi 0, %s172
      %s175 = sphi 0, %s174
      %s189 = sphi 0, %s175
      %s197 = sphi 0, %s199
      %s200 = sphi 0, %s197
      %s201 = sphi 0, %s200
      %s217 = sphi 0, %s201
    $region4: #{tpu_custom_call.1} parent=1 // loop_header_branch
      %24 = sbr.rel (%p22) target = $region8
    $region5: #{tpu_custom_call.1} parent=1 // loop_body
      %s26 = ssub.s32 %s21, 1
      %s27 = ssub.s32 %s21, 2
      %s34 = sadd.s32 1, %s29
      %p35 = scmp.ge.s32.totalorder %s34, 4
      %s36 = scalar_select %p35, 0, %s34
      %s37 = sadd.s32 1, %s28
      %s38 = scalar_select %p35, %s37, %s28
      %p39 = scmp.ge.s32.totalorder %s38, 2
      %s40 = scalar_select %p39, 0, %s38
      %s41 = ssub.s32 %s28, %s40
      %p42 = scmp.eq.s32.totalorder %s41, 0
      %s44 = sadd.s32 %s43, 1
      %s45 = scalar_select %p42, %s43, %s44
      %p48 = pneg %p42
      %p49 = scmp.eq.s32.totalorder %s21, 7
      %p50 = por %p48, %p49
      %p51 = scmp.ne.s32.totalorder %s43, %s46
      %p52 = scmp.eq.s32.totalorder %s21, 0
      %p53 = por %p51, %p52
      %p54 = scmp.ne.s32.totalorder %s43, %s46
      %p55 = scmp.eq.s32.totalorder %s26, 7
      %p56 = por %p54, %p55
      %p57 = scmp.ne.s32.totalorder %s46, %s47
      %p58 = scmp.eq.s32.totalorder %s26, 0
      %p59 = por %p57, %p58
      %p60 = scmp.ne.s32.totalorder %s46, %s47
      %p61 = scmp.eq.s32.totalorder %s27, 7
      %p62 = por %p60, %p61
      %p64 = scmp.ne.s32.totalorder %s47, %s63
      %p65 = scmp.eq.s32.totalorder %s27, 0
      %p66 = por %p64, %p65
      %s68 = sadd.s32 %s67, 1
      %p71 = scmp.eq.s32.totalorder %s21, 7
      %p72 = scmp.ne.s32.totalorder %s67, %s69
      %p73 = scmp.eq.s32.totalorder %s21, 0
      %p74 = por %p72, %p73
      %p75 = scmp.ne.s32.totalorder %s67, %s69
      %p76 = scmp.eq.s32.totalorder %s26, 7
      %p77 = por %p75, %p76
      %p78 = scmp.ne.s32.totalorder %s69, %s70
      %p79 = scmp.eq.s32.totalorder %s26, 0
      %p80 = por %p78, %p79
      %p81 = scmp.ne.s32.totalorder %s69, %s70
      %p82 = scmp.eq.s32.totalorder %s27, 7
      %p83 = por %p81, %p82
      %p85 = scmp.ne.s32.totalorder %s70, %s84
      %p86 = scmp.eq.s32.totalorder %s27, 0
      %p87 = por %p85, %p86
      %s89 = sadd.s32 %s88, 1
      %p92 = scmp.eq.s32.totalorder %s21, 7
      %p93 = scmp.ne.s32.totalorder %s88, %s90
      %p94 = scmp.eq.s32.totalorder %s21, 0
      %p95 = por %p93, %p94
      %p96 = scmp.ne.s32.totalorder %s88, %s90
      %p97 = scmp.eq.s32.totalorder %s26, 7
      %p98 = por %p96, %p97
      %p99 = scmp.ne.s32.totalorder %s90, %s91
      %p100 = scmp.eq.s32.totalorder %s26, 0
      %p101 = por %p99, %p100
      %p102 = scmp.ne.s32.totalorder %s90, %s91
      %p103 = scmp.eq.s32.totalorder %s27, 7
      %p104 = por %p102, %p103
      %p106 = scmp.ne.s32.totalorder %s91, %s105
      %p107 = scmp.eq.s32.totalorder %s27, 0
      %p108 = por %p106, %p107
      %s110 = sadd.s32 %s109, 1
      %p113 = scmp.eq.s32.totalorder %s21, 7
      %p114 = scmp.ne.s32.totalorder %s109, %s111
      %p115 = scmp.eq.s32.totalorder %s21, 0
      %p116 = por %p114, %p115
      %p117 = scmp.ne.s32.totalorder %s109, %s111
      %p118 = scmp.eq.s32.totalorder %s26, 7
      %p119 = por %p117, %p118
      %p120 = scmp.ne.s32.totalorder %s111, %s112
      %p121 = scmp.eq.s32.totalorder %s26, 0
      %p122 = por %p120, %p121
      %p123 = scmp.ne.s32.totalorder %s111, %s112
      %p124 = scmp.eq.s32.totalorder %s27, 7
      %p125 = por %p123, %p124
      %p127 = scmp.ne.s32.totalorder %s112, %s126
      %p128 = scmp.eq.s32.totalorder %s27, 0
      %p129 = por %p127, %p128
      %s131 = sadd.s32 %s130, 1
      %p134 = scmp.eq.s32.totalorder %s21, 7
      %p135 = scmp.ne.s32.totalorder %s130, %s132
      %p136 = scmp.eq.s32.totalorder %s21, 0
      %p137 = por %p135, %p136
      %p138 = scmp.ne.s32.totalorder %s130, %s132
      %p139 = scmp.eq.s32.totalorder %s26, 7
      %p140 = por %p138, %p139
      %p141 = scmp.ne.s32.totalorder %s132, %s133
      %p142 = scmp.eq.s32.totalorder %s26, 0
      %p143 = por %p141, %p142
      %p144 = scmp.ne.s32.totalorder %s132, %s133
      %p145 = scmp.eq.s32.totalorder %s27, 7
      %p146 = por %p144, %p145
      %p148 = scmp.ne.s32.totalorder %s133, %s147
      %p149 = scmp.eq.s32.totalorder %s27, 0
      %p150 = por %p148, %p149
      %s152 = sadd.s32 %s151, 1
      %p155 = scmp.eq.s32.totalorder %s21, 7
      %p156 = scmp.ne.s32.totalorder %s151, %s153
      %p157 = scmp.eq.s32.totalorder %s21, 0
      %p158 = por %p156, %p157
      %p159 = scmp.ne.s32.totalorder %s151, %s153
      %p160 = scmp.eq.s32.totalorder %s26, 7
      %p161 = por %p159, %p160
      %p162 = scmp.ne.s32.totalorder %s153, %s154
      %p163 = scmp.eq.s32.totalorder %s26, 0
      %p164 = por %p162, %p163
      %p165 = scmp.ne.s32.totalorder %s153, %s154
      %p166 = scmp.eq.s32.totalorder %s27, 7
      %p167 = por %p165, %p166
      %p169 = scmp.ne.s32.totalorder %s154, %s168
      %p170 = scmp.eq.s32.totalorder %s27, 0
      %p171 = por %p169, %p170
      %s173 = sadd.s32 %s172, 1
      %p176 = scmp.eq.s32.totalorder %s21, 7
      %p177 = scmp.ne.s32.totalorder %s172, %s174
      %p178 = scmp.eq.s32.totalorder %s21, 0
      %p179 = por %p177, %p178
      %p180 = scmp.ne.s32.totalorder %s172, %s174
      %p181 = scmp.eq.s32.totalorder %s26, 7
      %p182 = por %p180, %p181
      %p183 = scmp.ne.s32.totalorder %s174, %s175
      %p184 = scmp.eq.s32.totalorder %s26, 0
      %p185 = por %p183, %p184
      %p186 = scmp.ne.s32.totalorder %s174, %s175
      %p187 = scmp.eq.s32.totalorder %s27, 7
      %p188 = por %p186, %p187
      %p190 = scmp.ne.s32.totalorder %s175, %s189
      %p191 = scmp.eq.s32.totalorder %s27, 0
      %p192 = por %p190, %p191
      %s193 = ssub.s32 %s28, %s40
      %s194 = ssub.s32 %s29, %s36
      %s195 = sor.u32 %s193, %s194
      %p196 = scmp.eq.s32.totalorder %s195, 0
      %s198 = sadd.s32 %s197, 1
      %s199 = scalar_select %p196, %s197, %s198
      %p202 = pneg %p196
      %p203 = scmp.eq.s32.totalorder %s21, 7
      %p204 = por %p202, %p203
      %p205 = scmp.ne.s32.totalorder %s197, %s200
      %p206 = scmp.eq.s32.totalorder %s21, 0
      %p207 = por %p205, %p206
      %p208 = scmp.ne.s32.totalorder %s197, %s200
      %p209 = scmp.eq.s32.totalorder %s26, 7
      %p210 = por %p208, %p209
      %p211 = scmp.ne.s32.totalorder %s200, %s201
      %p212 = scmp.eq.s32.totalorder %s26, 0
      %p213 = por %p211, %p212
      %p214 = scmp.ne.s32.totalorder %s200, %s201
      %p215 = scmp.eq.s32.totalorder %s27, 7
      %p216 = por %p214, %p215
      %p218 = scmp.ne.s32.totalorder %s201, %s217
      %p219 = scmp.eq.s32.totalorder %s27, 0
      %p220 = por %p218, %p219
      %p221 = scmp.le.s32.totalorder 1, %s21
      %p222 = scmp.lt.s32.totalorder %s21, 9
      %p223 = pnand %p221, %p222
      %p224 = pneg %p223
      // Predicated region
      $region9: #{tpu_custom_call.1} parent=5 // pred_check
        _
      $region10: #{tpu_custom_call.1} parent=5 // pred_check_branch
        %226 = sbr.rel (%p223) target = $region12
      $region11: #{tpu_custom_call.1} parent=5 // pred_region
        %s227 = ssub.s32 %s21, 1
        // Predicated region
        $region13: #{tpu_custom_call.1} parent=11 // pred_check
          %p228 = pneg %p80
        $region14: #{tpu_custom_call.1} parent=11 // pred_check_branch
          %230 = sbr.rel (%p228) target = $region16
        $region15: #{tpu_custom_call.1} parent=11 // pred_region
          %232 = vsyncadd [#allocation7], 0
          %s233 = sshll.u32 %s1, 4
          %s234 = int_to_ptr.hbm [resolvable:$true] %s233
          %s235 = sshll.u32 [#allocation6], 4
          %s236 = int_to_ptr.vmem [resolvable:$true] %s235
          %241 = dma.hbm_to_vmem [thread:$0]  %s234, 2048, %s236, [#allocation7], 128, 128, 8
        $region16: #{tpu_custom_call.1} parent=11 // pred_fallthru
          _
        // Predicated region
        $region17: #{tpu_custom_call.1} parent=11 // pred_check
          %p242 = pneg %p101
        $region18: #{tpu_custom_call.1} parent=11 // pred_check_branch
          %244 = sbr.rel (%p242) target = $region20
        $region19: #{tpu_custom_call.1} parent=11 // pred_region
          %246 = vsyncadd [#allocation7], 0
          %s248 = sshll.u32 %s2, 4
          %s249 = int_to_ptr.hbm [resolvable:$true] %s248
          %s250 = sshll.u32 [#allocation8], 4
          %s251 = int_to_ptr.vmem [resolvable:$true] %s250
          %253 = dma.hbm_to_vmem [thread:$0]  %s249, 32, %s251, [#allocation7]
        $region20: #{tpu_custom_call.1} parent=11 // pred_fallthru
          _
        // Predicated region
        $region21: #{tpu_custom_call.1} parent=11 // pred_check
          %p254 = pneg %p122
        $region22: #{tpu_custom_call.1} parent=11 // pred_check_branch
          %256 = sbr.rel (%p254) target = $region24
        $region23: #{tpu_custom_call.1} parent=11 // pred_region
          %258 = vsyncadd [#allocation10], 0
          %s259 = sshll.u32 %s3, 4
          %s260 = int_to_ptr.hbm [resolvable:$true] %s259
          %s261 = sshll.u32 [#allocation9], 4
          %s262 = int_to_ptr.vmem [resolvable:$true] %s261
          %267 = dma.hbm_to_vmem [thread:$0]  %s260, 512, %s262, [#allocation10], 256, 256, 16
        $region24: #{tpu_custom_call.1} parent=11 // pred_fallthru
          _
        // Predicated region
        $region25: #{tpu_custom_call.1} parent=11 // pred_check
          %p268 = pneg %p143
        $region26: #{tpu_custom_call.1} parent=11 // pred_check_branch
          %270 = sbr.rel (%p268) target = $region28
        $region27: #{tpu_custom_call.1} parent=11 // pred_region
          _
        $region28: #{tpu_custom_call.1} parent=11 // pred_fallthru
          _
        // Predicated region
        $region29: #{tpu_custom_call.1} parent=11 // pred_check
          %p271 = pneg %p164
        $region30: #{tpu_custom_call.1} parent=11 // pred_check_branch
          %273 = sbr.rel (%p271) target = $region32
        $region31: #{tpu_custom_call.1} parent=11 // pred_region
          %275 = vsyncadd [#allocation10], 0
          %s276 = sshll.u32 %s5, 4
          %s277 = int_to_ptr.hbm [resolvable:$true] %s276
          %s278 = sshll.u32 [#allocation11], 4
          %s279 = int_to_ptr.vmem [resolvable:$true] %s278
          %284 = dma.hbm_to_vmem [thread:$0]  %s277, 2048, %s279, [#allocation10], 64, 64, 4
        $region32: #{tpu_custom_call.1} parent=11 // pred_fallthru
          _
        // Predicated region
        $region33: #{tpu_custom_call.1} parent=11 // pred_check
          %p285 = pneg %p185
        $region34: #{tpu_custom_call.1} parent=11 // pred_check_branch
          %287 = sbr.rel (%p285) target = $region36
        $region35: #{tpu_custom_call.1} parent=11 // pred_region
          _
        $region36: #{tpu_custom_call.1} parent=11 // pred_fallthru
          _
      $region12: #{tpu_custom_call.1} parent=5 // pred_fallthru
        _
      %p288 = scmp.lt.s32.totalorder %s21, 8
      // Predicated region
      $region37: #{tpu_custom_call.1} parent=5 // pred_check
        %p289 = pneg %p288
      $region38: #{tpu_custom_call.1} parent=5 // pred_check_branch
        %291 = sbr.rel (%p289) target = $region40
      $region39: #{tpu_custom_call.1} parent=5 // pred_region
        // Predicated region
        $region41: #{tpu_custom_call.1} parent=39 // pred_check
          %p292 = pneg %p53
        $region42: #{tpu_custom_call.1} parent=39 // pred_check_branch
          %294 = sbr.rel (%p292) target = $region44
        $region43: #{tpu_custom_call.1} parent=39 // pred_region
          %s295 = sand.u32 %s43, 1
          %s296 = scalar_lea.sflag [#allocation4], %s295
          %s297 = sand.u32 %s43, 1
          %s298 = smul.addr %s297, 256
          %s299 = scalar_lea.vmem [#allocation3], %s298
          %301 = vsyncadd %s296, 0
          %s302 = smul.addr %s28, 32
          %s303 = smul.addr %s302, 8
          %s304 = scalar_lea.hbm %s0, %s303
          %s305 = sshll.u32 %s304, 4
          %s306 = int_to_ptr.hbm [resolvable:$true] %s305
          %s307 = sshll.u32 %s299, 4
          %s308 = int_to_ptr.vmem [resolvable:$true] %s307
          %313 = dma.hbm_to_vmem [thread:$0]  %s306, 4096, %s308, %s296, 128, 128, 8
        $region44: #{tpu_custom_call.1} parent=39 // pred_fallthru
          _
      $region40: #{tpu_custom_call.1} parent=5 // pred_fallthru
        _
      %p314 = scmp.le.s32.totalorder 1, %s21
      %p315 = scmp.lt.s32.totalorder %s21, 9
      %p316 = pnand %p314, %p315
      %p317 = pneg %p316
      // Predicated region
      $region45: #{tpu_custom_call.1} parent=5 // pred_check
        _
      $region46: #{tpu_custom_call.1} parent=5 // pred_check_branch
        %319 = sbr.rel (%p316) target = $region48
      $region47: #{tpu_custom_call.1} parent=5 // pred_region
        %s320 = ssub.s32 %s21, 1
        %s321 = sand.u32 %s46, 1
        %s322 = scalar_lea.sflag [#allocation4], %s321
        %s323 = sand.u32 %s46, 1
        %s324 = smul.addr %s323, 256
        %s325 = scalar_lea.vmem [#allocation3], %s324
        // Predicated region
        $region49: #{tpu_custom_call.1} parent=47 // pred_check
          %p326 = pneg %p59
        $region50: #{tpu_custom_call.1} parent=47 // pred_check_branch
          %328 = sbr.rel (%p326) target = $region52
        $region51: #{tpu_custom_call.1} parent=47 // pred_region
          %330 = dma.done %s322, 4096
        $region52: #{tpu_custom_call.1} parent=47 // pred_fallthru
          _
        // Predicated region
        $region53: #{tpu_custom_call.1} parent=47 // pred_check
          %p331 = pneg %p80
        $region54: #{tpu_custom_call.1} parent=47 // pred_check_branch
          %333 = sbr.rel (%p331) target = $region56
        $region55: #{tpu_custom_call.1} parent=47 // pred_region
          %335 = dma.done [#allocation7], 2048
        $region56: #{tpu_custom_call.1} parent=47 // pred_fallthru
          _
        // Predicated region
        $region57: #{tpu_custom_call.1} parent=47 // pred_check
          %p336 = pneg %p101
        $region58: #{tpu_custom_call.1} parent=47 // pred_check_branch
          %338 = sbr.rel (%p336) target = $region60
        $region59: #{tpu_custom_call.1} parent=47 // pred_region
          %340 = dma.done [#allocation7], 32
        $region60: #{tpu_custom_call.1} parent=47 // pred_fallthru
          _
        // Predicated region
        $region61: #{tpu_custom_call.1} parent=47 // pred_check
          %p341 = pneg %p122
        $region62: #{tpu_custom_call.1} parent=47 // pred_check_branch
          %343 = sbr.rel (%p341) target = $region64
        $region63: #{tpu_custom_call.1} parent=47 // pred_region
          %345 = dma.done [#allocation10], 512
        $region64: #{tpu_custom_call.1} parent=47 // pred_fallthru
          _
        // Predicated region
        $region65: #{tpu_custom_call.1} parent=47 // pred_check
          %p346 = pneg %p164
        $region66: #{tpu_custom_call.1} parent=47 // pred_check_branch
          %348 = sbr.rel (%p346) target = $region68
        $region67: #{tpu_custom_call.1} parent=47 // pred_region
          %350 = dma.done [#allocation10], 2048
        $region68: #{tpu_custom_call.1} parent=47 // pred_fallthru
          _
        %s351 = sand.u32 %s46, 1
        %s352 = scalar_lea.sflag [#allocation4], %s351
        %s353 = sand.u32 %s46, 1
        %s354 = smul.addr %s353, 256
        %s355 = scalar_lea.vmem [#allocation3], %s354
        %p356 = pneg %p59
        %p357 = pneg %p56
        %p358 = pneg %p80
        %p359 = pneg %p77
        %p360 = pneg %p101
        %p361 = pneg %p98
        %p362 = pneg %p122
        %p363 = pneg %p119
        %p364 = pneg %p143
        %p365 = pneg %p140
        %p366 = pneg %p164
        %p367 = pneg %p161
        %p368 = pneg %p185
        %p369 = pneg %p182
        %p370 = pneg %p213
        %p371 = pneg %p210
        %s372 = sand.u32 %s200, 1
        %s373 = scalar_lea.sflag [#allocation5], %s372
        %s374 = sand.u32 %s200, 1
        %s375 = smul.addr %s374, 64
        %s376 = scalar_lea.vmem [#allocation12], %s375
        %s377 = smul.u32 8, %s31
        %s378 = smul.u32 %s31, 64
        %s379 = ssub.s32 %s378, 16
        %p380 = scmp.gt.s32.totalorder %s379, 0
        %s381 = scalar_select %p380, %s379, 0
        %p382 = scmp.lt.s32.totalorder %s381, 160
        %s383 = scalar_select %p382, %s381, 160
        %s384 = sadd.s32 %s383, 32
        %s385 = ssub.s32 %s384, %s378
        %v386 = vld [vmem:[#allocation6] sm:$0xff]
        %v387 = vld [vmem:[#allocation6 + $0x8] sm:$0xff]
        %v388 = vld [vmem:[#allocation6 + $0x10] sm:$0xff]
        %v389 = vld [vmem:[#allocation6 + $0x18] sm:$0xff]
        %v390 = vld [vmem:[#allocation6 + $0x20] sm:$0xff]
        %v391 = vld [vmem:[#allocation6 + $0x28] sm:$0xff]
        %v392 = vld [vmem:[#allocation6 + $0x30] sm:$0xff]
        %v393 = vld [vmem:[#allocation6 + $0x38] sm:$0xff]
        %v394 = vld [vmem:[#allocation6 + $0x40] sm:$0xff]
        %v395 = vld [vmem:[#allocation6 + $0x48] sm:$0xff]
        %v396 = vld [vmem:[#allocation6 + $0x50] sm:$0xff]
        %v397 = vld [vmem:[#allocation6 + $0x58] sm:$0xff]
        %v398 = vld [vmem:[#allocation6 + $0x60] sm:$0xff]
        %v399 = vld [vmem:[#allocation6 + $0x68] sm:$0xff]
        %v400 = vld [vmem:[#allocation6 + $0x70] sm:$0xff]
        %v401 = vld [vmem:[#allocation6 + $0x78] sm:$0xff]
        %s402 = scalar_lea.vmem %s325, %s383 [#allocation3]
        %v403 = vld [vmem:[%s402] sm:$0xff]
        %v404 = vld [vmem:[%s402 + $0x8] sm:$0xff]
        %v405 = vld [vmem:[%s402 + $0x10] sm:$0xff]
        %v406 = vld [vmem:[%s402 + $0x18] sm:$0xff]
        %v407 = vld [vmem:[%s402 + $0x20] sm:$0xff]
        %v408 = vld [vmem:[%s402 + $0x28] sm:$0xff]
        %v409 = vld [vmem:[%s402 + $0x30] sm:$0xff]
        %v410 = vld [vmem:[%s402 + $0x38] sm:$0xff]
        %v411 = vld [vmem:[%s402 + $0x40] sm:$0xff]
        %v412 = vld [vmem:[%s402 + $0x48] sm:$0xff]
        %v413 = vld [vmem:[%s402 + $0x50] sm:$0xff]
        %v414 = vld [vmem:[%s402 + $0x58] sm:$0xff]
        %v415 = vpack.c.bf16 %v404, %v403
        %v416 = vpack.c.bf16 %v406, %v405
        %v417 = vpack.c.bf16 %v408, %v407
        %v418 = vpack.c.bf16 %v410, %v409
        %v419 = vpack.c.bf16 %v412, %v411
        %v420 = vpack.c.bf16 %v414, %v413
        %v421 = vld [vmem:[#allocation8] sm:$0x3]
        %v423 = vperm.slane %v421, 0
        %v424 = vperm.slane %v421, 1
        %v443 = vunpack.c.l.b16 %v386
        %v444 = vunpack.c.h.b16 %v386
        %v445 = vunpack.c.l.b16 %v387
        %v446 = vunpack.c.h.b16 %v387
        %v447 = vunpack.c.l.b16 %v388
        %v448 = vunpack.c.h.b16 %v388
        %v449 = vunpack.c.l.b16 %v389
        %v450 = vunpack.c.h.b16 %v389
        %v451 = vunpack.c.l.b16 %v390
        %v452 = vunpack.c.h.b16 %v390
        %v453 = vunpack.c.l.b16 %v391
        %v454 = vunpack.c.h.b16 %v391
        %v455 = vunpack.c.l.b16 %v392
        %v456 = vunpack.c.h.b16 %v392
        %v457 = vunpack.c.l.b16 %v393
        %v458 = vunpack.c.h.b16 %v393
        %v459 = vunpack.c.l.b16 %v394
        %v460 = vunpack.c.h.b16 %v394
        %v461 = vunpack.c.l.b16 %v395
        %v462 = vunpack.c.h.b16 %v395
        %v463 = vunpack.c.l.b16 %v396
        %v464 = vunpack.c.h.b16 %v396
        %v465 = vunpack.c.l.b16 %v397
        %v466 = vunpack.c.h.b16 %v397
        %v467 = vunpack.c.l.b16 %v398
        %v468 = vunpack.c.h.b16 %v398
        %v469 = vunpack.c.l.b16 %v399
        %v470 = vunpack.c.h.b16 %v399
        %v471 = vunpack.c.l.b16 %v400
        %v472 = vunpack.c.h.b16 %v400
        %v473 = vunpack.c.l.b16 %v401
        %v474 = vunpack.c.h.b16 %v401
        %v475 = vpack.c.b16 %v445, %v443
        %v476 = vpack.c.b16 %v446, %v444
        %v477 = vpack.c.b16 %v449, %v447
        %v478 = vpack.c.b16 %v450, %v448
        %v479 = vpack.c.b16 %v453, %v451
        %v480 = vpack.c.b16 %v454, %v452
        %v481 = vpack.c.b16 %v457, %v455
        %v482 = vpack.c.b16 %v458, %v456
        %v483 = vpack.c.b16 %v461, %v459
        %v484 = vpack.c.b16 %v462, %v460
        %v485 = vpack.c.b16 %v465, %v463
        %v486 = vpack.c.b16 %v466, %v464
        %v487 = vpack.c.b16 %v469, %v467
        %v488 = vpack.c.b16 %v470, %v468
        %v489 = vpack.c.b16 %v473, %v471
        %v490 = vpack.c.b16 %v474, %v472
        %507 = vmatpush.bf16.msra.mxu0 %v489
        %508 = vmatpush.bf16.msra.mxu0 %v487
        %509 = vmatpush.bf16.msra.mxu0 %v485
        %510 = vmatpush.bf16.msra.mxu0 %v483
        %511 = vmatpush.bf16.msra.mxu0 %v481
        %512 = vmatpush.bf16.msra.mxu0 %v479
        %513 = vmatpush.bf16.msra.mxu0 %v477
        %514 = vmatpush.bf16.msra.mxu0 %v475
        %515 = vmatmul.bf16.gmra.mxu0 %v415
        %v516 = vpop.f32.mrf.mxu0
        %v517 = vadd.f32 %v423, %v516
        %v518 = vpop.f32.mrf.mxu0
        %v519 = vadd.f32 %v423, %v518
        %520 = vmatmul.bf16.gmra.mxu0 %v416
        %v521 = vpop.f32.mrf.mxu0
        %v522 = vadd.f32 %v423, %v521
        %v523 = vpop.f32.mrf.mxu0
        %v524 = vadd.f32 %v423, %v523
        %525 = vmatmul.bf16.gmra.mxu0 %v417
        %v526 = vpop.f32.mrf.mxu0
        %v527 = vadd.f32 %v423, %v526
        %v528 = vpop.f32.mrf.mxu0
        %v529 = vadd.f32 %v423, %v528
        %530 = vmatmul.bf16.gmra.mxu0 %v418
        %v531 = vpop.f32.mrf.mxu0
        %v532 = vadd.f32 %v423, %v531
        %v533 = vpop.f32.mrf.mxu0
        %v534 = vadd.f32 %v423, %v533
        %535 = vmatmul.bf16.gmra.mxu0 %v419
        %v536 = vpop.f32.mrf.mxu0
        %v537 = vadd.f32 %v423, %v536
        %v538 = vpop.f32.mrf.mxu0
        %v539 = vadd.f32 %v423, %v538
        %540 = vmatmul.bf16.gmra.mxu0 %v420
        %v541 = vpop.f32.mrf.mxu0
        %v542 = vadd.f32 %v423, %v541
        %v543 = vpop.f32.mrf.mxu0
        %v544 = vadd.f32 %v423, %v543
        %545 = vdwg.mxu0
        %546 = vmatpush.bf16.msra.mxu0 %v490
        %547 = vmatpush.bf16.msra.mxu0 %v488
        %548 = vmatpush.bf16.msra.mxu0 %v486
        %549 = vmatpush.bf16.msra.mxu0 %v484
        %550 = vmatpush.bf16.msra.mxu0 %v482
        %551 = vmatpush.bf16.msra.mxu0 %v480
        %552 = vmatpush.bf16.msra.mxu0 %v478
        %553 = vmatpush.bf16.msra.mxu0 %v476
        %554 = vmatmul.bf16.gmra.mxu0 %v415
        %v555 = vpop.f32.mrf.mxu0
        %v556 = vadd.f32 %v424, %v555
        %v557 = vpop.f32.mrf.mxu0
        %v558 = vadd.f32 %v424, %v557
        %559 = vmatmul.bf16.gmra.mxu0 %v416
        %v560 = vpop.f32.mrf.mxu0
        %v561 = vadd.f32 %v424, %v560
        %v562 = vpop.f32.mrf.mxu0
        %v563 = vadd.f32 %v424, %v562
        %564 = vmatmul.bf16.gmra.mxu0 %v417
        %v565 = vpop.f32.mrf.mxu0
        %v566 = vadd.f32 %v424, %v565
        %v567 = vpop.f32.mrf.mxu0
        %v568 = vadd.f32 %v424, %v567
        %569 = vmatmul.bf16.gmra.mxu0 %v418
        %v570 = vpop.f32.mrf.mxu0
        %v571 = vadd.f32 %v424, %v570
        %v572 = vpop.f32.mrf.mxu0
        %v573 = vadd.f32 %v424, %v572
        %574 = vmatmul.bf16.gmra.mxu0 %v419
        %v575 = vpop.f32.mrf.mxu0
        %v576 = vadd.f32 %v424, %v575
        %v577 = vpop.f32.mrf.mxu0
        %v578 = vadd.f32 %v424, %v577
        %579 = vmatmul.bf16.gmra.mxu0 %v420
        %v580 = vpop.f32.mrf.mxu0
        %v581 = vadd.f32 %v424, %v580
        %v582 = vpop.f32.mrf.mxu0
        %v583 = vadd.f32 %v424, %v582
        %584 = vdwg.mxu0
        %s585 = sshra.s32 %s385, 3
        %s586 = sand.u32 %s385, 7
        %s587 = smul.u32 %s585, 2
        %s588 = smul.addr %s587, 8
        %s589 = scalar_lea.vmem [#allocation2], %s588
        %590 = vst [vmem:[%s589] sm:$0xff] %v517
        %591 = vst [vmem:[%s589 + $0x8] sm:$0xff] %v556
        %592 = vst [vmem:[%s589 + $0x10] sm:$0xff] %v519
        %593 = vst [vmem:[%s589 + $0x18] sm:$0xff] %v558
        %594 = vst [vmem:[%s589 + $0x20] sm:$0xff] %v522
        %595 = vst [vmem:[%s589 + $0x28] sm:$0xff] %v561
        %596 = vst [vmem:[%s589 + $0x30] sm:$0xff] %v524
        %597 = vst [vmem:[%s589 + $0x38] sm:$0xff] %v563
        %598 = vst [vmem:[%s589 + $0x40] sm:$0xff] %v527
        %599 = vst [vmem:[%s589 + $0x48] sm:$0xff] %v566
        %600 = vst [vmem:[%s589 + $0x50] sm:$0xff] %v529
        %601 = vst [vmem:[%s589 + $0x58] sm:$0xff] %v568
        %602 = vst [vmem:[%s589 + $0x60] sm:$0xff] %v532
        %603 = vst [vmem:[%s589 + $0x68] sm:$0xff] %v571
        %604 = vst [vmem:[%s589 + $0x70] sm:$0xff] %v534
        %605 = vst [vmem:[%s589 + $0x78] sm:$0xff] %v573
        %606 = vst [vmem:[%s589 + $0x80] sm:$0xff] %v537
        %607 = vst [vmem:[%s589 + $0x88] sm:$0xff] %v576
        %608 = vst [vmem:[%s589 + $0x90] sm:$0xff] %v539
        %609 = vst [vmem:[%s589 + $0x98] sm:$0xff] %v578
        %610 = vst [vmem:[%s589 + $0xa0] sm:$0xff] %v542
        %611 = vst [vmem:[%s589 + $0xa8] sm:$0xff] %v581
        %612 = vst [vmem:[%s589 + $0xb0] sm:$0xff] %v544
        %613 = vst [vmem:[%s589 + $0xb8] sm:$0xff] %v583
        %p614 = scmp.eq.s32.totalorder %s31, 0
        // Predicated region
        $region69: #{tpu_custom_call.1} parent=47 // pred_check
          %p615 = pneg %p614
        $region70: #{tpu_custom_call.1} parent=47 // pred_check_branch
          %617 = sbr.rel (%p615) target = $region72
        $region71: #{tpu_custom_call.1} parent=47 // pred_region
          %618 = vst [vmem:[#allocation2 + $0x20] sm:$0xff] 0.0
          %619 = vst [vmem:[#allocation2 + $0x28] sm:$0xff] 0.0
          %620 = vst [vmem:[#allocation2 + $0x30] sm:$0xff] 0.0
          %621 = vst [vmem:[#allocation2 + $0x38] sm:$0xff] 0.0
        $region72: #{tpu_custom_call.1} parent=47 // pred_fallthru
          _
        %p622 = scmp.eq.s32.totalorder %s31, 3
        // Predicated region
        $region73: #{tpu_custom_call.1} parent=47 // pred_check
          %p623 = pneg %p622
        $region74: #{tpu_custom_call.1} parent=47 // pred_check_branch
          %625 = sbr.rel (%p623) target = $region76
        $region75: #{tpu_custom_call.1} parent=47 // pred_region
          %626 = vst [vmem:[#allocation2 + $0xc0] sm:$0xff] 0.0
          %627 = vst [vmem:[#allocation2 + $0xc8] sm:$0xff] 0.0
          %628 = vst [vmem:[#allocation2 + $0xd0] sm:$0xff] 0.0
          %629 = vst [vmem:[#allocation2 + $0xd8] sm:$0xff] 0.0
        $region76: #{tpu_custom_call.1} parent=47 // pred_fallthru
          _
        %v630 = vld [vmem:[#allocation9] sm:$0xff]
        %v631 = vld [vmem:[#allocation9 + $0x8] sm:$0xff]
        %v632 = vld [vmem:[#allocation9 + $0x10] sm:$0x1]
        %v633 = vld [vmem:[#allocation9 + $0x18] sm:$0x1]
        %v634 = vld [vmem:[#allocation2 + $0x20] sm:$0xff]
        %v635 = vld [vmem:[#allocation2 + $0x28] sm:$0xff]
        %v636 = vld [vmem:[#allocation2 + $0x30] sm:$0xff]
        %v637 = vld [vmem:[#allocation2 + $0x38] sm:$0xff]
        %v638 = vld [vmem:[#allocation2 + $0x40] sm:$0xff]
        %v639 = vld [vmem:[#allocation2 + $0x48] sm:$0xff]
        %v640 = vld [vmem:[#allocation2 + $0x50] sm:$0xff]
        %v641 = vld [vmem:[#allocation2 + $0x58] sm:$0xff]
        %v642 = vld [vmem:[#allocation2 + $0x60] sm:$0xff]
        %v643 = vld [vmem:[#allocation2 + $0x68] sm:$0xff]
        %v644 = vld [vmem:[#allocation2 + $0x70] sm:$0xff]
        %v645 = vld [vmem:[#allocation2 + $0x78] sm:$0xff]
        %v646 = vld [vmem:[#allocation2 + $0x80] sm:$0xff]
        %v647 = vld [vmem:[#allocation2 + $0x88] sm:$0xff]
        %v648 = vld [vmem:[#allocation2 + $0x90] sm:$0xff]
        %v649 = vld [vmem:[#allocation2 + $0x98] sm:$0xff]
        %v650 = vld [vmem:[#allocation2 + $0xa0] sm:$0xff]
        %v651 = vld [vmem:[#allocation2 + $0xa8] sm:$0xff]
        %v652 = vld [vmem:[#allocation2 + $0xb0] sm:$0xff]
        %v653 = vld [vmem:[#allocation2 + $0xb8] sm:$0xff]
        %v654 = vld [vmem:[#allocation2 + $0xc0] sm:$0xff]
        %v655 = vld [vmem:[#allocation2 + $0xc8] sm:$0xff]
        %v656 = vld [vmem:[#allocation2 + $0xd0] sm:$0xff]
        %v657 = vld [vmem:[#allocation2 + $0xd8] sm:$0xff]
        %v658 = vlaneseq
        %v659 = vshrl.u32 %v658, 7
        %v660 = vadd.s32 %v659, 8
        %v661 = vadd.s32 %v659, 16
        %v662 = vadd.s32 %v659, 24
        %v663 = vadd.s32 %v659, 32
        %v664 = vadd.s32 %v659, 40
        %v665 = vadd.s32 %v659, 48
        %v666 = vadd.s32 %v659, 56
        %vm667 = vcmp.lt.s32.totalorder %v659, 0
        %v668 = vsub.s32 0, %v659
        %v669 = vsel %vm667, %v668, %v659
        %v670 = vshrl.u32 %v669, 4
        %v671 = vand.u32 %v669, 15
        %v672 = vsub.s32 0, %v671
        %v673 = vsel %vm667, %v672, %v671
        %vm674 = vcmp.lt.s32.totalorder %v660, 0
        %v675 = vsub.s32 0, %v660
        %v676 = vsel %vm674, %v675, %v660
        %v677 = vshrl.u32 %v676, 4
        %v678 = vand.u32 %v676, 15
        %v679 = vsub.s32 0, %v678
        %v680 = vsel %vm674, %v679, %v678
        %vm681 = vcmp.lt.s32.totalorder %v661, 0
        %v682 = vsub.s32 0, %v661
        %v683 = vsel %vm681, %v682, %v661
        %v684 = vshrl.u32 %v683, 4
        %v685 = vand.u32 %v683, 15
        %v686 = vsub.s32 0, %v685
        %v687 = vsel %vm681, %v686, %v685
        %vm688 = vcmp.lt.s32.totalorder %v662, 0
        %v689 = vsub.s32 0, %v662
        %v690 = vsel %vm688, %v689, %v662
        %v691 = vshrl.u32 %v690, 4
        %v692 = vand.u32 %v690, 15
        %v693 = vsub.s32 0, %v692
        %v694 = vsel %vm688, %v693, %v692
        %vm695 = vcmp.lt.s32.totalorder %v663, 0
        %v696 = vsub.s32 0, %v663
        %v697 = vsel %vm695, %v696, %v663
        %v698 = vshrl.u32 %v697, 4
        %v699 = vand.u32 %v697, 15
        %v700 = vsub.s32 0, %v699
        %v701 = vsel %vm695, %v700, %v699
        %vm702 = vcmp.lt.s32.totalorder %v664, 0
        %v703 = vsub.s32 0, %v664
        %v704 = vsel %vm702, %v703, %v664
        %v705 = vshrl.u32 %v704, 4
        %v706 = vand.u32 %v704, 15
        %v707 = vsub.s32 0, %v706
        %v708 = vsel %vm702, %v707, %v706
        %vm709 = vcmp.lt.s32.totalorder %v665, 0
        %v710 = vsub.s32 0, %v665
        %v711 = vsel %vm709, %v710, %v665
        %v712 = vshrl.u32 %v711, 4
        %v713 = vand.u32 %v711, 15
        %v714 = vsub.s32 0, %v713
        %v715 = vsel %vm709, %v714, %v713
        %vm716 = vcmp.lt.s32.totalorder %v666, 0
        %v717 = vsub.s32 0, %v666
        %v718 = vsel %vm716, %v717, %v666
        %v719 = vshrl.u32 %v718, 4
        %v720 = vand.u32 %v718, 15
        %v721 = vsub.s32 0, %v720
        %v722 = vsel %vm716, %v721, %v720
        %vm723 = vcmp.ne.s32.totalorder %v673, 0
        %vm724 = vcmp.ne.s32.totalorder %v680, 0
        %vm725 = vcmp.ne.s32.totalorder %v687, 0
        %vm726 = vcmp.ne.s32.totalorder %v694, 0
        %vm727 = vcmp.ne.s32.totalorder %v701, 0
        %vm728 = vcmp.ne.s32.totalorder %v708, 0
        %vm729 = vcmp.ne.s32.totalorder %v715, 0
        %vm730 = vcmp.ne.s32.totalorder %v722, 0
        %vm731 = vcmp.lt.s32.totalorder %v673, 0
        %vm732 = vcmp.lt.s32.totalorder %v680, 0
        %vm733 = vcmp.lt.s32.totalorder %v687, 0
        %vm734 = vcmp.lt.s32.totalorder %v694, 0
        %vm735 = vcmp.lt.s32.totalorder %v701, 0
        %vm736 = vcmp.lt.s32.totalorder %v708, 0
        %vm737 = vcmp.lt.s32.totalorder %v715, 0
        %vm738 = vcmp.lt.s32.totalorder %v722, 0
        %vm739 = vmand %vm731, %vm723
        %vm740 = vmand %vm732, %vm724
        %vm741 = vmand %vm733, %vm725
        %vm742 = vmand %vm734, %vm726
        %vm743 = vmand %vm735, %vm727
        %vm744 = vmand %vm736, %vm728
        %vm745 = vmand %vm737, %vm729
        %vm746 = vmand %vm738, %vm730
        %v747 = vadd.s32 %v673, 16
        %v748 = vadd.s32 %v680, 16
        %v749 = vadd.s32 %v687, 16
        %v750 = vadd.s32 %v694, 16
        %v751 = vadd.s32 %v701, 16
        %v752 = vadd.s32 %v708, 16
        %v753 = vadd.s32 %v715, 16
        %v754 = vadd.s32 %v722, 16
        %v755 = vsel %vm739, %v747, %v673
        %v756 = vsel %vm740, %v748, %v680
        %v757 = vsel %vm741, %v749, %v687
        %v758 = vsel %vm742, %v750, %v694
        %v759 = vsel %vm743, %v751, %v701
        %v760 = vsel %vm744, %v752, %v708
        %v761 = vsel %vm745, %v753, %v715
        %v762 = vsel %vm746, %v754, %v722
        %vm763 = vcmp.ge.s32.totalorder %v755, 1
        %vm764 = vcmp.ge.s32.totalorder %v756, 1
        %vm765 = vcmp.ge.s32.totalorder %v757, 1
        %vm766 = vcmp.ge.s32.totalorder %v758, 1
        %vm767 = vcmp.ge.s32.totalorder %v759, 1
        %vm768 = vcmp.ge.s32.totalorder %v760, 1
        %vm769 = vcmp.ge.s32.totalorder %v761, 1
        %vm770 = vcmp.ge.s32.totalorder %v762, 1
        %vm771 = vcmp.le.s32.totalorder %v755, 14
        %vm772 = vcmp.le.s32.totalorder %v756, 14
        %vm773 = vcmp.le.s32.totalorder %v757, 14
        %vm774 = vcmp.le.s32.totalorder %v758, 14
        %vm775 = vcmp.le.s32.totalorder %v759, 14
        %vm776 = vcmp.le.s32.totalorder %v760, 14
        %vm777 = vcmp.le.s32.totalorder %v761, 14
        %vm778 = vcmp.le.s32.totalorder %v762, 14
        %v779 = vperm.slane %v630, 0
        %v780 = vperm.slane %v631, 0
        %v781 = vmul.f32 %v634, %v779
        %v782 = vmul.f32 %v635, %v780
        %v783 = vmul.f32 %v636, %v779
        %v784 = vmul.f32 %v637, %v780
        %v785 = vmul.f32 %v638, %v779
        %v786 = vmul.f32 %v639, %v780
        %v787 = vmul.f32 %v640, %v779
        %v788 = vmul.f32 %v641, %v780
        %v789 = vmul.f32 %v642, %v779
        %v790 = vmul.f32 %v643, %v780
        %v791 = vmul.f32 %v644, %v779
        %v792 = vmul.f32 %v645, %v780
        %v793 = vmul.f32 %v646, %v779
        %v794 = vmul.f32 %v647, %v780
        %v795 = vmul.f32 %v648, %v779
        %v796 = vmul.f32 %v649, %v780
        %v797 = vperm.slane %v630, 3
        %v798 = vperm.slane %v631, 3
        %v799 = vmul.f32 %v638, %v797
        %v800 = vmul.f32 %v639, %v798
        %v801 = vmul.f32 %v640, %v797
        %v802 = vmul.f32 %v641, %v798
        %v803 = vmul.f32 %v642, %v797
        %v804 = vmul.f32 %v643, %v798
        %v805 = vmul.f32 %v644, %v797
        %v806 = vmul.f32 %v645, %v798
        %v807 = vmul.f32 %v646, %v797
        %v808 = vmul.f32 %v647, %v798
        %v809 = vmul.f32 %v648, %v797
        %v810 = vmul.f32 %v649, %v798
        %v811 = vmul.f32 %v650, %v797
        %v812 = vmul.f32 %v651, %v798
        %v813 = vmul.f32 %v652, %v797
        %v814 = vmul.f32 %v653, %v798
        %v815 = vadd.f32 %v781, %v799
        %v816 = vadd.f32 %v782, %v800
        %v817 = vadd.f32 %v783, %v801
        %v818 = vadd.f32 %v784, %v802
        %v819 = vadd.f32 %v785, %v803
        %v820 = vadd.f32 %v786, %v804
        %v821 = vadd.f32 %v787, %v805
        %v822 = vadd.f32 %v788, %v806
        %v823 = vadd.f32 %v789, %v807
        %v824 = vadd.f32 %v790, %v808
        %v825 = vadd.f32 %v791, %v809
        %v826 = vadd.f32 %v792, %v810
        %v827 = vadd.f32 %v793, %v811
        %v828 = vadd.f32 %v794, %v812
        %v829 = vadd.f32 %v795, %v813
        %v830 = vadd.f32 %v796, %v814
        %v831 = vperm.slane %v630, 6
        %v832 = vperm.slane %v631, 6
        %v833 = vmul.f32 %v642, %v831
        %v834 = vmul.f32 %v643, %v832
        %v835 = vmul.f32 %v644, %v831
        %v836 = vmul.f32 %v645, %v832
        %v837 = vmul.f32 %v646, %v831
        %v838 = vmul.f32 %v647, %v832
        %v839 = vmul.f32 %v648, %v831
        %v840 = vmul.f32 %v649, %v832
        %v841 = vmul.f32 %v650, %v831
        %v842 = vmul.f32 %v651, %v832
        %v843 = vmul.f32 %v652, %v831
        %v844 = vmul.f32 %v653, %v832
        %v845 = vmul.f32 %v654, %v831
        %v846 = vmul.f32 %v655, %v832
        %v847 = vmul.f32 %v656, %v831
        %v848 = vmul.f32 %v657, %v832
        %v849 = vadd.f32 %v815, %v833
        %v850 = vadd.f32 %v816, %v834
        %v851 = vadd.f32 %v817, %v835
        %v852 = vadd.f32 %v818, %v836
        %v853 = vadd.f32 %v819, %v837
        %v854 = vadd.f32 %v820, %v838
        %v855 = vadd.f32 %v821, %v839
        %v856 = vadd.f32 %v822, %v840
        %v857 = vadd.f32 %v823, %v841
        %v858 = vadd.f32 %v824, %v842
        %v859 = vadd.f32 %v825, %v843
        %v860 = vadd.f32 %v826, %v844
        %v861 = vadd.f32 %v827, %v845
        %v862 = vadd.f32 %v828, %v846
        %v863 = vadd.f32 %v829, %v847
        %v864 = vadd.f32 %v830, %v848
        %v865 = vrot.slane %v849, 7
        %v866 = vrot.slane %v850, 7
        %v867 = vrot.slane %v851, 7
        %v868 = vrot.slane %v852, 7
        %v869 = vrot.slane %v853, 7
        %v870 = vrot.slane %v854, 7
        %v871 = vrot.slane %v855, 7
        %v872 = vrot.slane %v856, 7
        %v873 = vrot.slane %v857, 7
        %v874 = vrot.slane %v858, 7
        %v875 = vrot.slane %v859, 7
        %v876 = vrot.slane %v860, 7
        %v877 = vrot.slane %v861, 7
        %v878 = vrot.slane %v862, 7
        %v879 = vrot.slane %v863, 7
        %v880 = vrot.slane %v864, 7
        %vm881 = vcmp.lt.s32.totalorder %v659, 1
        %v882 = vsel %vm881, %v877, %v879
        %v883 = vsel %vm881, %v878, %v880
        %v884 = vsel %vm881, %v875, %v877
        %v885 = vsel %vm881, %v876, %v878
        %v886 = vsel %vm881, %v873, %v875
        %v887 = vsel %vm881, %v874, %v876
        %v888 = vsel %vm881, %v871, %v873
        %v889 = vsel %vm881, %v872, %v874
        %v890 = vsel %vm881, %v869, %v871
        %v891 = vsel %vm881, %v870, %v872
        %v892 = vsel %vm881, %v867, %v869
        %v893 = vsel %vm881, %v868, %v870
        %v894 = vsel %vm881, %v865, %v867
        %v895 = vsel %vm881, %v866, %v868
        %v896 = vsel %vm881, %v879, %v865
        %v897 = vsel %vm881, %v880, %v866
        %v898 = vperm.slane %v630, 2
        %v899 = vperm.slane %v631, 2
        %v900 = vmul.f32 %v634, %v898
        %v901 = vmul.f32 %v635, %v899
        %v902 = vmul.f32 %v636, %v898
        %v903 = vmul.f32 %v637, %v899
        %v904 = vmul.f32 %v638, %v898
        %v905 = vmul.f32 %v639, %v899
        %v906 = vmul.f32 %v640, %v898
        %v907 = vmul.f32 %v641, %v899
        %v908 = vmul.f32 %v642, %v898
        %v909 = vmul.f32 %v643, %v899
        %v910 = vmul.f32 %v644, %v898
        %v911 = vmul.f32 %v645, %v899
        %v912 = vmul.f32 %v646, %v898
        %v913 = vmul.f32 %v647, %v899
        %v914 = vmul.f32 %v648, %v898
        %v915 = vmul.f32 %v649, %v899
        %v916 = vperm.slane %v630, 5
        %v917 = vperm.slane %v631, 5
        %v918 = vmul.f32 %v638, %v916
        %v919 = vmul.f32 %v639, %v917
        %v920 = vmul.f32 %v640, %v916
        %v921 = vmul.f32 %v641, %v917
        %v922 = vmul.f32 %v642, %v916
        %v923 = vmul.f32 %v643, %v917
        %v924 = vmul.f32 %v644, %v916
        %v925 = vmul.f32 %v645, %v917
        %v926 = vmul.f32 %v646, %v916
        %v927 = vmul.f32 %v647, %v917
        %v928 = vmul.f32 %v648, %v916
        %v929 = vmul.f32 %v649, %v917
        %v930 = vmul.f32 %v650, %v916
        %v931 = vmul.f32 %v651, %v917
        %v932 = vmul.f32 %v652, %v916
        %v933 = vmul.f32 %v653, %v917
        %v934 = vadd.f32 %v900, %v918
        %v935 = vadd.f32 %v901, %v919
        %v936 = vadd.f32 %v902, %v920
        %v937 = vadd.f32 %v903, %v921
        %v938 = vadd.f32 %v904, %v922
        %v939 = vadd.f32 %v905, %v923
        %v940 = vadd.f32 %v906, %v924
        %v941 = vadd.f32 %v907, %v925
        %v942 = vadd.f32 %v908, %v926
        %v943 = vadd.f32 %v909, %v927
        %v944 = vadd.f32 %v910, %v928
        %v945 = vadd.f32 %v911, %v929
        %v946 = vadd.f32 %v912, %v930
        %v947 = vadd.f32 %v913, %v931
        %v948 = vadd.f32 %v914, %v932
        %v949 = vadd.f32 %v915, %v933
        %v950 = vperm.slane %v632, 0
        %v951 = vperm.slane %v633, 0
        %v952 = vmul.f32 %v642, %v950
        %v953 = vmul.f32 %v643, %v951
        %v954 = vmul.f32 %v644, %v950
        %v955 = vmul.f32 %v645, %v951
        %v956 = vmul.f32 %v646, %v950
        %v957 = vmul.f32 %v647, %v951
        %v958 = vmul.f32 %v648, %v950
        %v959 = vmul.f32 %v649, %v951
        %v960 = vmul.f32 %v650, %v950
        %v961 = vmul.f32 %v651, %v951
        %v962 = vmul.f32 %v652, %v950
        %v963 = vmul.f32 %v653, %v951
        %v964 = vmul.f32 %v654, %v950
        %v965 = vmul.f32 %v655, %v951
        %v966 = vmul.f32 %v656, %v950
        %v967 = vmul.f32 %v657, %v951
        %v968 = vadd.f32 %v934, %v952
        %v969 = vadd.f32 %v935, %v953
        %v970 = vadd.f32 %v936, %v954
        %v971 = vadd.f32 %v937, %v955
        %v972 = vadd.f32 %v938, %v956
        %v973 = vadd.f32 %v939, %v957
        %v974 = vadd.f32 %v940, %v958
        %v975 = vadd.f32 %v941, %v959
        %v976 = vadd.f32 %v942, %v960
        %v977 = vadd.f32 %v943, %v961
        %v978 = vadd.f32 %v944, %v962
        %v979 = vadd.f32 %v945, %v963
        %v980 = vadd.f32 %v946, %v964
        %v981 = vadd.f32 %v947, %v965
        %v982 = vadd.f32 %v948, %v966
        %v983 = vadd.f32 %v949, %v967
        %v984 = vrot.slane %v968, 1
        %v985 = vrot.slane %v969, 1
        %v986 = vrot.slane %v970, 1
        %v987 = vrot.slane %v971, 1
        %v988 = vrot.slane %v972, 1
        %v989 = vrot.slane %v973, 1
        %v990 = vrot.slane %v974, 1
        %v991 = vrot.slane %v975, 1
        %v992 = vrot.slane %v976, 1
        %v993 = vrot.slane %v977, 1
        %v994 = vrot.slane %v978, 1
        %v995 = vrot.slane %v979, 1
        %v996 = vrot.slane %v980, 1
        %v997 = vrot.slane %v981, 1
        %v998 = vrot.slane %v982, 1
        %v999 = vrot.slane %v983, 1
        %vm1000 = vcmp.lt.s32.totalorder %v659, 7
        %v1001 = vsel %vm1000, %v996, %v998
        %v1002 = vsel %vm1000, %v997, %v999
        %v1003 = vsel %vm1000, %v994, %v996
        %v1004 = vsel %vm1000, %v995, %v997
        %v1005 = vsel %vm1000, %v992, %v994
        %v1006 = vsel %vm1000, %v993, %v995
        %v1007 = vsel %vm1000, %v990, %v992
        %v1008 = vsel %vm1000, %v991, %v993
        %v1009 = vsel %vm1000, %v988, %v990
        %v1010 = vsel %vm1000, %v989, %v991
        %v1011 = vsel %vm1000, %v986, %v988
        %v1012 = vsel %vm1000, %v987, %v989
        %v1013 = vsel %vm1000, %v984, %v986
        %v1014 = vsel %vm1000, %v985, %v987
        %v1015 = vsel %vm1000, %v998, %v984
        %v1016 = vsel %vm1000, %v999, %v985
        %v1017 = vld [vmem:[%s4] sm:$0x3]
        %v1019 = vperm.slane %v1017, 0
        %v1020 = vperm.slane %v1017, 1
        %v1023 = vadd.f32 %v638, %v1019
        %v1024 = vadd.f32 %v639, %v1020
        %v1025 = vadd.f32 %v640, %v1019
        %v1026 = vadd.f32 %v641, %v1020
        %v1027 = vadd.f32 %v642, %v1019
        %v1028 = vadd.f32 %v643, %v1020
        %v1029 = vadd.f32 %v644, %v1019
        %v1030 = vadd.f32 %v645, %v1020
        %v1031 = vadd.f32 %v646, %v1019
        %v1032 = vadd.f32 %v647, %v1020
        %v1033 = vadd.f32 %v648, %v1019
        %v1034 = vadd.f32 %v649, %v1020
        %v1035 = vadd.f32 %v650, %v1019
        %v1036 = vadd.f32 %v651, %v1020
        %v1037 = vadd.f32 %v652, %v1019
        %v1038 = vadd.f32 %v653, %v1020
        %v1039 = vperm.slane %v630, 1
        %v1040 = vperm.slane %v631, 1
        %v1041 = vmul.f32 %v634, %v1039
        %v1042 = vmul.f32 %v635, %v1040
        %v1043 = vmul.f32 %v636, %v1039
        %v1044 = vmul.f32 %v637, %v1040
        %v1045 = vmul.f32 %v638, %v1039
        %v1046 = vmul.f32 %v639, %v1040
        %v1047 = vmul.f32 %v640, %v1039
        %v1048 = vmul.f32 %v641, %v1040
        %v1049 = vmul.f32 %v642, %v1039
        %v1050 = vmul.f32 %v643, %v1040
        %v1051 = vmul.f32 %v644, %v1039
        %v1052 = vmul.f32 %v645, %v1040
        %v1053 = vmul.f32 %v646, %v1039
        %v1054 = vmul.f32 %v647, %v1040
        %v1055 = vmul.f32 %v648, %v1039
        %v1056 = vmul.f32 %v649, %v1040
        %v1057 = vperm.slane %v630, 4
        %v1058 = vperm.slane %v631, 4
        %v1059 = vmul.f32 %v638, %v1057
        %v1060 = vmul.f32 %v639, %v1058
        %v1061 = vmul.f32 %v640, %v1057
        %v1062 = vmul.f32 %v641, %v1058
        %v1063 = vmul.f32 %v642, %v1057
        %v1064 = vmul.f32 %v643, %v1058
        %v1065 = vmul.f32 %v644, %v1057
        %v1066 = vmul.f32 %v645, %v1058
        %v1067 = vmul.f32 %v646, %v1057
        %v1068 = vmul.f32 %v647, %v1058
        %v1069 = vmul.f32 %v648, %v1057
        %v1070 = vmul.f32 %v649, %v1058
        %v1071 = vmul.f32 %v650, %v1057
        %v1072 = vmul.f32 %v651, %v1058
        %v1073 = vmul.f32 %v652, %v1057
        %v1074 = vmul.f32 %v653, %v1058
        %v1075 = vadd.f32 %v1041, %v1059
        %v1076 = vadd.f32 %v1042, %v1060
        %v1077 = vadd.f32 %v1043, %v1061
        %v1078 = vadd.f32 %v1044, %v1062
        %v1079 = vadd.f32 %v1045, %v1063
        %v1080 = vadd.f32 %v1046, %v1064
        %v1081 = vadd.f32 %v1047, %v1065
        %v1082 = vadd.f32 %v1048, %v1066
        %v1083 = vadd.f32 %v1049, %v1067
        %v1084 = vadd.f32 %v1050, %v1068
        %v1085 = vadd.f32 %v1051, %v1069
        %v1086 = vadd.f32 %v1052, %v1070
        %v1087 = vadd.f32 %v1053, %v1071
        %v1088 = vadd.f32 %v1054, %v1072
        %v1089 = vadd.f32 %v1055, %v1073
        %v1090 = vadd.f32 %v1056, %v1074
        %v1091 = vperm.slane %v630, 7
        %v1092 = vperm.slane %v631, 7
        %v1093 = vmul.f32 %v642, %v1091
        %v1094 = vmul.f32 %v643, %v1092
        %v1095 = vmul.f32 %v644, %v1091
        %v1096 = vmul.f32 %v645, %v1092
        %v1097 = vmul.f32 %v646, %v1091
        %v1098 = vmul.f32 %v647, %v1092
        %v1099 = vmul.f32 %v648, %v1091
        %v1100 = vmul.f32 %v649, %v1092
        %v1101 = vmul.f32 %v650, %v1091
        %v1102 = vmul.f32 %v651, %v1092
        %v1103 = vmul.f32 %v652, %v1091
        %v1104 = vmul.f32 %v653, %v1092
        %v1105 = vmul.f32 %v654, %v1091
        %v1106 = vmul.f32 %v655, %v1092
        %v1107 = vmul.f32 %v656, %v1091
        %v1108 = vmul.f32 %v657, %v1092
        %v1109 = vadd.f32 %v1075, %v1093
        %v1110 = vadd.f32 %v1076, %v1094
        %v1111 = vadd.f32 %v1077, %v1095
        %v1112 = vadd.f32 %v1078, %v1096
        %v1113 = vadd.f32 %v1079, %v1097
        %v1114 = vadd.f32 %v1080, %v1098
        %v1115 = vadd.f32 %v1081, %v1099
        %v1116 = vadd.f32 %v1082, %v1100
        %v1117 = vadd.f32 %v1083, %v1101
        %v1118 = vadd.f32 %v1084, %v1102
        %v1119 = vadd.f32 %v1085, %v1103
        %v1120 = vadd.f32 %v1086, %v1104
        %v1121 = vadd.f32 %v1087, %v1105
        %v1122 = vadd.f32 %v1088, %v1106
        %v1123 = vadd.f32 %v1089, %v1107
        %v1124 = vadd.f32 %v1090, %v1108
        %v1125 = vadd.f32 %v1023, %v1109
        %v1126 = vadd.f32 %v1024, %v1110
        %v1127 = vadd.f32 %v1025, %v1111
        %v1128 = vadd.f32 %v1026, %v1112
        %v1129 = vadd.f32 %v1027, %v1113
        %v1130 = vadd.f32 %v1028, %v1114
        %v1131 = vadd.f32 %v1029, %v1115
        %v1132 = vadd.f32 %v1030, %v1116
        %v1133 = vadd.f32 %v1031, %v1117
        %v1134 = vadd.f32 %v1032, %v1118
        %v1135 = vadd.f32 %v1033, %v1119
        %v1136 = vadd.f32 %v1034, %v1120
        %v1137 = vadd.f32 %v1035, %v1121
        %v1138 = vadd.f32 %v1036, %v1122
        %v1139 = vadd.f32 %v1037, %v1123
        %v1140 = vadd.f32 %v1038, %v1124
        %v1141 = vsel %vm763, 1, 0
        %v1142 = vsel %vm764, 1, 0
        %v1143 = vsel %vm765, 1, 0
        %v1144 = vsel %vm766, 1, 0
        %v1145 = vsel %vm767, 1, 0
        %v1146 = vsel %vm768, 1, 0
        %v1147 = vsel %vm769, 1, 0
        %v1148 = vsel %vm770, 1, 0
        %vm1149 = vcmp.eq.s32.totalorder %v1141, 1
        %vm1150 = vcmp.eq.s32.totalorder %v1142, 1
        %vm1151 = vcmp.eq.s32.totalorder %v1143, 1
        %vm1152 = vcmp.eq.s32.totalorder %v1144, 1
        %vm1153 = vcmp.eq.s32.totalorder %v1145, 1
        %vm1154 = vcmp.eq.s32.totalorder %v1146, 1
        %vm1155 = vcmp.eq.s32.totalorder %v1147, 1
        %vm1156 = vcmp.eq.s32.totalorder %v1148, 1
        %v1157 = vsel %vm1149, %v896, 0.0
        %v1158 = vsel %vm1149, %v897, 0.0
        %v1159 = vsel %vm1150, %v894, 0.0
        %v1160 = vsel %vm1150, %v895, 0.0
        %v1161 = vsel %vm1151, %v892, 0.0
        %v1162 = vsel %vm1151, %v893, 0.0
        %v1163 = vsel %vm1152, %v890, 0.0
        %v1164 = vsel %vm1152, %v891, 0.0
        %v1165 = vsel %vm1153, %v888, 0.0
        %v1166 = vsel %vm1153, %v889, 0.0
        %v1167 = vsel %vm1154, %v886, 0.0
        %v1168 = vsel %vm1154, %v887, 0.0
        %v1169 = vsel %vm1155, %v884, 0.0
        %v1170 = vsel %vm1155, %v885, 0.0
        %v1171 = vsel %vm1156, %v882, 0.0
        %v1172 = vsel %vm1156, %v883, 0.0
        %v1173 = vadd.f32 %v1125, %v1157
        %v1174 = vadd.f32 %v1126, %v1158
        %v1175 = vadd.f32 %v1127, %v1159
        %v1176 = vadd.f32 %v1128, %v1160
        %v1177 = vadd.f32 %v1129, %v1161
        %v1178 = vadd.f32 %v1130, %v1162
        %v1179 = vadd.f32 %v1131, %v1163
        %v1180 = vadd.f32 %v1132, %v1164
        %v1181 = vadd.f32 %v1133, %v1165
        %v1182 = vadd.f32 %v1134, %v1166
        %v1183 = vadd.f32 %v1135, %v1167
        %v1184 = vadd.f32 %v1136, %v1168
        %v1185 = vadd.f32 %v1137, %v1169
        %v1186 = vadd.f32 %v1138, %v1170
        %v1187 = vadd.f32 %v1139, %v1171
        %v1188 = vadd.f32 %v1140, %v1172
        %v1189 = vsel %vm771, 1, 0
        %v1190 = vsel %vm772, 1, 0
        %v1191 = vsel %vm773, 1, 0
        %v1192 = vsel %vm774, 1, 0
        %v1193 = vsel %vm775, 1, 0
        %v1194 = vsel %vm776, 1, 0
        %v1195 = vsel %vm777, 1, 0
        %v1196 = vsel %vm778, 1, 0
        %vm1197 = vcmp.eq.s32.totalorder %v1189, 1
        %vm1198 = vcmp.eq.s32.totalorder %v1190, 1
        %vm1199 = vcmp.eq.s32.totalorder %v1191, 1
        %vm1200 = vcmp.eq.s32.totalorder %v1192, 1
        %vm1201 = vcmp.eq.s32.totalorder %v1193, 1
        %vm1202 = vcmp.eq.s32.totalorder %v1194, 1
        %vm1203 = vcmp.eq.s32.totalorder %v1195, 1
        %vm1204 = vcmp.eq.s32.totalorder %v1196, 1
        %v1205 = vsel %vm1197, %v1013, 0.0
        %v1206 = vsel %vm1197, %v1014, 0.0
        %v1207 = vsel %vm1198, %v1011, 0.0
        %v1208 = vsel %vm1198, %v1012, 0.0
        %v1209 = vsel %vm1199, %v1009, 0.0
        %v1210 = vsel %vm1199, %v1010, 0.0
        %v1211 = vsel %vm1200, %v1007, 0.0
        %v1212 = vsel %vm1200, %v1008, 0.0
        %v1213 = vsel %vm1201, %v1005, 0.0
        %v1214 = vsel %vm1201, %v1006, 0.0
        %v1215 = vsel %vm1202, %v1003, 0.0
        %v1216 = vsel %vm1202, %v1004, 0.0
        %v1217 = vsel %vm1203, %v1001, 0.0
        %v1218 = vsel %vm1203, %v1002, 0.0
        %v1219 = vsel %vm1204, %v1015, 0.0
        %v1220 = vsel %vm1204, %v1016, 0.0
        %v1221 = vadd.f32 %v1173, %v1205
        %v1222 = vadd.f32 %v1174, %v1206
        %v1223 = vadd.f32 %v1175, %v1207
        %v1224 = vadd.f32 %v1176, %v1208
        %v1225 = vadd.f32 %v1177, %v1209
        %v1226 = vadd.f32 %v1178, %v1210
        %v1227 = vadd.f32 %v1179, %v1211
        %v1228 = vadd.f32 %v1180, %v1212
        %v1229 = vadd.f32 %v1181, %v1213
        %v1230 = vadd.f32 %v1182, %v1214
        %v1231 = vadd.f32 %v1183, %v1215
        %v1232 = vadd.f32 %v1184, %v1216
        %v1233 = vadd.f32 %v1185, %v1217
        %v1234 = vadd.f32 %v1186, %v1218
        %v1235 = vadd.f32 %v1187, %v1219
        %v1236 = vadd.f32 %v1188, %v1220
        %v1237 = vmul.f32 %v1221, 0.5
        %v1238 = vmul.f32 %v1222, 0.5
        %v1239 = vmul.f32 %v1223, 0.5
        %v1240 = vmul.f32 %v1224, 0.5
        %v1241 = vmul.f32 %v1225, 0.5
        %v1242 = vmul.f32 %v1226, 0.5
        %v1243 = vmul.f32 %v1227, 0.5
        %v1244 = vmul.f32 %v1228, 0.5
        %v1245 = vmul.f32 %v1229, 0.5
        %v1246 = vmul.f32 %v1230, 0.5
        %v1247 = vmul.f32 %v1231, 0.5
        %v1248 = vmul.f32 %v1232, 0.5
        %v1249 = vmul.f32 %v1233, 0.5
        %v1250 = vmul.f32 %v1234, 0.5
        %v1251 = vmul.f32 %v1235, 0.5
        %v1252 = vmul.f32 %v1236, 0.5
        %v1253 = vmul.f32 %v1221, 0.70710677
        %v1254 = vmul.f32 %v1222, 0.70710677
        %v1255 = vmul.f32 %v1223, 0.70710677
        %v1256 = vmul.f32 %v1224, 0.70710677
        %v1257 = vmul.f32 %v1225, 0.70710677
        %v1258 = vmul.f32 %v1226, 0.70710677
        %v1259 = vmul.f32 %v1227, 0.70710677
        %v1260 = vmul.f32 %v1228, 0.70710677
        %v1261 = vmul.f32 %v1229, 0.70710677
        %v1262 = vmul.f32 %v1230, 0.70710677
        %v1263 = vmul.f32 %v1231, 0.70710677
        %v1264 = vmul.f32 %v1232, 0.70710677
        %v1265 = vmul.f32 %v1233, 0.70710677
        %v1266 = vmul.f32 %v1234, 0.70710677
        %v1267 = vmul.f32 %v1235, 0.70710677
        %v1268 = vmul.f32 %v1236, 0.70710677
        %v1269 = vmul.f32 %v1253, %v1253
        %v1270 = vmin.f32 16.0, %v1269
        %v1271 = vmul.f32 %v1270, 2.1237322e-06
        %v1272 = vadd.f32 %v1271, 0.00028619796
        %v1273 = vmul.f32 %v1270, %v1272
        %v1274 = vadd.f32 %v1273, 0.0036580483
        %v1275 = vmul.f32 %v1270, %v1274
        %v1276 = vadd.f32 %v1275, 0.05243302
        %v1277 = vmul.f32 %v1270, %v1276
        %v1278 = vadd.f32 %v1277, 0.18741608
        %v1279 = vmul.f32 %v1270, %v1278
        %v1280 = vadd.f32 %v1279, 1.1283791
        %v1281 = vmul.f32 %v1253, %v1280
        %v1282 = vmul.f32 %v1270, 3.8918573e-05
        %v1283 = vadd.f32 %v1282, 0.001143296
        %v1284 = vmul.f32 %v1270, %v1283
        %v1285 = vadd.f32 %v1284, 0.014752088
        %v1286 = vmul.f32 %v1270, %v1285
        %v1287 = vadd.f32 %v1286, 0.112945676
        %v1288 = vmul.f32 %v1270, %v1287
        %v1289 = vadd.f32 %v1288, 0.4994258
        %v1290 = vmul.f32 %v1270, %v1289
        %v1291 = vadd.f32 %v1290, 1.0
        %v1292 = vrcp.pop %v1291
        %v1293 = vmul.f32 %v1291, %v1292
        %v1294 = vsub.f32 1.0, %v1293
        %v1295 = vmul.f32 %v1292, %v1294
        %v1296 = vadd.f32 %v1292, %v1295
        %vm1297 = vweird.f32 %v1291
        %vm1298 = vweird.f32 %v1292
        %vm1299 = vmor %vm1297, %vm1298
        %v1300 = vsel %vm1299, %v1292, %v1296
        %v1301 = vand.u32 2147483647, %v1291
        %vm1302 = vcmp.eq.f32.partialorder %v1301, 8.507059e+37
        %v1303 = vand.u32 %v1291, 2147483648
        %v1304 = vor.u32 1.1754944e-38, %v1303
        %v1305 = vsel %vm1302, %v1304, %v1300
        %v1306 = vmul.f32 %v1281, %v1305
        %v1307 = vmin.f32 %v1306, 1.0
        %v1308 = vmax.f32 %v1307, -1.0
        %v1309 = vmul.f32 %v1254, %v1254
        %v1310 = vmin.f32 16.0, %v1309
        %v1311 = vmul.f32 %v1310, 2.1237322e-06
        %v1312 = vadd.f32 %v1311, 0.00028619796
        %v1313 = vmul.f32 %v1310, %v1312
        %v1314 = vadd.f32 %v1313, 0.0036580483
        %v1315 = vmul.f32 %v1310, %v1314
        %v1316 = vadd.f32 %v1315, 0.05243302
        %v1317 = vmul.f32 %v1310, %v1316
        %v1318 = vadd.f32 %v1317, 0.18741608
        %v1319 = vmul.f32 %v1310, %v1318
        %v1320 = vadd.f32 %v1319, 1.1283791
        %v1321 = vmul.f32 %v1254, %v1320
        %v1322 = vmul.f32 %v1310, 3.8918573e-05
        %v1323 = vadd.f32 %v1322, 0.001143296
        %v1324 = vmul.f32 %v1310, %v1323
        %v1325 = vadd.f32 %v1324, 0.014752088
        %v1326 = vmul.f32 %v1310, %v1325
        %v1327 = vadd.f32 %v1326, 0.112945676
        %v1328 = vmul.f32 %v1310, %v1327
        %v1329 = vadd.f32 %v1328, 0.4994258
        %v1330 = vmul.f32 %v1310, %v1329
        %v1331 = vadd.f32 %v1330, 1.0
        %v1332 = vrcp.pop %v1331
        %v1333 = vmul.f32 %v1331, %v1332
        %v1334 = vsub.f32 1.0, %v1333
        %v1335 = vmul.f32 %v1332, %v1334
        %v1336 = vadd.f32 %v1332, %v1335
        %vm1337 = vweird.f32 %v1331
        %vm1338 = vweird.f32 %v1332
        %vm1339 = vmor %vm1337, %vm1338
        %v1340 = vsel %vm1339, %v1332, %v1336
        %v1341 = vand.u32 2147483647, %v1331
        %vm1342 = vcmp.eq.f32.partialorder %v1341, 8.507059e+37
        %v1343 = vand.u32 %v1331, 2147483648
        %v1344 = vor.u32 1.1754944e-38, %v1343
        %v1345 = vsel %vm1342, %v1344, %v1340
        %v1346 = vmul.f32 %v1321, %v1345
        %v1347 = vmin.f32 %v1346, 1.0
        %v1348 = vmax.f32 %v1347, -1.0
        %v1349 = vmul.f32 %v1255, %v1255
        %v1350 = vmin.f32 16.0, %v1349
        %v1351 = vmul.f32 %v1350, 2.1237322e-06
        %v1352 = vadd.f32 %v1351, 0.00028619796
        %v1353 = vmul.f32 %v1350, %v1352
        %v1354 = vadd.f32 %v1353, 0.0036580483
        %v1355 = vmul.f32 %v1350, %v1354
        %v1356 = vadd.f32 %v1355, 0.05243302
        %v1357 = vmul.f32 %v1350, %v1356
        %v1358 = vadd.f32 %v1357, 0.18741608
        %v1359 = vmul.f32 %v1350, %v1358
        %v1360 = vadd.f32 %v1359, 1.1283791
        %v1361 = vmul.f32 %v1255, %v1360
        %v1362 = vmul.f32 %v1350, 3.8918573e-05
        %v1363 = vadd.f32 %v1362, 0.001143296
        %v1364 = vmul.f32 %v1350, %v1363
        %v1365 = vadd.f32 %v1364, 0.014752088
        %v1366 = vmul.f32 %v1350, %v1365
        %v1367 = vadd.f32 %v1366, 0.112945676
        %v1368 = vmul.f32 %v1350, %v1367
        %v1369 = vadd.f32 %v1368, 0.4994258
        %v1370 = vmul.f32 %v1350, %v1369
        %v1371 = vadd.f32 %v1370, 1.0
        %v1372 = vrcp.pop %v1371
        %v1373 = vmul.f32 %v1371, %v1372
        %v1374 = vsub.f32 1.0, %v1373
        %v1375 = vmul.f32 %v1372, %v1374
        %v1376 = vadd.f32 %v1372, %v1375
        %vm1377 = vweird.f32 %v1371
        %vm1378 = vweird.f32 %v1372
        %vm1379 = vmor %vm1377, %vm1378
        %v1380 = vsel %vm1379, %v1372, %v1376
        %v1381 = vand.u32 2147483647, %v1371
        %vm1382 = vcmp.eq.f32.partialorder %v1381, 8.507059e+37
        %v1383 = vand.u32 %v1371, 2147483648
        %v1384 = vor.u32 1.1754944e-38, %v1383
        %v1385 = vsel %vm1382, %v1384, %v1380
        %v1386 = vmul.f32 %v1361, %v1385
        %v1387 = vmin.f32 %v1386, 1.0
        %v1388 = vmax.f32 %v1387, -1.0
        %v1389 = vmul.f32 %v1256, %v1256
        %v1390 = vmin.f32 16.0, %v1389
        %v1391 = vmul.f32 %v1390, 2.1237322e-06
        %v1392 = vadd.f32 %v1391, 0.00028619796
        %v1393 = vmul.f32 %v1390, %v1392
        %v1394 = vadd.f32 %v1393, 0.0036580483
        %v1395 = vmul.f32 %v1390, %v1394
        %v1396 = vadd.f32 %v1395, 0.05243302
        %v1397 = vmul.f32 %v1390, %v1396
        %v1398 = vadd.f32 %v1397, 0.18741608
        %v1399 = vmul.f32 %v1390, %v1398
        %v1400 = vadd.f32 %v1399, 1.1283791
        %v1401 = vmul.f32 %v1256, %v1400
        %v1402 = vmul.f32 %v1390, 3.8918573e-05
        %v1403 = vadd.f32 %v1402, 0.001143296
        %v1404 = vmul.f32 %v1390, %v1403
        %v1405 = vadd.f32 %v1404, 0.014752088
        %v1406 = vmul.f32 %v1390, %v1405
        %v1407 = vadd.f32 %v1406, 0.112945676
        %v1408 = vmul.f32 %v1390, %v1407
        %v1409 = vadd.f32 %v1408, 0.4994258
        %v1410 = vmul.f32 %v1390, %v1409
        %v1411 = vadd.f32 %v1410, 1.0
        %v1412 = vrcp.pop %v1411
        %v1413 = vmul.f32 %v1411, %v1412
        %v1414 = vsub.f32 1.0, %v1413
        %v1415 = vmul.f32 %v1412, %v1414
        %v1416 = vadd.f32 %v1412, %v1415
        %vm1417 = vweird.f32 %v1411
        %vm1418 = vweird.f32 %v1412
        %vm1419 = vmor %vm1417, %vm1418
        %v1420 = vsel %vm1419, %v1412, %v1416
        %v1421 = vand.u32 2147483647, %v1411
        %vm1422 = vcmp.eq.f32.partialorder %v1421, 8.507059e+37
        %v1423 = vand.u32 %v1411, 2147483648
        %v1424 = vor.u32 1.1754944e-38, %v1423
        %v1425 = vsel %vm1422, %v1424, %v1420
        %v1426 = vmul.f32 %v1401, %v1425
        %v1427 = vmin.f32 %v1426, 1.0
        %v1428 = vmax.f32 %v1427, -1.0
        %v1429 = vmul.f32 %v1257, %v1257
        %v1430 = vmin.f32 16.0, %v1429
        %v1431 = vmul.f32 %v1430, 2.1237322e-06
        %v1432 = vadd.f32 %v1431, 0.00028619796
        %v1433 = vmul.f32 %v1430, %v1432
        %v1434 = vadd.f32 %v1433, 0.0036580483
        %v1435 = vmul.f32 %v1430, %v1434
        %v1436 = vadd.f32 %v1435, 0.05243302
        %v1437 = vmul.f32 %v1430, %v1436
        %v1438 = vadd.f32 %v1437, 0.18741608
        %v1439 = vmul.f32 %v1430, %v1438
        %v1440 = vadd.f32 %v1439, 1.1283791
        %v1441 = vmul.f32 %v1257, %v1440
        %v1442 = vmul.f32 %v1430, 3.8918573e-05
        %v1443 = vadd.f32 %v1442, 0.001143296
        %v1444 = vmul.f32 %v1430, %v1443
        %v1445 = vadd.f32 %v1444, 0.014752088
        %v1446 = vmul.f32 %v1430, %v1445
        %v1447 = vadd.f32 %v1446, 0.112945676
        %v1448 = vmul.f32 %v1430, %v1447
        %v1449 = vadd.f32 %v1448, 0.4994258
        %v1450 = vmul.f32 %v1430, %v1449
        %v1451 = vadd.f32 %v1450, 1.0
        %v1452 = vrcp.pop %v1451
        %v1453 = vmul.f32 %v1451, %v1452
        %v1454 = vsub.f32 1.0, %v1453
        %v1455 = vmul.f32 %v1452, %v1454
        %v1456 = vadd.f32 %v1452, %v1455
        %vm1457 = vweird.f32 %v1451
        %vm1458 = vweird.f32 %v1452
        %vm1459 = vmor %vm1457, %vm1458
        %v1460 = vsel %vm1459, %v1452, %v1456
        %v1461 = vand.u32 2147483647, %v1451
        %vm1462 = vcmp.eq.f32.partialorder %v1461, 8.507059e+37
        %v1463 = vand.u32 %v1451, 2147483648
        %v1464 = vor.u32 1.1754944e-38, %v1463
        %v1465 = vsel %vm1462, %v1464, %v1460
        %v1466 = vmul.f32 %v1441, %v1465
        %v1467 = vmin.f32 %v1466, 1.0
        %v1468 = vmax.f32 %v1467, -1.0
        %v1469 = vmul.f32 %v1258, %v1258
        %v1470 = vmin.f32 16.0, %v1469
        %v1471 = vmul.f32 %v1470, 2.1237322e-06
        %v1472 = vadd.f32 %v1471, 0.00028619796
        %v1473 = vmul.f32 %v1470, %v1472
        %v1474 = vadd.f32 %v1473, 0.0036580483
        %v1475 = vmul.f32 %v1470, %v1474
        %v1476 = vadd.f32 %v1475, 0.05243302
        %v1477 = vmul.f32 %v1470, %v1476
        %v1478 = vadd.f32 %v1477, 0.18741608
        %v1479 = vmul.f32 %v1470, %v1478
        %v1480 = vadd.f32 %v1479, 1.1283791
        %v1481 = vmul.f32 %v1258, %v1480
        %v1482 = vmul.f32 %v1470, 3.8918573e-05
        %v1483 = vadd.f32 %v1482, 0.001143296
        %v1484 = vmul.f32 %v1470, %v1483
        %v1485 = vadd.f32 %v1484, 0.014752088
        %v1486 = vmul.f32 %v1470, %v1485
        %v1487 = vadd.f32 %v1486, 0.112945676
        %v1488 = vmul.f32 %v1470, %v1487
        %v1489 = vadd.f32 %v1488, 0.4994258
        %v1490 = vmul.f32 %v1470, %v1489
        %v1491 = vadd.f32 %v1490, 1.0
        %v1492 = vrcp.pop %v1491
        %v1493 = vmul.f32 %v1491, %v1492
        %v1494 = vsub.f32 1.0, %v1493
        %v1495 = vmul.f32 %v1492, %v1494
        %v1496 = vadd.f32 %v1492, %v1495
        %vm1497 = vweird.f32 %v1491
        %vm1498 = vweird.f32 %v1492
        %vm1499 = vmor %vm1497, %vm1498
        %v1500 = vsel %vm1499, %v1492, %v1496
        %v1501 = vand.u32 2147483647, %v1491
        %vm1502 = vcmp.eq.f32.partialorder %v1501, 8.507059e+37
        %v1503 = vand.u32 %v1491, 2147483648
        %v1504 = vor.u32 1.1754944e-38, %v1503
        %v1505 = vsel %vm1502, %v1504, %v1500
        %v1506 = vmul.f32 %v1481, %v1505
        %v1507 = vmin.f32 %v1506, 1.0
        %v1508 = vmax.f32 %v1507, -1.0
        %v1509 = vmul.f32 %v1259, %v1259
        %v1510 = vmin.f32 16.0, %v1509
        %v1511 = vmul.f32 %v1510, 2.1237322e-06
        %v1512 = vadd.f32 %v1511, 0.00028619796
        %v1513 = vmul.f32 %v1510, %v1512
        %v1514 = vadd.f32 %v1513, 0.0036580483
        %v1515 = vmul.f32 %v1510, %v1514
        %v1516 = vadd.f32 %v1515, 0.05243302
        %v1517 = vmul.f32 %v1510, %v1516
        %v1518 = vadd.f32 %v1517, 0.18741608
        %v1519 = vmul.f32 %v1510, %v1518
        %v1520 = vadd.f32 %v1519, 1.1283791
        %v1521 = vmul.f32 %v1259, %v1520
        %v1522 = vmul.f32 %v1510, 3.8918573e-05
        %v1523 = vadd.f32 %v1522, 0.001143296
        %v1524 = vmul.f32 %v1510, %v1523
        %v1525 = vadd.f32 %v1524, 0.014752088
        %v1526 = vmul.f32 %v1510, %v1525
        %v1527 = vadd.f32 %v1526, 0.112945676
        %v1528 = vmul.f32 %v1510, %v1527
        %v1529 = vadd.f32 %v1528, 0.4994258
        %v1530 = vmul.f32 %v1510, %v1529
        %v1531 = vadd.f32 %v1530, 1.0
        %v1532 = vrcp.pop %v1531
        %v1533 = vmul.f32 %v1531, %v1532
        %v1534 = vsub.f32 1.0, %v1533
        %v1535 = vmul.f32 %v1532, %v1534
        %v1536 = vadd.f32 %v1532, %v1535
        %vm1537 = vweird.f32 %v1531
        %vm1538 = vweird.f32 %v1532
        %vm1539 = vmor %vm1537, %vm1538
        %v1540 = vsel %vm1539, %v1532, %v1536
        %v1541 = vand.u32 2147483647, %v1531
        %vm1542 = vcmp.eq.f32.partialorder %v1541, 8.507059e+37
        %v1543 = vand.u32 %v1531, 2147483648
        %v1544 = vor.u32 1.1754944e-38, %v1543
        %v1545 = vsel %vm1542, %v1544, %v1540
        %v1546 = vmul.f32 %v1521, %v1545
        %v1547 = vmin.f32 %v1546, 1.0
        %v1548 = vmax.f32 %v1547, -1.0
        %v1549 = vmul.f32 %v1260, %v1260
        %v1550 = vmin.f32 16.0, %v1549
        %v1551 = vmul.f32 %v1550, 2.1237322e-06
        %v1552 = vadd.f32 %v1551, 0.00028619796
        %v1553 = vmul.f32 %v1550, %v1552
        %v1554 = vadd.f32 %v1553, 0.0036580483
        %v1555 = vmul.f32 %v1550, %v1554
        %v1556 = vadd.f32 %v1555, 0.05243302
        %v1557 = vmul.f32 %v1550, %v1556
        %v1558 = vadd.f32 %v1557, 0.18741608
        %v1559 = vmul.f32 %v1550, %v1558
        %v1560 = vadd.f32 %v1559, 1.1283791
        %v1561 = vmul.f32 %v1260, %v1560
        %v1562 = vmul.f32 %v1550, 3.8918573e-05
        %v1563 = vadd.f32 %v1562, 0.001143296
        %v1564 = vmul.f32 %v1550, %v1563
        %v1565 = vadd.f32 %v1564, 0.014752088
        %v1566 = vmul.f32 %v1550, %v1565
        %v1567 = vadd.f32 %v1566, 0.112945676
        %v1568 = vmul.f32 %v1550, %v1567
        %v1569 = vadd.f32 %v1568, 0.4994258
        %v1570 = vmul.f32 %v1550, %v1569
        %v1571 = vadd.f32 %v1570, 1.0
        %v1572 = vrcp.pop %v1571
        %v1573 = vmul.f32 %v1571, %v1572
        %v1574 = vsub.f32 1.0, %v1573
        %v1575 = vmul.f32 %v1572, %v1574
        %v1576 = vadd.f32 %v1572, %v1575
        %vm1577 = vweird.f32 %v1571
        %vm1578 = vweird.f32 %v1572
        %vm1579 = vmor %vm1577, %vm1578
        %v1580 = vsel %vm1579, %v1572, %v1576
        %v1581 = vand.u32 2147483647, %v1571
        %vm1582 = vcmp.eq.f32.partialorder %v1581, 8.507059e+37
        %v1583 = vand.u32 %v1571, 2147483648
        %v1584 = vor.u32 1.1754944e-38, %v1583
        %v1585 = vsel %vm1582, %v1584, %v1580
        %v1586 = vmul.f32 %v1561, %v1585
        %v1587 = vmin.f32 %v1586, 1.0
        %v1588 = vmax.f32 %v1587, -1.0
        %v1589 = vmul.f32 %v1261, %v1261
        %v1590 = vmin.f32 16.0, %v1589
        %v1591 = vmul.f32 %v1590, 2.1237322e-06
        %v1592 = vadd.f32 %v1591, 0.00028619796
        %v1593 = vmul.f32 %v1590, %v1592
        %v1594 = vadd.f32 %v1593, 0.0036580483
        %v1595 = vmul.f32 %v1590, %v1594
        %v1596 = vadd.f32 %v1595, 0.05243302
        %v1597 = vmul.f32 %v1590, %v1596
        %v1598 = vadd.f32 %v1597, 0.18741608
        %v1599 = vmul.f32 %v1590, %v1598
        %v1600 = vadd.f32 %v1599, 1.1283791
        %v1601 = vmul.f32 %v1261, %v1600
        %v1602 = vmul.f32 %v1590, 3.8918573e-05
        %v1603 = vadd.f32 %v1602, 0.001143296
        %v1604 = vmul.f32 %v1590, %v1603
        %v1605 = vadd.f32 %v1604, 0.014752088
        %v1606 = vmul.f32 %v1590, %v1605
        %v1607 = vadd.f32 %v1606, 0.112945676
        %v1608 = vmul.f32 %v1590, %v1607
        %v1609 = vadd.f32 %v1608, 0.4994258
        %v1610 = vmul.f32 %v1590, %v1609
        %v1611 = vadd.f32 %v1610, 1.0
        %v1612 = vrcp.pop %v1611
        %v1613 = vmul.f32 %v1611, %v1612
        %v1614 = vsub.f32 1.0, %v1613
        %v1615 = vmul.f32 %v1612, %v1614
        %v1616 = vadd.f32 %v1612, %v1615
        %vm1617 = vweird.f32 %v1611
        %vm1618 = vweird.f32 %v1612
        %vm1619 = vmor %vm1617, %vm1618
        %v1620 = vsel %vm1619, %v1612, %v1616
        %v1621 = vand.u32 2147483647, %v1611
        %vm1622 = vcmp.eq.f32.partialorder %v1621, 8.507059e+37
        %v1623 = vand.u32 %v1611, 2147483648
        %v1624 = vor.u32 1.1754944e-38, %v1623
        %v1625 = vsel %vm1622, %v1624, %v1620
        %v1626 = vmul.f32 %v1601, %v1625
        %v1627 = vmin.f32 %v1626, 1.0
        %v1628 = vmax.f32 %v1627, -1.0
        %v1629 = vmul.f32 %v1262, %v1262
        %v1630 = vmin.f32 16.0, %v1629
        %v1631 = vmul.f32 %v1630, 2.1237322e-06
        %v1632 = vadd.f32 %v1631, 0.00028619796
        %v1633 = vmul.f32 %v1630, %v1632
        %v1634 = vadd.f32 %v1633, 0.0036580483
        %v1635 = vmul.f32 %v1630, %v1634
        %v1636 = vadd.f32 %v1635, 0.05243302
        %v1637 = vmul.f32 %v1630, %v1636
        %v1638 = vadd.f32 %v1637, 0.18741608
        %v1639 = vmul.f32 %v1630, %v1638
        %v1640 = vadd.f32 %v1639, 1.1283791
        %v1641 = vmul.f32 %v1262, %v1640
        %v1642 = vmul.f32 %v1630, 3.8918573e-05
        %v1643 = vadd.f32 %v1642, 0.001143296
        %v1644 = vmul.f32 %v1630, %v1643
        %v1645 = vadd.f32 %v1644, 0.014752088
        %v1646 = vmul.f32 %v1630, %v1645
        %v1647 = vadd.f32 %v1646, 0.112945676
        %v1648 = vmul.f32 %v1630, %v1647
        %v1649 = vadd.f32 %v1648, 0.4994258
        %v1650 = vmul.f32 %v1630, %v1649
        %v1651 = vadd.f32 %v1650, 1.0
        %v1652 = vrcp.pop %v1651
        %v1653 = vmul.f32 %v1651, %v1652
        %v1654 = vsub.f32 1.0, %v1653
        %v1655 = vmul.f32 %v1652, %v1654
        %v1656 = vadd.f32 %v1652, %v1655
        %vm1657 = vweird.f32 %v1651
        %vm1658 = vweird.f32 %v1652
        %vm1659 = vmor %vm1657, %vm1658
        %v1660 = vsel %vm1659, %v1652, %v1656
        %v1661 = vand.u32 2147483647, %v1651
        %vm1662 = vcmp.eq.f32.partialorder %v1661, 8.507059e+37
        %v1663 = vand.u32 %v1651, 2147483648
        %v1664 = vor.u32 1.1754944e-38, %v1663
        %v1665 = vsel %vm1662, %v1664, %v1660
        %v1666 = vmul.f32 %v1641, %v1665
        %v1667 = vmin.f32 %v1666, 1.0
        %v1668 = vmax.f32 %v1667, -1.0
        %v1669 = vmul.f32 %v1263, %v1263
        %v1670 = vmin.f32 16.0, %v1669
        %v1671 = vmul.f32 %v1670, 2.1237322e-06
        %v1672 = vadd.f32 %v1671, 0.00028619796
        %v1673 = vmul.f32 %v1670, %v1672
        %v1674 = vadd.f32 %v1673, 0.0036580483
        %v1675 = vmul.f32 %v1670, %v1674
        %v1676 = vadd.f32 %v1675, 0.05243302
        %v1677 = vmul.f32 %v1670, %v1676
        %v1678 = vadd.f32 %v1677, 0.18741608
        %v1679 = vmul.f32 %v1670, %v1678
        %v1680 = vadd.f32 %v1679, 1.1283791
        %v1681 = vmul.f32 %v1263, %v1680
        %v1682 = vmul.f32 %v1670, 3.8918573e-05
        %v1683 = vadd.f32 %v1682, 0.001143296
        %v1684 = vmul.f32 %v1670, %v1683
        %v1685 = vadd.f32 %v1684, 0.014752088
        %v1686 = vmul.f32 %v1670, %v1685
        %v1687 = vadd.f32 %v1686, 0.112945676
        %v1688 = vmul.f32 %v1670, %v1687
        %v1689 = vadd.f32 %v1688, 0.4994258
        %v1690 = vmul.f32 %v1670, %v1689
        %v1691 = vadd.f32 %v1690, 1.0
        %v1692 = vrcp.pop %v1691
        %v1693 = vmul.f32 %v1691, %v1692
        %v1694 = vsub.f32 1.0, %v1693
        %v1695 = vmul.f32 %v1692, %v1694
        %v1696 = vadd.f32 %v1692, %v1695
        %vm1697 = vweird.f32 %v1691
        %vm1698 = vweird.f32 %v1692
        %vm1699 = vmor %vm1697, %vm1698
        %v1700 = vsel %vm1699, %v1692, %v1696
        %v1701 = vand.u32 2147483647, %v1691
        %vm1702 = vcmp.eq.f32.partialorder %v1701, 8.507059e+37
        %v1703 = vand.u32 %v1691, 2147483648
        %v1704 = vor.u32 1.1754944e-38, %v1703
        %v1705 = vsel %vm1702, %v1704, %v1700
        %v1706 = vmul.f32 %v1681, %v1705
        %v1707 = vmin.f32 %v1706, 1.0
        %v1708 = vmax.f32 %v1707, -1.0
        %v1709 = vmul.f32 %v1264, %v1264
        %v1710 = vmin.f32 16.0, %v1709
        %v1711 = vmul.f32 %v1710, 2.1237322e-06
        %v1712 = vadd.f32 %v1711, 0.00028619796
        %v1713 = vmul.f32 %v1710, %v1712
        %v1714 = vadd.f32 %v1713, 0.0036580483
        %v1715 = vmul.f32 %v1710, %v1714
        %v1716 = vadd.f32 %v1715, 0.05243302
        %v1717 = vmul.f32 %v1710, %v1716
        %v1718 = vadd.f32 %v1717, 0.18741608
        %v1719 = vmul.f32 %v1710, %v1718
        %v1720 = vadd.f32 %v1719, 1.1283791
        %v1721 = vmul.f32 %v1264, %v1720
        %v1722 = vmul.f32 %v1710, 3.8918573e-05
        %v1723 = vadd.f32 %v1722, 0.001143296
        %v1724 = vmul.f32 %v1710, %v1723
        %v1725 = vadd.f32 %v1724, 0.014752088
        %v1726 = vmul.f32 %v1710, %v1725
        %v1727 = vadd.f32 %v1726, 0.112945676
        %v1728 = vmul.f32 %v1710, %v1727
        %v1729 = vadd.f32 %v1728, 0.4994258
        %v1730 = vmul.f32 %v1710, %v1729
        %v1731 = vadd.f32 %v1730, 1.0
        %v1732 = vrcp.pop %v1731
        %v1733 = vmul.f32 %v1731, %v1732
        %v1734 = vsub.f32 1.0, %v1733
        %v1735 = vmul.f32 %v1732, %v1734
        %v1736 = vadd.f32 %v1732, %v1735
        %vm1737 = vweird.f32 %v1731
        %vm1738 = vweird.f32 %v1732
        %vm1739 = vmor %vm1737, %vm1738
        %v1740 = vsel %vm1739, %v1732, %v1736
        %v1741 = vand.u32 2147483647, %v1731
        %vm1742 = vcmp.eq.f32.partialorder %v1741, 8.507059e+37
        %v1743 = vand.u32 %v1731, 2147483648
        %v1744 = vor.u32 1.1754944e-38, %v1743
        %v1745 = vsel %vm1742, %v1744, %v1740
        %v1746 = vmul.f32 %v1721, %v1745
        %v1747 = vmin.f32 %v1746, 1.0
        %v1748 = vmax.f32 %v1747, -1.0
        %v1749 = vmul.f32 %v1265, %v1265
        %v1750 = vmin.f32 16.0, %v1749
        %v1751 = vmul.f32 %v1750, 2.1237322e-06
        %v1752 = vadd.f32 %v1751, 0.00028619796
        %v1753 = vmul.f32 %v1750, %v1752
        %v1754 = vadd.f32 %v1753, 0.0036580483
        %v1755 = vmul.f32 %v1750, %v1754
        %v1756 = vadd.f32 %v1755, 0.05243302
        %v1757 = vmul.f32 %v1750, %v1756
        %v1758 = vadd.f32 %v1757, 0.18741608
        %v1759 = vmul.f32 %v1750, %v1758
        %v1760 = vadd.f32 %v1759, 1.1283791
        %v1761 = vmul.f32 %v1265, %v1760
        %v1762 = vmul.f32 %v1750, 3.8918573e-05
        %v1763 = vadd.f32 %v1762, 0.001143296
        %v1764 = vmul.f32 %v1750, %v1763
        %v1765 = vadd.f32 %v1764, 0.014752088
        %v1766 = vmul.f32 %v1750, %v1765
        %v1767 = vadd.f32 %v1766, 0.112945676
        %v1768 = vmul.f32 %v1750, %v1767
        %v1769 = vadd.f32 %v1768, 0.4994258
        %v1770 = vmul.f32 %v1750, %v1769
        %v1771 = vadd.f32 %v1770, 1.0
        %v1772 = vrcp.pop %v1771
        %v1773 = vmul.f32 %v1771, %v1772
        %v1774 = vsub.f32 1.0, %v1773
        %v1775 = vmul.f32 %v1772, %v1774
        %v1776 = vadd.f32 %v1772, %v1775
        %vm1777 = vweird.f32 %v1771
        %vm1778 = vweird.f32 %v1772
        %vm1779 = vmor %vm1777, %vm1778
        %v1780 = vsel %vm1779, %v1772, %v1776
        %v1781 = vand.u32 2147483647, %v1771
        %vm1782 = vcmp.eq.f32.partialorder %v1781, 8.507059e+37
        %v1783 = vand.u32 %v1771, 2147483648
        %v1784 = vor.u32 1.1754944e-38, %v1783
        %v1785 = vsel %vm1782, %v1784, %v1780
        %v1786 = vmul.f32 %v1761, %v1785
        %v1787 = vmin.f32 %v1786, 1.0
        %v1788 = vmax.f32 %v1787, -1.0
        %v1789 = vmul.f32 %v1266, %v1266
        %v1790 = vmin.f32 16.0, %v1789
        %v1791 = vmul.f32 %v1790, 2.1237322e-06
        %v1792 = vadd.f32 %v1791, 0.00028619796
        %v1793 = vmul.f32 %v1790, %v1792
        %v1794 = vadd.f32 %v1793, 0.0036580483
        %v1795 = vmul.f32 %v1790, %v1794
        %v1796 = vadd.f32 %v1795, 0.05243302
        %v1797 = vmul.f32 %v1790, %v1796
        %v1798 = vadd.f32 %v1797, 0.18741608
        %v1799 = vmul.f32 %v1790, %v1798
        %v1800 = vadd.f32 %v1799, 1.1283791
        %v1801 = vmul.f32 %v1266, %v1800
        %v1802 = vmul.f32 %v1790, 3.8918573e-05
        %v1803 = vadd.f32 %v1802, 0.001143296
        %v1804 = vmul.f32 %v1790, %v1803
        %v1805 = vadd.f32 %v1804, 0.014752088
        %v1806 = vmul.f32 %v1790, %v1805
        %v1807 = vadd.f32 %v1806, 0.112945676
        %v1808 = vmul.f32 %v1790, %v1807
        %v1809 = vadd.f32 %v1808, 0.4994258
        %v1810 = vmul.f32 %v1790, %v1809
        %v1811 = vadd.f32 %v1810, 1.0
        %v1812 = vrcp.pop %v1811
        %v1813 = vmul.f32 %v1811, %v1812
        %v1814 = vsub.f32 1.0, %v1813
        %v1815 = vmul.f32 %v1812, %v1814
        %v1816 = vadd.f32 %v1812, %v1815
        %vm1817 = vweird.f32 %v1811
        %vm1818 = vweird.f32 %v1812
        %vm1819 = vmor %vm1817, %vm1818
        %v1820 = vsel %vm1819, %v1812, %v1816
        %v1821 = vand.u32 2147483647, %v1811
        %vm1822 = vcmp.eq.f32.partialorder %v1821, 8.507059e+37
        %v1823 = vand.u32 %v1811, 2147483648
        %v1824 = vor.u32 1.1754944e-38, %v1823
        %v1825 = vsel %vm1822, %v1824, %v1820
        %v1826 = vmul.f32 %v1801, %v1825
        %v1827 = vmin.f32 %v1826, 1.0
        %v1828 = vmax.f32 %v1827, -1.0
        %v1829 = vmul.f32 %v1267, %v1267
        %v1830 = vmin.f32 16.0, %v1829
        %v1831 = vmul.f32 %v1830, 2.1237322e-06
        %v1832 = vadd.f32 %v1831, 0.00028619796
        %v1833 = vmul.f32 %v1830, %v1832
        %v1834 = vadd.f32 %v1833, 0.0036580483
        %v1835 = vmul.f32 %v1830, %v1834
        %v1836 = vadd.f32 %v1835, 0.05243302
        %v1837 = vmul.f32 %v1830, %v1836
        %v1838 = vadd.f32 %v1837, 0.18741608
        %v1839 = vmul.f32 %v1830, %v1838
        %v1840 = vadd.f32 %v1839, 1.1283791
        %v1841 = vmul.f32 %v1267, %v1840
        %v1842 = vmul.f32 %v1830, 3.8918573e-05
        %v1843 = vadd.f32 %v1842, 0.001143296
        %v1844 = vmul.f32 %v1830, %v1843
        %v1845 = vadd.f32 %v1844, 0.014752088
        %v1846 = vmul.f32 %v1830, %v1845
        %v1847 = vadd.f32 %v1846, 0.112945676
        %v1848 = vmul.f32 %v1830, %v1847
        %v1849 = vadd.f32 %v1848, 0.4994258
        %v1850 = vmul.f32 %v1830, %v1849
        %v1851 = vadd.f32 %v1850, 1.0
        %v1852 = vrcp.pop %v1851
        %v1853 = vmul.f32 %v1851, %v1852
        %v1854 = vsub.f32 1.0, %v1853
        %v1855 = vmul.f32 %v1852, %v1854
        %v1856 = vadd.f32 %v1852, %v1855
        %vm1857 = vweird.f32 %v1851
        %vm1858 = vweird.f32 %v1852
        %vm1859 = vmor %vm1857, %vm1858
        %v1860 = vsel %vm1859, %v1852, %v1856
        %v1861 = vand.u32 2147483647, %v1851
        %vm1862 = vcmp.eq.f32.partialorder %v1861, 8.507059e+37
        %v1863 = vand.u32 %v1851, 2147483648
        %v1864 = vor.u32 1.1754944e-38, %v1863
        %v1865 = vsel %vm1862, %v1864, %v1860
        %v1866 = vmul.f32 %v1841, %v1865
        %v1867 = vmin.f32 %v1866, 1.0
        %v1868 = vmax.f32 %v1867, -1.0
        %v1869 = vmul.f32 %v1268, %v1268
        %v1870 = vmin.f32 16.0, %v1869
        %v1871 = vmul.f32 %v1870, 2.1237322e-06
        %v1872 = vadd.f32 %v1871, 0.00028619796
        %v1873 = vmul.f32 %v1870, %v1872
        %v1874 = vadd.f32 %v1873, 0.0036580483
        %v1875 = vmul.f32 %v1870, %v1874
        %v1876 = vadd.f32 %v1875, 0.05243302
        %v1877 = vmul.f32 %v1870, %v1876
        %v1878 = vadd.f32 %v1877, 0.18741608
        %v1879 = vmul.f32 %v1870, %v1878
        %v1880 = vadd.f32 %v1879, 1.1283791
        %v1881 = vmul.f32 %v1268, %v1880
        %v1882 = vmul.f32 %v1870, 3.8918573e-05
        %v1883 = vadd.f32 %v1882, 0.001143296
        %v1884 = vmul.f32 %v1870, %v1883
        %v1885 = vadd.f32 %v1884, 0.014752088
        %v1886 = vmul.f32 %v1870, %v1885
        %v1887 = vadd.f32 %v1886, 0.112945676
        %v1888 = vmul.f32 %v1870, %v1887
        %v1889 = vadd.f32 %v1888, 0.4994258
        %v1890 = vmul.f32 %v1870, %v1889
        %v1891 = vadd.f32 %v1890, 1.0
        %v1892 = vrcp.pop %v1891
        %v1893 = vmul.f32 %v1891, %v1892
        %v1894 = vsub.f32 1.0, %v1893
        %v1895 = vmul.f32 %v1892, %v1894
        %v1896 = vadd.f32 %v1892, %v1895
        %vm1897 = vweird.f32 %v1891
        %vm1898 = vweird.f32 %v1892
        %vm1899 = vmor %vm1897, %vm1898
        %v1900 = vsel %vm1899, %v1892, %v1896
        %v1901 = vand.u32 2147483647, %v1891
        %vm1902 = vcmp.eq.f32.partialorder %v1901, 8.507059e+37
        %v1903 = vand.u32 %v1891, 2147483648
        %v1904 = vor.u32 1.1754944e-38, %v1903
        %v1905 = vsel %vm1902, %v1904, %v1900
        %v1906 = vmul.f32 %v1881, %v1905
        %v1907 = vmin.f32 %v1906, 1.0
        %v1908 = vmax.f32 %v1907, -1.0
        %v1909 = vadd.f32 %v1308, 1.0
        %v1910 = vadd.f32 %v1348, 1.0
        %v1911 = vadd.f32 %v1388, 1.0
        %v1912 = vadd.f32 %v1428, 1.0
        %v1913 = vadd.f32 %v1468, 1.0
        %v1914 = vadd.f32 %v1508, 1.0
        %v1915 = vadd.f32 %v1548, 1.0
        %v1916 = vadd.f32 %v1588, 1.0
        %v1917 = vadd.f32 %v1628, 1.0
        %v1918 = vadd.f32 %v1668, 1.0
        %v1919 = vadd.f32 %v1708, 1.0
        %v1920 = vadd.f32 %v1748, 1.0
        %v1921 = vadd.f32 %v1788, 1.0
        %v1922 = vadd.f32 %v1828, 1.0
        %v1923 = vadd.f32 %v1868, 1.0
        %v1924 = vadd.f32 %v1908, 1.0
        %v1925 = vmul.f32 %v1237, %v1909
        %v1926 = vmul.f32 %v1238, %v1910
        %v1927 = vmul.f32 %v1239, %v1911
        %v1928 = vmul.f32 %v1240, %v1912
        %v1929 = vmul.f32 %v1241, %v1913
        %v1930 = vmul.f32 %v1242, %v1914
        %v1931 = vmul.f32 %v1243, %v1915
        %v1932 = vmul.f32 %v1244, %v1916
        %v1933 = vmul.f32 %v1245, %v1917
        %v1934 = vmul.f32 %v1246, %v1918
        %v1935 = vmul.f32 %v1247, %v1919
        %v1936 = vmul.f32 %v1248, %v1920
        %v1937 = vmul.f32 %v1249, %v1921
        %v1938 = vmul.f32 %v1250, %v1922
        %v1939 = vmul.f32 %v1251, %v1923
        %v1940 = vmul.f32 %v1252, %v1924
        %v1941 = vld [vmem:[#allocation11] sm:$0xf]
        %v1942 = vld [vmem:[#allocation11 + $0x4] sm:$0xf]
        %v1943 = vld [vmem:[#allocation11 + $0x8] sm:$0xf]
        %v1944 = vld [vmem:[#allocation11 + $0xc] sm:$0xf]
        %v1945 = vld [vmem:[#allocation11 + $0x10] sm:$0xf]
        %v1946 = vld [vmem:[#allocation11 + $0x14] sm:$0xf]
        %v1947 = vld [vmem:[#allocation11 + $0x18] sm:$0xf]
        %v1948 = vld [vmem:[#allocation11 + $0x1c] sm:$0xf]
        %v1949 = vld [vmem:[#allocation11 + $0x20] sm:$0xf]
        %v1950 = vld [vmem:[#allocation11 + $0x24] sm:$0xf]
        %v1951 = vld [vmem:[#allocation11 + $0x28] sm:$0xf]
        %v1952 = vld [vmem:[#allocation11 + $0x2c] sm:$0xf]
        %v1953 = vld [vmem:[#allocation11 + $0x30] sm:$0xf]
        %v1954 = vld [vmem:[#allocation11 + $0x34] sm:$0xf]
        %v1955 = vld [vmem:[#allocation11 + $0x38] sm:$0xf]
        %v1956 = vld [vmem:[#allocation11 + $0x3c] sm:$0xf]
        %v1957 = vld [vmem:[#allocation11 + $0x40] sm:$0xf]
        %v1958 = vld [vmem:[#allocation11 + $0x44] sm:$0xf]
        %v1959 = vld [vmem:[#allocation11 + $0x48] sm:$0xf]
        %v1960 = vld [vmem:[#allocation11 + $0x4c] sm:$0xf]
        %v1961 = vld [vmem:[#allocation11 + $0x50] sm:$0xf]
        %v1962 = vld [vmem:[#allocation11 + $0x54] sm:$0xf]
        %v1963 = vld [vmem:[#allocation11 + $0x58] sm:$0xf]
        %v1964 = vld [vmem:[#allocation11 + $0x5c] sm:$0xf]
        %v1965 = vld [vmem:[#allocation11 + $0x60] sm:$0xf]
        %v1966 = vld [vmem:[#allocation11 + $0x64] sm:$0xf]
        %v1967 = vld [vmem:[#allocation11 + $0x68] sm:$0xf]
        %v1968 = vld [vmem:[#allocation11 + $0x6c] sm:$0xf]
        %v1969 = vld [vmem:[#allocation11 + $0x70] sm:$0xf]
        %v1970 = vld [vmem:[#allocation11 + $0x74] sm:$0xf]
        %v1971 = vld [vmem:[#allocation11 + $0x78] sm:$0xf]
        %v1972 = vld [vmem:[#allocation11 + $0x7c] sm:$0xf]
        %v1973 = vpack.c.bf16 %v1927, %v1925
        %v1974 = vpack.c.bf16 %v1928, %v1926
        %v1975 = vpack.c.bf16 %v1931, %v1929
        %v1976 = vpack.c.bf16 %v1932, %v1930
        %v1977 = vpack.c.bf16 %v1935, %v1933
        %v1978 = vpack.c.bf16 %v1936, %v1934
        %v1979 = vpack.c.bf16 %v1939, %v1937
        %v1980 = vpack.c.bf16 %v1940, %v1938
        %v1981 = vld [vmem:[%s6] sm:$0x1]
        %v1983 = vperm.slane %v1981, 0
        %v2017 = vunpack.c.l.b16 %v1941
        %v2018 = vunpack.c.l.b16 %v1942
        %v2019 = vunpack.c.l.b16 %v1943
        %v2020 = vunpack.c.l.b16 %v1944
        %v2021 = vunpack.c.l.b16 %v1945
        %v2022 = vunpack.c.l.b16 %v1946
        %v2023 = vunpack.c.l.b16 %v1947
        %v2024 = vunpack.c.l.b16 %v1948
        %v2025 = vunpack.c.l.b16 %v1949
        %v2026 = vunpack.c.l.b16 %v1950
        %v2027 = vunpack.c.l.b16 %v1951
        %v2028 = vunpack.c.l.b16 %v1952
        %v2029 = vunpack.c.l.b16 %v1953
        %v2030 = vunpack.c.l.b16 %v1954
        %v2031 = vunpack.c.l.b16 %v1955
        %v2032 = vunpack.c.l.b16 %v1956
        %v2033 = vunpack.c.l.b16 %v1957
        %v2034 = vunpack.c.l.b16 %v1958
        %v2035 = vunpack.c.l.b16 %v1959
        %v2036 = vunpack.c.l.b16 %v1960
        %v2037 = vunpack.c.l.b16 %v1961
        %v2038 = vunpack.c.l.b16 %v1962
        %v2039 = vunpack.c.l.b16 %v1963
        %v2040 = vunpack.c.l.b16 %v1964
        %v2041 = vunpack.c.l.b16 %v1965
        %v2042 = vunpack.c.l.b16 %v1966
        %v2043 = vunpack.c.l.b16 %v1967
        %v2044 = vunpack.c.l.b16 %v1968
        %v2045 = vunpack.c.l.b16 %v1969
        %v2046 = vunpack.c.l.b16 %v1970
        %v2047 = vunpack.c.l.b16 %v1971
        %v2048 = vunpack.c.l.b16 %v1972
        %v2049 = vpack.c.b16 %v2018, %v2017
        %v2050 = vpack.c.b16 %v2020, %v2019
        %v2051 = vpack.c.b16 %v2022, %v2021
        %v2052 = vpack.c.b16 %v2024, %v2023
        %v2053 = vpack.c.b16 %v2026, %v2025
        %v2054 = vpack.c.b16 %v2028, %v2027
        %v2055 = vpack.c.b16 %v2030, %v2029
        %v2056 = vpack.c.b16 %v2032, %v2031
        %v2057 = vpack.c.b16 %v2034, %v2033
        %v2058 = vpack.c.b16 %v2036, %v2035
        %v2059 = vpack.c.b16 %v2038, %v2037
        %v2060 = vpack.c.b16 %v2040, %v2039
        %v2061 = vpack.c.b16 %v2042, %v2041
        %v2062 = vpack.c.b16 %v2044, %v2043
        %v2063 = vpack.c.b16 %v2046, %v2045
        %v2064 = vpack.c.b16 %v2048, %v2047
        %2081 = vmatpush.bf16.msra.mxu0 %v2056
        %2082 = vmatpush.bf16.msra.mxu0 %v2055
        %2083 = vmatpush.bf16.msra.mxu0 %v2054
        %2084 = vmatpush.bf16.msra.mxu0 %v2053
        %2085 = vmatpush.bf16.msra.mxu0 %v2052
        %2086 = vmatpush.bf16.msra.mxu0 %v2051
        %2087 = vmatpush.bf16.msra.mxu0 %v2050
        %2088 = vmatpush.bf16.msra.mxu0 %v2049
        %2089 = vmatmul.bf16.gmra.mxu0 %v1973
        %v2090 = vpop.f32.mrf.mxu0
        %v2091 = vadd.f32 %v1983, %v2090
        %v2092 = vpop.f32.mrf.mxu0
        %v2093 = vadd.f32 %v1983, %v2092
        %2094 = vmatmul.bf16.gmra.mxu0 %v1975
        %v2095 = vpop.f32.mrf.mxu0
        %v2096 = vadd.f32 %v1983, %v2095
        %v2097 = vpop.f32.mrf.mxu0
        %v2098 = vadd.f32 %v1983, %v2097
        %2099 = vmatmul.bf16.gmra.mxu0 %v1977
        %v2100 = vpop.f32.mrf.mxu0
        %v2101 = vadd.f32 %v1983, %v2100
        %v2102 = vpop.f32.mrf.mxu0
        %v2103 = vadd.f32 %v1983, %v2102
        %2104 = vmatmul.bf16.gmra.mxu0 %v1979
        %v2105 = vpop.f32.mrf.mxu0
        %v2106 = vadd.f32 %v1983, %v2105
        %v2107 = vpop.f32.mrf.mxu0
        %v2108 = vadd.f32 %v1983, %v2107
        %2109 = vdwg.mxu0
        %2110 = vmatpush.bf16.msra.mxu0 %v2064
        %2111 = vmatpush.bf16.msra.mxu0 %v2063
        %2112 = vmatpush.bf16.msra.mxu0 %v2062
        %2113 = vmatpush.bf16.msra.mxu0 %v2061
        %2114 = vmatpush.bf16.msra.mxu0 %v2060
        %2115 = vmatpush.bf16.msra.mxu0 %v2059
        %2116 = vmatpush.bf16.msra.mxu0 %v2058
        %2117 = vmatpush.bf16.msra.mxu0 %v2057
        %2118 = vmatmul.bf16.gmra.mxu0 %v1974
        %v2119 = vpop.f32.mrf.mxu0
        %v2120 = vadd.f32 %v2091, %v2119
        %v2121 = vpop.f32.mrf.mxu0
        %v2122 = vadd.f32 %v2093, %v2121
        %2123 = vmatmul.bf16.gmra.mxu0 %v1976
        %v2124 = vpop.f32.mrf.mxu0
        %v2125 = vadd.f32 %v2096, %v2124
        %v2126 = vpop.f32.mrf.mxu0
        %v2127 = vadd.f32 %v2098, %v2126
        %2128 = vmatmul.bf16.gmra.mxu0 %v1978
        %v2129 = vpop.f32.mrf.mxu0
        %v2130 = vadd.f32 %v2101, %v2129
        %v2131 = vpop.f32.mrf.mxu0
        %v2132 = vadd.f32 %v2103, %v2131
        %2133 = vmatmul.bf16.gmra.mxu0 %v1980
        %v2134 = vpop.f32.mrf.mxu0
        %v2135 = vadd.f32 %v2106, %v2134
        %v2136 = vpop.f32.mrf.mxu0
        %v2137 = vadd.f32 %v2108, %v2136
        %2138 = vdwg.mxu0
        %2139 = vst [vmem:[%s376] sm:$0xff] %v2120
        %2140 = vst [vmem:[%s376 + $0x8] sm:$0xff] %v2122
        %2141 = vst [vmem:[%s376 + $0x10] sm:$0xff] %v2125
        %2142 = vst [vmem:[%s376 + $0x18] sm:$0xff] %v2127
        %2143 = vst [vmem:[%s376 + $0x20] sm:$0xff] %v2130
        %2144 = vst [vmem:[%s376 + $0x28] sm:$0xff] %v2132
        %2145 = vst [vmem:[%s376 + $0x30] sm:$0xff] %v2135
        %2146 = vst [vmem:[%s376 + $0x38] sm:$0xff] %v2137
        %s2147 = sand.u32 %s200, 1
        %s2148 = scalar_lea.sflag [#allocation5], %s2147
        %s2149 = sand.u32 %s200, 1
        %s2150 = smul.addr %s2149, 64
        %s2151 = scalar_lea.vmem [#allocation12], %s2150
        // Predicated region
        $region77: #{tpu_custom_call.1} parent=47 // pred_check
          %p2152 = pneg %p210
        $region78: #{tpu_custom_call.1} parent=47 // pred_check_branch
          %2154 = sbr.rel (%p2152) target = $region80
        $region79: #{tpu_custom_call.1} parent=47 // pred_region
          %s2155 = smul.u32 8, %s31
          %2157 = vsyncadd %s2148, 0
          %s2158 = smul.addr %s30, 32
          %s2159 = sadd.s32 %s2155, %s2158
          %s2160 = smul.addr %s2159, 8
          %s2161 = scalar_lea.hbm %s7, %s2160
          %s2162 = sshll.u32 %s2151, 4
          %s2163 = int_to_ptr.vmem [resolvable:$true] %s2162
          %s2164 = sshll.u32 %s2161, 4
          %s2165 = int_to_ptr.hbm [resolvable:$true] %s2164
          %2170 = dma.vmem_to_hbm [thread:$0]  %s2163, 1024, %s2165, %s2148, 128, 128, 8
        $region80: #{tpu_custom_call.1} parent=47 // pred_fallthru
          _
      $region48: #{tpu_custom_call.1} parent=5 // pred_fallthru
        _
      %p2171 = scmp.le.s32.totalorder 2, %s21
      // Predicated region
      $region81: #{tpu_custom_call.1} parent=5 // pred_check
        %p2172 = pneg %p2171
      $region82: #{tpu_custom_call.1} parent=5 // pred_check_branch
        %2174 = sbr.rel (%p2172) target = $region84
      $region83: #{tpu_custom_call.1} parent=5 // pred_region
        %s2175 = ssub.s32 %s21, 2
        // Predicated region
        $region85: #{tpu_custom_call.1} parent=83 // pred_check
          %p2176 = pneg %p216
        $region86: #{tpu_custom_call.1} parent=83 // pred_check_branch
          %2178 = sbr.rel (%p2176) target = $region88
        $region87: #{tpu_custom_call.1} parent=83 // pred_region
          %s2179 = sand.u32 %s201, 1
          %s2180 = scalar_lea.sflag [#allocation5], %s2179
          %s2181 = sand.u32 %s201, 1
          %s2182 = smul.addr %s2181, 64
          %s2183 = scalar_lea.vmem [#allocation12], %s2182
          %2185 = dma.done %s2180, 1024
        $region88: #{tpu_custom_call.1} parent=83 // pred_fallthru
          _
      $region84: #{tpu_custom_call.1} parent=5 // pred_fallthru
        _
    $region6: #{tpu_custom_call.1} parent=1 // loop_footer
      %s25 = sadd.s32 1, %s21
    $region7: #{tpu_custom_call.1} parent=1 // loop_footer_branch
      %20 = sbr.rel target = $region3
    $region8: #{tpu_custom_call.1} parent=1 // loop_exit
      _
    %2186 = vsyncpa [#allocation4], 1
    %s2187 = scalar_lea.sflag [#allocation4], 1
    %2188 = vsyncpa %s2187, 1
    %2189 = vsyncpa [#allocation7], 1
    %2190 = vsyncpa [#allocation10], 1
    %2191 = vsyncpa [#allocation5], 1
    %s2192 = scalar_lea.sflag [#allocation5], 1
    %2193 = vsyncpa %s2192, 1

// kernel: tpu_custom_call.1
$region0: #{tpu_custom_call.1}
  #allocation0 [shape = 'u32[]', space=smem, size = 0x4, offset = 0x4, fixed_abs, tag = 'smem constant byte address 0x4 - core index']
  #allocation1 [shape = 'u32[72,128]{1,0:T(1,128)}', space=vmem, size = 0x9000, scoped, tag = 'internal scratch']
  #allocation2 [shape = 'f32[128,256]{1,0:T(8,128)}', space=vmem, size = 0x20000, scoped, tag = 'scratch operand']
  %s0 = inlined_call_operand.hbm [shape: f32[2,256,128], index: 0, kind: input, shape index: {}]
  %s1 = inlined_call_operand.hbm [shape: bf16[128,256], index: 1, kind: input, shape index: {}]
  %s2 = inlined_call_operand.hbm [shape: f32[1,256], index: 2, kind: input, shape index: {}]
  %s3 = inlined_call_operand.hbm [shape: f32[9,256], index: 3, kind: input, shape index: {}]
  %s4 = inlined_call_operand.vmem [shape: f32[1,256], index: 4, kind: input, shape index: {}]
  %s5 = inlined_call_operand.hbm [shape: bf16[256,128], index: 5, kind: input, shape index: {}]
  %s6 = inlined_call_operand.vmem [shape: f32[1,128], index: 6, kind: input, shape index: {}]
  %s7 = inlined_call_operand.hbm [shape: f32[2,256,128], index: 7, kind: output, shape index: {}]
  %s8 = sld [smem:[#allocation0]]
  $region89: #{tpu_custom_call.1} parent=0
    _
  %s10 = ssub.s32 1, %s8
  %s11 = scalar_select 0, %s10, %s8
  $region1: #{tpu_custom_call.1} parent=0
    #allocation3 [shape = 'u8[262144]{0}', space=vmem, size = 0x40000, scoped, tag = 'input window, operand 0']
    #allocation4 [shape = 's32[2]{0}', space=sflag, size = 0x8, scoped, tag = 'scoped memory for tpu_custom_call.1']
    #allocation5 [shape = 's32[2]{0}', space=sflag, size = 0x8, scoped, tag = 'scoped memory for tpu_custom_call.1']
    #allocation6 [shape = 'u8[65536]{0}', space=vmem, size = 0x10000, scoped, tag = 'input window, operand 1, single buffered']
    #allocation7 [shape = 's32[1]{0}', space=sflag, size = 0x4, scoped, tag = 'scoped memory for tpu_custom_call.1']
    #allocation8 [shape = 'u8[1024]{0}', space=vmem, size = 0x400, scoped, tag = 'input window, operand 2, single buffered']
    #allocation9 [shape = 'u8[16384]{0}', space=vmem, size = 0x4000, scoped, tag = 'input window, operand 3, single buffered']
    #allocation10 [shape = 's32[1]{0}', space=sflag, size = 0x4, scoped, tag = 'scoped memory for tpu_custom_call.1']
    #allocation11 [shape = 'u8[65536]{0}', space=vmem, size = 0x10000, scoped, tag = 'input window, operand 5, single buffered']
    #allocation12 [shape = 'u8[65536]{0}', space=vmem, size = 0x10000, scoped, tag = 'output window, operand 0']
    %12 = vsyncpa [#allocation4], 0
    %s13 = scalar_lea.sflag [#allocation4], 1
    %14 = vsyncpa %s13, 0
    %15 = vsyncpa [#allocation7], 0
    %16 = vsyncpa [#allocation10], 0
    %17 = vsyncpa [#allocation5], 0
    %s18 = scalar_lea.sflag [#allocation5], 1
    %19 = vsyncpa %s18, 0
    loop: start=0, step=1, limit=10
    $region2: #{tpu_custom_call.1} parent=1 // loop_pre_header
      _
    $region3: #{tpu_custom_call.1} parent=1 // loop_header
      %s21 = sphi 0, %s25
      %p22 = scmp.ge.s32.totalorder %s21, 10
      %s28 = sphi 0, %s40
      %s29 = sphi 0, %s36
      %s30 = sphi 0, %s28
      %s31 = sphi 0, %s29
      %s32 = sphi 0, %s30
      %s33 = sphi 0, %s31
      %s43 = sphi 0, %s45
      %s46 = sphi 0, %s43
      %s47 = sphi 0, %s46
      %s63 = sphi 0, %s47
      %s67 = sphi 0, %s67
      %s69 = sphi 0, %s67
      %s70 = sphi 0, %s69
      %s84 = sphi 0, %s70
      %s88 = sphi 0, %s88
      %s90 = sphi 0, %s88
      %s91 = sphi 0, %s90
      %s105 = sphi 0, %s91
      %s109 = sphi 0, %s109
      %s111 = sphi 0, %s109
      %s112 = sphi 0, %s111
      %s126 = sphi 0, %s112
      %s130 = sphi 0, %s130
      %s132 = sphi 0, %s130
      %s133 = sphi 0, %s132
      %s147 = sphi 0, %s133
      %s151 = sphi 0, %s151
      %s153 = sphi 0, %s151
      %s154 = sphi 0, %s153
      %s168 = sphi 0, %s154
      %s172 = sphi 0, %s172
      %s174 = sphi 0, %s172
      %s175 = sphi 0, %s174
      %s189 = sphi 0, %s175
      %s197 = sphi 0, %s199
      %s200 = sphi 0, %s197
      %s201 = sphi 0, %s200
      %s217 = sphi 0, %s201
    $region4: #{tpu_custom_call.1} parent=1 // loop_header_branch
      %24 = sbr.rel (%p22) target = $region8
    $region5: #{tpu_custom_call.1} parent=1 // loop_body
      %s26 = ssub.s32 %s21, 1
      %s27 = ssub.s32 %s21, 2
      %s34 = sadd.s32 1, %s29
      %p35 = scmp.ge.s32.totalorder %s34, 4
      %s36 = scalar_select %p35, 0, %s34
      %s37 = sadd.s32 1, %s28
      %s38 = scalar_select %p35, %s37, %s28
      %p39 = scmp.ge.s32.totalorder %s38, 2
      %s40 = scalar_select %p39, 0, %s38
      %s41 = ssub.s32 %s28, %s40
      %p42 = scmp.eq.s32.totalorder %s41, 0
      %s44 = sadd.s32 %s43, 1
      %s45 = scalar_select %p42, %s43, %s44
      %p48 = pneg %p42
      %p49 = scmp.eq.s32.totalorder %s21, 7
      %p50 = por %p48, %p49
      %p51 = scmp.ne.s32.totalorder %s43, %s46
      %p52 = scmp.eq.s32.totalorder %s21, 0
      %p53 = por %p51, %p52
      %p54 = scmp.ne.s32.totalorder %s43, %s46
      %p55 = scmp.eq.s32.totalorder %s26, 7
      %p56 = por %p54, %p55
      %p57 = scmp.ne.s32.totalorder %s46, %s47
      %p58 = scmp.eq.s32.totalorder %s26, 0
      %p59 = por %p57, %p58
      %p60 = scmp.ne.s32.totalorder %s46, %s47
      %p61 = scmp.eq.s32.totalorder %s27, 7
      %p62 = por %p60, %p61
      %p64 = scmp.ne.s32.totalorder %s47, %s63
      %p65 = scmp.eq.s32.totalorder %s27, 0
      %p66 = por %p64, %p65
      %s68 = sadd.s32 %s67, 1
      %p71 = scmp.eq.s32.totalorder %s21, 7
      %p72 = scmp.ne.s32.totalorder %s67, %s69
      %p73 = scmp.eq.s32.totalorder %s21, 0
      %p74 = por %p72, %p73
      %p75 = scmp.ne.s32.totalorder %s67, %s69
      %p76 = scmp.eq.s32.totalorder %s26, 7
      %p77 = por %p75, %p76
      %p78 = scmp.ne.s32.totalorder %s69, %s70
      %p79 = scmp.eq.s32.totalorder %s26, 0
      %p80 = por %p78, %p79
      %p81 = scmp.ne.s32.totalorder %s69, %s70
      %p82 = scmp.eq.s32.totalorder %s27, 7
      %p83 = por %p81, %p82
      %p85 = scmp.ne.s32.totalorder %s70, %s84
      %p86 = scmp.eq.s32.totalorder %s27, 0
      %p87 = por %p85, %p86
      %s89 = sadd.s32 %s88, 1
      %p92 = scmp.eq.s32.totalorder %s21, 7
      %p93 = scmp.ne.s32.totalorder %s88, %s90
      %p94 = scmp.eq.s32.totalorder %s21, 0
      %p95 = por %p93, %p94
      %p96 = scmp.ne.s32.totalorder %s88, %s90
      %p97 = scmp.eq.s32.totalorder %s26, 7
      %p98 = por %p96, %p97
      %p99 = scmp.ne.s32.totalorder %s90, %s91
      %p100 = scmp.eq.s32.totalorder %s26, 0
      %p101 = por %p99, %p100
      %p102 = scmp.ne.s32.totalorder %s90, %s91
      %p103 = scmp.eq.s32.totalorder %s27, 7
      %p104 = por %p102, %p103
      %p106 = scmp.ne.s32.totalorder %s91, %s105
      %p107 = scmp.eq.s32.totalorder %s27, 0
      %p108 = por %p106, %p107
      %s110 = sadd.s32 %s109, 1
      %p113 = scmp.eq.s32.totalorder %s21, 7
      %p114 = scmp.ne.s32.totalorder %s109, %s111
      %p115 = scmp.eq.s32.totalorder %s21, 0
      %p116 = por %p114, %p115
      %p117 = scmp.ne.s32.totalorder %s109, %s111
      %p118 = scmp.eq.s32.totalorder %s26, 7
      %p119 = por %p117, %p118
      %p120 = scmp.ne.s32.totalorder %s111, %s112
      %p121 = scmp.eq.s32.totalorder %s26, 0
      %p122 = por %p120, %p121
      %p123 = scmp.ne.s32.totalorder %s111, %s112
      %p124 = scmp.eq.s32.totalorder %s27, 7
      %p125 = por %p123, %p124
      %p127 = scmp.ne.s32.totalorder %s112, %s126
      %p128 = scmp.eq.s32.totalorder %s27, 0
      %p129 = por %p127, %p128
      %s131 = sadd.s32 %s130, 1
      %p134 = scmp.eq.s32.totalorder %s21, 7
      %p135 = scmp.ne.s32.totalorder %s130, %s132
      %p136 = scmp.eq.s32.totalorder %s21, 0
      %p137 = por %p135, %p136
      %p138 = scmp.ne.s32.totalorder %s130, %s132
      %p139 = scmp.eq.s32.totalorder %s26, 7
      %p140 = por %p138, %p139
      %p141 = scmp.ne.s32.totalorder %s132, %s133
      %p142 = scmp.eq.s32.totalorder %s26, 0
      %p143 = por %p141, %p142
      %p144 = scmp.ne.s32.totalorder %s132, %s133
      %p145 = scmp.eq.s32.totalorder %s27, 7
      %p146 = por %p144, %p145
      %p148 = scmp.ne.s32.totalorder %s133, %s147
      %p149 = scmp.eq.s32.totalorder %s27, 0
      %p150 = por %p148, %p149
      %s152 = sadd.s32 %s151, 1
      %p155 = scmp.eq.s32.totalorder %s21, 7
      %p156 = scmp.ne.s32.totalorder %s151, %s153
      %p157 = scmp.eq.s32.totalorder %s21, 0
      %p158 = por %p156, %p157
      %p159 = scmp.ne.s32.totalorder %s151, %s153
      %p160 = scmp.eq.s32.totalorder %s26, 7
      %p161 = por %p159, %p160
      %p162 = scmp.ne.s32.totalorder %s153, %s154
      %p163 = scmp.eq.s32.totalorder %s26, 0
      %p164 = por %p162, %p163
      %p165 = scmp.ne.s32.totalorder %s153, %s154
      %p166 = scmp.eq.s32.totalorder %s27, 7
      %p167 = por %p165, %p166
      %p169 = scmp.ne.s32.totalorder %s154, %s168
      %p170 = scmp.eq.s32.totalorder %s27, 0
      %p171 = por %p169, %p170
      %s173 = sadd.s32 %s172, 1
      %p176 = scmp.eq.s32.totalorder %s21, 7
      %p177 = scmp.ne.s32.totalorder %s172, %s174
      %p178 = scmp.eq.s32.totalorder %s21, 0
      %p179 = por %p177, %p178
      %p180 = scmp.ne.s32.totalorder %s172, %s174
      %p181 = scmp.eq.s32.totalorder %s26, 7
      %p182 = por %p180, %p181
      %p183 = scmp.ne.s32.totalorder %s174, %s175
      %p184 = scmp.eq.s32.totalorder %s26, 0
      %p185 = por %p183, %p184
      %p186 = scmp.ne.s32.totalorder %s174, %s175
      %p187 = scmp.eq.s32.totalorder %s27, 7
      %p188 = por %p186, %p187
      %p190 = scmp.ne.s32.totalorder %s175, %s189
      %p191 = scmp.eq.s32.totalorder %s27, 0
      %p192 = por %p190, %p191
      %s193 = ssub.s32 %s28, %s40
      %s194 = ssub.s32 %s29, %s36
      %s195 = sor.u32 %s193, %s194
      %p196 = scmp.eq.s32.totalorder %s195, 0
      %s198 = sadd.s32 %s197, 1
      %s199 = scalar_select %p196, %s197, %s198
      %p202 = pneg %p196
      %p203 = scmp.eq.s32.totalorder %s21, 7
      %p204 = por %p202, %p203
      %p205 = scmp.ne.s32.totalorder %s197, %s200
      %p206 = scmp.eq.s32.totalorder %s21, 0
      %p207 = por %p205, %p206
      %p208 = scmp.ne.s32.totalorder %s197, %s200
      %p209 = scmp.eq.s32.totalorder %s26, 7
      %p210 = por %p208, %p209
      %p211 = scmp.ne.s32.totalorder %s200, %s201
      %p212 = scmp.eq.s32.totalorder %s26, 0
      %p213 = por %p211, %p212
      %p214 = scmp.ne.s32.totalorder %s200, %s201
      %p215 = scmp.eq.s32.totalorder %s27, 7
      %p216 = por %p214, %p215
      %p218 = scmp.ne.s32.totalorder %s201, %s217
      %p219 = scmp.eq.s32.totalorder %s27, 0
      %p220 = por %p218, %p219
      %p221 = scmp.le.s32.totalorder 1, %s21
      %p222 = scmp.lt.s32.totalorder %s21, 9
      %p223 = pnand %p221, %p222
      %p224 = pneg %p223
      // Predicated region
      $region9: #{tpu_custom_call.1} parent=5 // pred_check
        _
      $region10: #{tpu_custom_call.1} parent=5 // pred_check_branch
        %226 = sbr.rel (%p223) target = $region12
      $region11: #{tpu_custom_call.1} parent=5 // pred_region
        %s227 = ssub.s32 %s21, 1
        // Predicated region
        $region13: #{tpu_custom_call.1} parent=11 // pred_check
          %p228 = pneg %p80
        $region14: #{tpu_custom_call.1} parent=11 // pred_check_branch
          %230 = sbr.rel (%p228) target = $region16
        $region15: #{tpu_custom_call.1} parent=11 // pred_region
          %232 = vsyncadd [#allocation7], 0
          %s233 = sshll.u32 %s1, 4
          %s234 = int_to_ptr.hbm [resolvable:$true] %s233
          %s235 = sshll.u32 [#allocation6], 4
          %s236 = int_to_ptr.vmem [resolvable:$true] %s235
          %241 = dma.hbm_to_vmem [thread:$0]  %s234, 2048, %s236, [#allocation7], 128, 128, 8
        $region16: #{tpu_custom_call.1} parent=11 // pred_fallthru
          _
        // Predicated region
        $region17: #{tpu_custom_call.1} parent=11 // pred_check
          %p242 = pneg %p101
        $region18: #{tpu_custom_call.1} parent=11 // pred_check_branch
          %244 = sbr.rel (%p242) target = $region20
        $region19: #{tpu_custom_call.1} parent=11 // pred_region
          %246 = vsyncadd [#allocation7], 0
          %s248 = sshll.u32 %s2, 4
          %s249 = int_to_ptr.hbm [resolvable:$true] %s248
          %s250 = sshll.u32 [#allocation8], 4
          %s251 = int_to_ptr.vmem [resolvable:$true] %s250
          %253 = dma.hbm_to_vmem [thread:$0]  %s249, 32, %s251, [#allocation7]
        $region20: #{tpu_custom_call.1} parent=11 // pred_fallthru
          _
        // Predicated region
        $region21: #{tpu_custom_call.1} parent=11 // pred_check
          %p254 = pneg %p122
        $region22: #{tpu_custom_call.1} parent=11 // pred_check_branch
          %256 = sbr.rel (%p254) target = $region24
        $region23: #{tpu_custom_call.1} parent=11 // pred_region
          %258 = vsyncadd [#allocation10], 0
          %s259 = sshll.u32 %s3, 4
          %s260 = int_to_ptr.hbm [resolvable:$true] %s259
          %s261 = sshll.u32 [#allocation9], 4
          %s262 = int_to_ptr.vmem [resolvable:$true] %s261
          %267 = dma.hbm_to_vmem [thread:$0]  %s260, 512, %s262, [#allocation10], 256, 256, 16
        $region24: #{tpu_custom_call.1} parent=11 // pred_fallthru
          _
        // Predicated region
        $region25: #{tpu_custom_call.1} parent=11 // pred_check
          %p268 = pneg %p143
        $region26: #{tpu_custom_call.1} parent=11 // pred_check_branch
          %270 = sbr.rel (%p268) target = $region28
        $region27: #{tpu_custom_call.1} parent=11 // pred_region
          _
        $region28: #{tpu_custom_call.1} parent=11 // pred_fallthru
          _
        // Predicated region
        $region29: #{tpu_custom_call.1} parent=11 // pred_check
          %p271 = pneg %p164
        $region30: #{tpu_custom_call.1} parent=11 // pred_check_branch
          %273 = sbr.rel (%p271) target = $region32
        $region31: #{tpu_custom_call.1} parent=11 // pred_region
          %275 = vsyncadd [#allocation10], 0
          %s276 = sshll.u32 %s5, 4
          %s277 = int_to_ptr.hbm [resolvable:$true] %s276
          %s278 = sshll.u32 [#allocation11], 4
          %s279 = int_to_ptr.vmem [resolvable:$true] %s278
          %284 = dma.hbm_to_vmem [thread:$0]  %s277, 2048, %s279, [#allocation10], 64, 64, 4
        $region32: #{tpu_custom_call.1} parent=11 // pred_fallthru
          _
        // Predicated region
        $region33: #{tpu_custom_call.1} parent=11 // pred_check
          %p285 = pneg %p185
        $region34: #{tpu_custom_call.1} parent=11 // pred_check_branch
          %287 = sbr.rel (%p285) target = $region36
        $region35: #{tpu_custom_call.1} parent=11 // pred_region
          _
        $region36: #{tpu_custom_call.1} parent=11 // pred_fallthru
          _
      $region12: #{tpu_custom_call.1} parent=5 // pred_fallthru
        _
      %p288 = scmp.lt.s32.totalorder %s21, 8
      // Predicated region
      $region37: #{tpu_custom_call.1} parent=5 // pred_check
        %p289 = pneg %p288
      $region38: #{tpu_custom_call.1} parent=5 // pred_check_branch
        %291 = sbr.rel (%p289) target = $region40
      $region39: #{tpu_custom_call.1} parent=5 // pred_region
        // Predicated region
        $region41: #{tpu_custom_call.1} parent=39 // pred_check
          %p292 = pneg %p53
        $region42: #{tpu_custom_call.1} parent=39 // pred_check_branch
          %294 = sbr.rel (%p292) target = $region44
        $region43: #{tpu_custom_call.1} parent=39 // pred_region
          %s295 = sand.u32 %s43, 1
          %s296 = scalar_lea.sflag [#allocation4], %s295
          %s297 = sand.u32 %s43, 1
          %s298 = smul.addr %s297, 256
          %s299 = scalar_lea.vmem [#allocation3], %s298
          %301 = vsyncadd %s296, 0
          %s302 = smul.addr %s28, 32
          %s303 = smul.addr %s302, 8
          %s304 = scalar_lea.hbm %s0, %s303
          %s305 = sshll.u32 %s304, 4
          %s306 = int_to_ptr.hbm [resolvable:$true] %s305
          %s307 = sshll.u32 %s299, 4
          %s308 = int_to_ptr.vmem [resolvable:$true] %s307
          %313 = dma.hbm_to_vmem [thread:$0]  %s306, 4096, %s308, %s296, 128, 128, 8
        $region44: #{tpu_custom_call.1} parent=39 // pred_fallthru
          _
      $region40: #{tpu_custom_call.1} parent=5 // pred_fallthru
        _
      %p314 = scmp.le.s32.totalorder 1, %s21
      %p315 = scmp.lt.s32.totalorder %s21, 9
      %p316 = pnand %p314, %p315
      %p317 = pneg %p316
      // Predicated region
      $region45: #{tpu_custom_call.1} parent=5 // pred_check
        _
      $region46: #{tpu_custom_call.1} parent=5 // pred_check_branch
        %319 = sbr.rel (%p316) target = $region48
      $region47: #{tpu_custom_call.1} parent=5 // pred_region
        %s320 = ssub.s32 %s21, 1
        %s321 = sand.u32 %s46, 1
        %s322 = scalar_lea.sflag [#allocation4], %s321
        %s323 = sand.u32 %s46, 1
        %s324 = smul.addr %s323, 256
        %s325 = scalar_lea.vmem [#allocation3], %s324
        // Predicated region
        $region49: #{tpu_custom_call.1} parent=47 // pred_check
          %p326 = pneg %p59
        $region50: #{tpu_custom_call.1} parent=47 // pred_check_branch
          %328 = sbr.rel (%p326) target = $region52
        $region51: #{tpu_custom_call.1} parent=47 // pred_region
          %330 = dma.done %s322, 4096
        $region52: #{tpu_custom_call.1} parent=47 // pred_fallthru
          _
        // Predicated region
        $region53: #{tpu_custom_call.1} parent=47 // pred_check
          %p331 = pneg %p80
        $region54: #{tpu_custom_call.1} parent=47 // pred_check_branch
          %333 = sbr.rel (%p331) target = $region56
        $region55: #{tpu_custom_call.1} parent=47 // pred_region
          %335 = dma.done [#allocation7], 2048
        $region56: #{tpu_custom_call.1} parent=47 // pred_fallthru
          _
        // Predicated region
        $region57: #{tpu_custom_call.1} parent=47 // pred_check
          %p336 = pneg %p101
        $region58: #{tpu_custom_call.1} parent=47 // pred_check_branch
          %338 = sbr.rel (%p336) target = $region60
        $region59: #{tpu_custom_call.1} parent=47 // pred_region
          %340 = dma.done [#allocation7], 32
        $region60: #{tpu_custom_call.1} parent=47 // pred_fallthru
          _
        // Predicated region
        $region61: #{tpu_custom_call.1} parent=47 // pred_check
          %p341 = pneg %p122
        $region62: #{tpu_custom_call.1} parent=47 // pred_check_branch
          %343 = sbr.rel (%p341) target = $region64
        $region63: #{tpu_custom_call.1} parent=47 // pred_region
          %345 = dma.done [#allocation10], 512
        $region64: #{tpu_custom_call.1} parent=47 // pred_fallthru
          _
        // Predicated region
        $region65: #{tpu_custom_call.1} parent=47 // pred_check
          %p346 = pneg %p164
        $region66: #{tpu_custom_call.1} parent=47 // pred_check_branch
          %348 = sbr.rel (%p346) target = $region68
        $region67: #{tpu_custom_call.1} parent=47 // pred_region
          %350 = dma.done [#allocation10], 2048
        $region68: #{tpu_custom_call.1} parent=47 // pred_fallthru
          _
        %s351 = sand.u32 %s46, 1
        %s352 = scalar_lea.sflag [#allocation4], %s351
        %s353 = sand.u32 %s46, 1
        %s354 = smul.addr %s353, 256
        %s355 = scalar_lea.vmem [#allocation3], %s354
        %p356 = pneg %p59
        %p357 = pneg %p56
        %p358 = pneg %p80
        %p359 = pneg %p77
        %p360 = pneg %p101
        %p361 = pneg %p98
        %p362 = pneg %p122
        %p363 = pneg %p119
        %p364 = pneg %p143
        %p365 = pneg %p140
        %p366 = pneg %p164
        %p367 = pneg %p161
        %p368 = pneg %p185
        %p369 = pneg %p182
        %p370 = pneg %p213
        %p371 = pneg %p210
        %s372 = sand.u32 %s200, 1
        %s373 = scalar_lea.sflag [#allocation5], %s372
        %s374 = sand.u32 %s200, 1
        %s375 = smul.addr %s374, 64
        %s376 = scalar_lea.vmem [#allocation12], %s375
        %s377 = smul.u32 8, %s31
        %s378 = smul.u32 %s31, 64
        %s379 = ssub.s32 %s378, 16
        %p380 = scmp.gt.s32.totalorder %s379, 0
        %s381 = scalar_select %p380, %s379, 0
        %p382 = scmp.lt.s32.totalorder %s381, 160
        %s383 = scalar_select %p382, %s381, 160
        %s384 = sadd.s32 %s383, 32
        %s385 = ssub.s32 %s384, %s378
        %v386 = vld [vmem:[#allocation6] sm:$0xff]
        %v387 = vld [vmem:[#allocation6 + $0x8] sm:$0xff]
        %v388 = vld [vmem:[#allocation6 + $0x10] sm:$0xff]
        %v389 = vld [vmem:[#allocation6 + $0x18] sm:$0xff]
        %v390 = vld [vmem:[#allocation6 + $0x20] sm:$0xff]
        %v391 = vld [vmem:[#allocation6 + $0x28] sm:$0xff]
        %v392 = vld [vmem:[#allocation6 + $0x30] sm:$0xff]
        %v393 = vld [vmem:[#allocation6 + $0x38] sm:$0xff]
        %v394 = vld [vmem:[#allocation6 + $0x40] sm:$0xff]
        %v395 = vld [vmem:[#allocation6 + $0x48] sm:$0xff]
        %v396 = vld [vmem:[#allocation6 + $0x50] sm:$0xff]
        %v397 = vld [vmem:[#allocation6 + $0x58] sm:$0xff]
        %v398 = vld [vmem:[#allocation6 + $0x60] sm:$0xff]
        %v399 = vld [vmem:[#allocation6 + $0x68] sm:$0xff]
        %v400 = vld [vmem:[#allocation6 + $0x70] sm:$0xff]
        %v401 = vld [vmem:[#allocation6 + $0x78] sm:$0xff]
        %s402 = scalar_lea.vmem %s325, %s383 [#allocation3]
        %v403 = vld [vmem:[%s402] sm:$0xff]
        %v404 = vld [vmem:[%s402 + $0x8] sm:$0xff]
        %v405 = vld [vmem:[%s402 + $0x10] sm:$0xff]
        %v406 = vld [vmem:[%s402 + $0x18] sm:$0xff]
        %v407 = vld [vmem:[%s402 + $0x20] sm:$0xff]
        %v408 = vld [vmem:[%s402 + $0x28] sm:$0xff]
        %v409 = vld [vmem:[%s402 + $0x30] sm:$0xff]
        %v410 = vld [vmem:[%s402 + $0x38] sm:$0xff]
        %v411 = vld [vmem:[%s402 + $0x40] sm:$0xff]
        %v412 = vld [vmem:[%s402 + $0x48] sm:$0xff]
        %v413 = vld [vmem:[%s402 + $0x50] sm:$0xff]
        %v414 = vld [vmem:[%s402 + $0x58] sm:$0xff]
        %v415 = vpack.c.bf16 %v404, %v403
        %v416 = vpack.c.bf16 %v406, %v405
        %v417 = vpack.c.bf16 %v408, %v407
        %v418 = vpack.c.bf16 %v410, %v409
        %v419 = vpack.c.bf16 %v412, %v411
        %v420 = vpack.c.bf16 %v414, %v413
        %v421 = vld [vmem:[#allocation8] sm:$0x3]
        %v423 = vperm.slane %v421, 0
        %v424 = vperm.slane %v421, 1
        %v443 = vunpack.c.l.b16 %v386
        %v444 = vunpack.c.h.b16 %v386
        %v445 = vunpack.c.l.b16 %v387
        %v446 = vunpack.c.h.b16 %v387
        %v447 = vunpack.c.l.b16 %v388
        %v448 = vunpack.c.h.b16 %v388
        %v449 = vunpack.c.l.b16 %v389
        %v450 = vunpack.c.h.b16 %v389
        %v451 = vunpack.c.l.b16 %v390
        %v452 = vunpack.c.h.b16 %v390
        %v453 = vunpack.c.l.b16 %v391
        %v454 = vunpack.c.h.b16 %v391
        %v455 = vunpack.c.l.b16 %v392
        %v456 = vunpack.c.h.b16 %v392
        %v457 = vunpack.c.l.b16 %v393
        %v458 = vunpack.c.h.b16 %v393
        %v459 = vunpack.c.l.b16 %v394
        %v460 = vunpack.c.h.b16 %v394
        %v461 = vunpack.c.l.b16 %v395
        %v462 = vunpack.c.h.b16 %v395
        %v463 = vunpack.c.l.b16 %v396
        %v464 = vunpack.c.h.b16 %v396
        %v465 = vunpack.c.l.b16 %v397
        %v466 = vunpack.c.h.b16 %v397
        %v467 = vunpack.c.l.b16 %v398
        %v468 = vunpack.c.h.b16 %v398
        %v469 = vunpack.c.l.b16 %v399
        %v470 = vunpack.c.h.b16 %v399
        %v471 = vunpack.c.l.b16 %v400
        %v472 = vunpack.c.h.b16 %v400
        %v473 = vunpack.c.l.b16 %v401
        %v474 = vunpack.c.h.b16 %v401
        %v475 = vpack.c.b16 %v445, %v443
        %v476 = vpack.c.b16 %v446, %v444
        %v477 = vpack.c.b16 %v449, %v447
        %v478 = vpack.c.b16 %v450, %v448
        %v479 = vpack.c.b16 %v453, %v451
        %v480 = vpack.c.b16 %v454, %v452
        %v481 = vpack.c.b16 %v457, %v455
        %v482 = vpack.c.b16 %v458, %v456
        %v483 = vpack.c.b16 %v461, %v459
        %v484 = vpack.c.b16 %v462, %v460
        %v485 = vpack.c.b16 %v465, %v463
        %v486 = vpack.c.b16 %v466, %v464
        %v487 = vpack.c.b16 %v469, %v467
        %v488 = vpack.c.b16 %v470, %v468
        %v489 = vpack.c.b16 %v473, %v471
        %v490 = vpack.c.b16 %v474, %v472
        %507 = vmatpush.bf16.msra.mxu0 %v489
        %508 = vmatpush.bf16.msra.mxu0 %v487
        %509 = vmatpush.bf16.msra.mxu0 %v485
        %510 = vmatpush.bf16.msra.mxu0 %v483
        %511 = vmatpush.bf16.msra.mxu0 %v481
        %512 = vmatpush.bf16.msra.mxu0 %v479
        %513 = vmatpush.bf16.msra.mxu0 %v477
        %514 = vmatpush.bf16.msra.mxu0 %v475
        %515 = vmatmul.bf16.gmra.mxu0 %v415
        %v516 = vpop.f32.mrf.mxu0
        %v517 = vadd.f32 %v423, %v516
        %v518 = vpop.f32.mrf.mxu0
        %v519 = vadd.f32 %v423, %v518
        %520 = vmatmul.bf16.gmra.mxu0 %v416
        %v521 = vpop.f32.mrf.mxu0
        %v522 = vadd.f32 %v423, %v521
        %v523 = vpop.f32.mrf.mxu0
        %v524 = vadd.f32 %v423, %v523
        %525 = vmatmul.bf16.gmra.mxu0 %v417
        %v526 = vpop.f32.mrf.mxu0
        %v527 = vadd.f32 %v423, %v526
        %v528 = vpop.f32.mrf.mxu0
        %v529 = vadd.f32 %v423, %v528
        %530 = vmatmul.bf16.gmra.mxu0 %v418
        %v531 = vpop.f32.mrf.mxu0
        %v532 = vadd.f32 %v423, %v531
        %v533 = vpop.f32.mrf.mxu0
        %v534 = vadd.f32 %v423, %v533
        %535 = vmatmul.bf16.gmra.mxu0 %v419
        %v536 = vpop.f32.mrf.mxu0
        %v537 = vadd.f32 %v423, %v536
        %v538 = vpop.f32.mrf.mxu0
        %v539 = vadd.f32 %v423, %v538
        %540 = vmatmul.bf16.gmra.mxu0 %v420
        %v541 = vpop.f32.mrf.mxu0
        %v542 = vadd.f32 %v423, %v541
        %v543 = vpop.f32.mrf.mxu0
        %v544 = vadd.f32 %v423, %v543
        %545 = vdwg.mxu0
        %546 = vmatpush.bf16.msra.mxu0 %v490
        %547 = vmatpush.bf16.msra.mxu0 %v488
        %548 = vmatpush.bf16.msra.mxu0 %v486
        %549 = vmatpush.bf16.msra.mxu0 %v484
        %550 = vmatpush.bf16.msra.mxu0 %v482
        %551 = vmatpush.bf16.msra.mxu0 %v480
        %552 = vmatpush.bf16.msra.mxu0 %v478
        %553 = vmatpush.bf16.msra.mxu0 %v476
        %554 = vmatmul.bf16.gmra.mxu0 %v415
        %v555 = vpop.f32.mrf.mxu0
        %v556 = vadd.f32 %v424, %v555
        %v557 = vpop.f32.mrf.mxu0
        %v558 = vadd.f32 %v424, %v557
        %559 = vmatmul.bf16.gmra.mxu0 %v416
        %v560 = vpop.f32.mrf.mxu0
        %v561 = vadd.f32 %v424, %v560
        %v562 = vpop.f32.mrf.mxu0
        %v563 = vadd.f32 %v424, %v562
        %564 = vmatmul.bf16.gmra.mxu0 %v417
        %v565 = vpop.f32.mrf.mxu0
        %v566 = vadd.f32 %v424, %v565
        %v567 = vpop.f32.mrf.mxu0
        %v568 = vadd.f32 %v424, %v567
        %569 = vmatmul.bf16.gmra.mxu0 %v418
        %v570 = vpop.f32.mrf.mxu0
        %v571 = vadd.f32 %v424, %v570
        %v572 = vpop.f32.mrf.mxu0
        %v573 = vadd.f32 %v424, %v572
        %574 = vmatmul.bf16.gmra.mxu0 %v419
        %v575 = vpop.f32.mrf.mxu0
        %v576 = vadd.f32 %v424, %v575
        %v577 = vpop.f32.mrf.mxu0
        %v578 = vadd.f32 %v424, %v577
        %579 = vmatmul.bf16.gmra.mxu0 %v420
        %v580 = vpop.f32.mrf.mxu0
        %v581 = vadd.f32 %v424, %v580
        %v582 = vpop.f32.mrf.mxu0
        %v583 = vadd.f32 %v424, %v582
        %584 = vdwg.mxu0
        %s585 = sshra.s32 %s385, 3
        %s586 = sand.u32 %s385, 7
        %s587 = smul.u32 %s585, 2
        %s588 = smul.addr %s587, 8
        %s589 = scalar_lea.vmem [#allocation2], %s588
        %590 = vst [vmem:[%s589] sm:$0xff] %v517
        %591 = vst [vmem:[%s589 + $0x8] sm:$0xff] %v556
        %592 = vst [vmem:[%s589 + $0x10] sm:$0xff] %v519
        %593 = vst [vmem:[%s589 + $0x18] sm:$0xff] %v558
        %594 = vst [vmem:[%s589 + $0x20] sm:$0xff] %v522
        %595 = vst [vmem:[%s589 + $0x28] sm:$0xff] %v561
        %596 = vst [vmem:[%s589 + $0x30] sm:$0xff] %v524
        %597 = vst [vmem:[%s589 + $0x38] sm:$0xff] %v563
        %598 = vst [vmem:[%s589 + $0x40] sm:$0xff] %v527
        %599 = vst [vmem:[%s589 + $0x48] sm:$0xff] %v566
        %600 = vst [vmem:[%s589 + $0x50] sm:$0xff] %v529
        %601 = vst [vmem:[%s589 + $0x58] sm:$0xff] %v568
        %602 = vst [vmem:[%s589 + $0x60] sm:$0xff] %v532
        %603 = vst [vmem:[%s589 + $0x68] sm:$0xff] %v571
        %604 = vst [vmem:[%s589 + $0x70] sm:$0xff] %v534
        %605 = vst [vmem:[%s589 + $0x78] sm:$0xff] %v573
        %606 = vst [vmem:[%s589 + $0x80] sm:$0xff] %v537
        %607 = vst [vmem:[%s589 + $0x88] sm:$0xff] %v576
        %608 = vst [vmem:[%s589 + $0x90] sm:$0xff] %v539
        %609 = vst [vmem:[%s589 + $0x98] sm:$0xff] %v578
        %610 = vst [vmem:[%s589 + $0xa0] sm:$0xff] %v542
        %611 = vst [vmem:[%s589 + $0xa8] sm:$0xff] %v581
        %612 = vst [vmem:[%s589 + $0xb0] sm:$0xff] %v544
        %613 = vst [vmem:[%s589 + $0xb8] sm:$0xff] %v583
        %p614 = scmp.eq.s32.totalorder %s31, 0
        // Predicated region
        $region69: #{tpu_custom_call.1} parent=47 // pred_check
          %p615 = pneg %p614
        $region70: #{tpu_custom_call.1} parent=47 // pred_check_branch
          %617 = sbr.rel (%p615) target = $region72
        $region71: #{tpu_custom_call.1} parent=47 // pred_region
          %618 = vst [vmem:[#allocation2 + $0x20] sm:$0xff] 0.0
          %619 = vst [vmem:[#allocation2 + $0x28] sm:$0xff] 0.0
          %620 = vst [vmem:[#allocation2 + $0x30] sm:$0xff] 0.0
          %621 = vst [vmem:[#allocation2 + $0x38] sm:$0xff] 0.0
        $region72: #{tpu_custom_call.1} parent=47 // pred_fallthru
          _
        %p622 = scmp.eq.s32.totalorder %s31, 3
        // Predicated region
        $region73: #{tpu_custom_call.1} parent=47 // pred_check
          %p623 = pneg %p622
        $region74: #{tpu_custom_call.1} parent=47 // pred_check_branch
          %625 = sbr.rel (%p623) target = $region76
        $region75: #{tpu_custom_call.1} parent=47 // pred_region
          %626 = vst [vmem:[#allocation2 + $0xc0] sm:$0xff] 0.0
          %627 = vst [vmem:[#allocation2 + $0xc8] sm:$0xff] 0.0
          %628 = vst [vmem:[#allocation2 + $0xd0] sm:$0xff] 0.0
          %629 = vst [vmem:[#allocation2 + $0xd8] sm:$0xff] 0.0
        $region76: #{tpu_custom_call.1} parent=47 // pred_fallthru
          _
        %v630 = vld [vmem:[#allocation9] sm:$0xff]
        %v631 = vld [vmem:[#allocation9 + $0x8] sm:$0xff]
        %v632 = vld [vmem:[#allocation9 + $0x10] sm:$0x1]
        %v633 = vld [vmem:[#allocation9 + $0x18] sm:$0x1]
        %v634 = vld [vmem:[#allocation2 + $0x20] sm:$0xff]
        %v635 = vld [vmem:[#allocation2 + $0x28] sm:$0xff]
        %v636 = vld [vmem:[#allocation2 + $0x30] sm:$0xff]
        %v637 = vld [vmem:[#allocation2 + $0x38] sm:$0xff]
        %v638 = vld [vmem:[#allocation2 + $0x40] sm:$0xff]
        %v639 = vld [vmem:[#allocation2 + $0x48] sm:$0xff]
        %v640 = vld [vmem:[#allocation2 + $0x50] sm:$0xff]
        %v641 = vld [vmem:[#allocation2 + $0x58] sm:$0xff]
        %v642 = vld [vmem:[#allocation2 + $0x60] sm:$0xff]
        %v643 = vld [vmem:[#allocation2 + $0x68] sm:$0xff]
        %v644 = vld [vmem:[#allocation2 + $0x70] sm:$0xff]
        %v645 = vld [vmem:[#allocation2 + $0x78] sm:$0xff]
        %v646 = vld [vmem:[#allocation2 + $0x80] sm:$0xff]
        %v647 = vld [vmem:[#allocation2 + $0x88] sm:$0xff]
        %v648 = vld [vmem:[#allocation2 + $0x90] sm:$0xff]
        %v649 = vld [vmem:[#allocation2 + $0x98] sm:$0xff]
        %v650 = vld [vmem:[#allocation2 + $0xa0] sm:$0xff]
        %v651 = vld [vmem:[#allocation2 + $0xa8] sm:$0xff]
        %v652 = vld [vmem:[#allocation2 + $0xb0] sm:$0xff]
        %v653 = vld [vmem:[#allocation2 + $0xb8] sm:$0xff]
        %v654 = vld [vmem:[#allocation2 + $0xc0] sm:$0xff]
        %v655 = vld [vmem:[#allocation2 + $0xc8] sm:$0xff]
        %v656 = vld [vmem:[#allocation2 + $0xd0] sm:$0xff]
        %v657 = vld [vmem:[#allocation2 + $0xd8] sm:$0xff]
        %v658 = vlaneseq
        %v659 = vshrl.u32 %v658, 7
        %v660 = vadd.s32 %v659, 8
        %v661 = vadd.s32 %v659, 16
        %v662 = vadd.s32 %v659, 24
        %v663 = vadd.s32 %v659, 32
        %v664 = vadd.s32 %v659, 40
        %v665 = vadd.s32 %v659, 48
        %v666 = vadd.s32 %v659, 56
        %vm667 = vcmp.lt.s32.totalorder %v659, 0
        %v668 = vsub.s32 0, %v659
        %v669 = vsel %vm667, %v668, %v659
        %v670 = vshrl.u32 %v669, 4
        %v671 = vand.u32 %v669, 15
        %v672 = vsub.s32 0, %v671
        %v673 = vsel %vm667, %v672, %v671
        %vm674 = vcmp.lt.s32.totalorder %v660, 0
        %v675 = vsub.s32 0, %v660
        %v676 = vsel %vm674, %v675, %v660
        %v677 = vshrl.u32 %v676, 4
        %v678 = vand.u32 %v676, 15
        %v679 = vsub.s32 0, %v678
        %v680 = vsel %vm674, %v679, %v678
        %vm681 = vcmp.lt.s32.totalorder %v661, 0
        %v682 = vsub.s32 0, %v661
        %v683 = vsel %vm681, %v682, %v661
        %v684 = vshrl.u32 %v683, 4
        %v685 = vand.u32 %v683, 15
        %v686 = vsub.s32 0, %v685
        %v687 = vsel %vm681, %v686, %v685
        %vm688 = vcmp.lt.s32.totalorder %v662, 0
        %v689 = vsub.s32 0, %v662
        %v690 = vsel %vm688, %v689, %v662
        %v691 = vshrl.u32 %v690, 4
        %v692 = vand.u32 %v690, 15
        %v693 = vsub.s32 0, %v692
        %v694 = vsel %vm688, %v693, %v692
        %vm695 = vcmp.lt.s32.totalorder %v663, 0
        %v696 = vsub.s32 0, %v663
        %v697 = vsel %vm695, %v696, %v663
        %v698 = vshrl.u32 %v697, 4
        %v699 = vand.u32 %v697, 15
        %v700 = vsub.s32 0, %v699
        %v701 = vsel %vm695, %v700, %v699
        %vm702 = vcmp.lt.s32.totalorder %v664, 0
        %v703 = vsub.s32 0, %v664
        %v704 = vsel %vm702, %v703, %v664
        %v705 = vshrl.u32 %v704, 4
        %v706 = vand.u32 %v704, 15
        %v707 = vsub.s32 0, %v706
        %v708 = vsel %vm702, %v707, %v706
        %vm709 = vcmp.lt.s32.totalorder %v665, 0
        %v710 = vsub.s32 0, %v665
        %v711 = vsel %vm709, %v710, %v665
        %v712 = vshrl.u32 %v711, 4
        %v713 = vand.u32 %v711, 15
        %v714 = vsub.s32 0, %v713
        %v715 = vsel %vm709, %v714, %v713
        %vm716 = vcmp.lt.s32.totalorder %v666, 0
        %v717 = vsub.s32 0, %v666
        %v718 = vsel %vm716, %v717, %v666
        %v719 = vshrl.u32 %v718, 4
        %v720 = vand.u32 %v718, 15
        %v721 = vsub.s32 0, %v720
        %v722 = vsel %vm716, %v721, %v720
        %vm723 = vcmp.ne.s32.totalorder %v673, 0
        %vm724 = vcmp.ne.s32.totalorder %v680, 0
        %vm725 = vcmp.ne.s32.totalorder %v687, 0
        %vm726 = vcmp.ne.s32.totalorder %v694, 0
        %vm727 = vcmp.ne.s32.totalorder %v701, 0
        %vm728 = vcmp.ne.s32.totalorder %v708, 0
        %vm729 = vcmp.ne.s32.totalorder %v715, 0
        %vm730 = vcmp.ne.s32.totalorder %v722, 0
        %vm731 = vcmp.lt.s32.totalorder %v673, 0
        %vm732 = vcmp.lt.s32.totalorder %v680, 0
        %vm733 = vcmp.lt.s32.totalorder %v687, 0
        %vm734 = vcmp.lt.s32.totalorder %v694, 0
        %vm735 = vcmp.lt.s32.totalorder %v701, 0
        %vm736 = vcmp.lt.s32.totalorder %v708, 0
        %vm737 = vcmp.lt.s32.totalorder %v715, 0
        %vm738 = vcmp.lt.s32.totalorder %v722, 0
        %vm739 = vmand %vm731, %vm723
        %vm740 = vmand %vm732, %vm724
        %vm741 = vmand %vm733, %vm725
        %vm742 = vmand %vm734, %vm726
        %vm743 = vmand %vm735, %vm727
        %vm744 = vmand %vm736, %vm728
        %vm745 = vmand %vm737, %vm729
        %vm746 = vmand %vm738, %vm730
        %v747 = vadd.s32 %v673, 16
        %v748 = vadd.s32 %v680, 16
        %v749 = vadd.s32 %v687, 16
        %v750 = vadd.s32 %v694, 16
        %v751 = vadd.s32 %v701, 16
        %v752 = vadd.s32 %v708, 16
        %v753 = vadd.s32 %v715, 16
        %v754 = vadd.s32 %v722, 16
        %v755 = vsel %vm739, %v747, %v673
        %v756 = vsel %vm740, %v748, %v680
        %v757 = vsel %vm741, %v749, %v687
        %v758 = vsel %vm742, %v750, %v694
        %v759 = vsel %vm743, %v751, %v701
        %v760 = vsel %vm744, %v752, %v708
        %v761 = vsel %vm745, %v753, %v715
        %v762 = vsel %vm746, %v754, %v722
        %vm763 = vcmp.ge.s32.totalorder %v755, 1
        %vm764 = vcmp.ge.s32.totalorder %v756, 1
        %vm765 = vcmp.ge.s32.totalorder %v757, 1
        %vm766 = vcmp.ge.s32.totalorder %v758, 1
        %vm767 = vcmp.ge.s32.totalorder %v759, 1
        %vm768 = vcmp.ge.s32.totalorder %v760, 1
        %vm769 = vcmp.ge.s32.totalorder %v761, 1
        %vm770 = vcmp.ge.s32.totalorder %v762, 1
        %vm771 = vcmp.le.s32.totalorder %v755, 14
        %vm772 = vcmp.le.s32.totalorder %v756, 14
        %vm773 = vcmp.le.s32.totalorder %v757, 14
        %vm774 = vcmp.le.s32.totalorder %v758, 14
        %vm775 = vcmp.le.s32.totalorder %v759, 14
        %vm776 = vcmp.le.s32.totalorder %v760, 14
        %vm777 = vcmp.le.s32.totalorder %v761, 14
        %vm778 = vcmp.le.s32.totalorder %v762, 14
        %v779 = vperm.slane %v630, 0
        %v780 = vperm.slane %v631, 0
        %v781 = vmul.f32 %v634, %v779
        %v782 = vmul.f32 %v635, %v780
        %v783 = vmul.f32 %v636, %v779
        %v784 = vmul.f32 %v637, %v780
        %v785 = vmul.f32 %v638, %v779
        %v786 = vmul.f32 %v639, %v780
        %v787 = vmul.f32 %v640, %v779
        %v788 = vmul.f32 %v641, %v780
        %v789 = vmul.f32 %v642, %v779
        %v790 = vmul.f32 %v643, %v780
        %v791 = vmul.f32 %v644, %v779
        %v792 = vmul.f32 %v645, %v780
        %v793 = vmul.f32 %v646, %v779
        %v794 = vmul.f32 %v647, %v780
        %v795 = vmul.f32 %v648, %v779
        %v796 = vmul.f32 %v649, %v780
        %v797 = vperm.slane %v630, 3
        %v798 = vperm.slane %v631, 3
        %v799 = vmul.f32 %v638, %v797
        %v800 = vmul.f32 %v639, %v798
        %v801 = vmul.f32 %v640, %v797
        %v802 = vmul.f32 %v641, %v798
        %v803 = vmul.f32 %v642, %v797
        %v804 = vmul.f32 %v643, %v798
        %v805 = vmul.f32 %v644, %v797
        %v806 = vmul.f32 %v645, %v798
        %v807 = vmul.f32 %v646, %v797
        %v808 = vmul.f32 %v647, %v798
        %v809 = vmul.f32 %v648, %v797
        %v810 = vmul.f32 %v649, %v798
        %v811 = vmul.f32 %v650, %v797
        %v812 = vmul.f32 %v651, %v798
        %v813 = vmul.f32 %v652, %v797
        %v814 = vmul.f32 %v653, %v798
        %v815 = vadd.f32 %v781, %v799
        %v816 = vadd.f32 %v782, %v800
        %v817 = vadd.f32 %v783, %v801
        %v818 = vadd.f32 %v784, %v802
        %v819 = vadd.f32 %v785, %v803
        %v820 = vadd.f32 %v786, %v804
        %v821 = vadd.f32 %v787, %v805
        %v822 = vadd.f32 %v788, %v806
        %v823 = vadd.f32 %v789, %v807
        %v824 = vadd.f32 %v790, %v808
        %v825 = vadd.f32 %v791, %v809
        %v826 = vadd.f32 %v792, %v810
        %v827 = vadd.f32 %v793, %v811
        %v828 = vadd.f32 %v794, %v812
        %v829 = vadd.f32 %v795, %v813
        %v830 = vadd.f32 %v796, %v814
        %v831 = vperm.slane %v630, 6
        %v832 = vperm.slane %v631, 6
        %v833 = vmul.f32 %v642, %v831
        %v834 = vmul.f32 %v643, %v832
        %v835 = vmul.f32 %v644, %v831
        %v836 = vmul.f32 %v645, %v832
        %v837 = vmul.f32 %v646, %v831
        %v838 = vmul.f32 %v647, %v832
        %v839 = vmul.f32 %v648, %v831
        %v840 = vmul.f32 %v649, %v832
        %v841 = vmul.f32 %v650, %v831
        %v842 = vmul.f32 %v651, %v832
        %v843 = vmul.f32 %v652, %v831
        %v844 = vmul.f32 %v653, %v832
        %v845 = vmul.f32 %v654, %v831
        %v846 = vmul.f32 %v655, %v832
        %v847 = vmul.f32 %v656, %v831
        %v848 = vmul.f32 %v657, %v832
        %v849 = vadd.f32 %v815, %v833
        %v850 = vadd.f32 %v816, %v834
        %v851 = vadd.f32 %v817, %v835
        %v852 = vadd.f32 %v818, %v836
        %v853 = vadd.f32 %v819, %v837
        %v854 = vadd.f32 %v820, %v838
        %v855 = vadd.f32 %v821, %v839
        %v856 = vadd.f32 %v822, %v840
        %v857 = vadd.f32 %v823, %v841
        %v858 = vadd.f32 %v824, %v842
        %v859 = vadd.f32 %v825, %v843
        %v860 = vadd.f32 %v826, %v844
        %v861 = vadd.f32 %v827, %v845
        %v862 = vadd.f32 %v828, %v846
        %v863 = vadd.f32 %v829, %v847
        %v864 = vadd.f32 %v830, %v848
        %v865 = vrot.slane %v849, 7
        %v866 = vrot.slane %v850, 7
        %v867 = vrot.slane %v851, 7
        %v868 = vrot.slane %v852, 7
        %v869 = vrot.slane %v853, 7
        %v870 = vrot.slane %v854, 7
        %v871 = vrot.slane %v855, 7
        %v872 = vrot.slane %v856, 7
        %v873 = vrot.slane %v857, 7
        %v874 = vrot.slane %v858, 7
        %v875 = vrot.slane %v859, 7
        %v876 = vrot.slane %v860, 7
        %v877 = vrot.slane %v861, 7
        %v878 = vrot.slane %v862, 7
        %v879 = vrot.slane %v863, 7
        %v880 = vrot.slane %v864, 7
        %vm881 = vcmp.lt.s32.totalorder %v659, 1
        %v882 = vsel %vm881, %v877, %v879
        %v883 = vsel %vm881, %v878, %v880
        %v884 = vsel %vm881, %v875, %v877
        %v885 = vsel %vm881, %v876, %v878
        %v886 = vsel %vm881, %v873, %v875
        %v887 = vsel %vm881, %v874, %v876
        %v888 = vsel %vm881, %v871, %v873
        %v889 = vsel %vm881, %v872, %v874
        %v890 = vsel %vm881, %v869, %v871
        %v891 = vsel %vm881, %v870, %v872
        %v892 = vsel %vm881, %v867, %v869
        %v893 = vsel %vm881, %v868, %v870
        %v894 = vsel %vm881, %v865, %v867
        %v895 = vsel %vm881, %v866, %v868
        %v896 = vsel %vm881, %v879, %v865
        %v897 = vsel %vm881, %v880, %v866
        %v898 = vperm.slane %v630, 2
        %v899 = vperm.slane %v631, 2
        %v900 = vmul.f32 %v634, %v898
        %v901 = vmul.f32 %v635, %v899
        %v902 = vmul.f32 %v636, %v898
        %v903 = vmul.f32 %v637, %v899
        %v904 = vmul.f32 %v638, %v898
        %v905 = vmul.f32 %v639, %v899
        %v906 = vmul.f32 %v640, %v898
        %v907 = vmul.f32 %v641, %v899
        %v908 = vmul.f32 %v642, %v898
        %v909 = vmul.f32 %v643, %v899
        %v910 = vmul.f32 %v644, %v898
        %v911 = vmul.f32 %v645, %v899
        %v912 = vmul.f32 %v646, %v898
        %v913 = vmul.f32 %v647, %v899
        %v914 = vmul.f32 %v648, %v898
        %v915 = vmul.f32 %v649, %v899
        %v916 = vperm.slane %v630, 5
        %v917 = vperm.slane %v631, 5
        %v918 = vmul.f32 %v638, %v916
        %v919 = vmul.f32 %v639, %v917
        %v920 = vmul.f32 %v640, %v916
        %v921 = vmul.f32 %v641, %v917
        %v922 = vmul.f32 %v642, %v916
        %v923 = vmul.f32 %v643, %v917
        %v924 = vmul.f32 %v644, %v916
        %v925 = vmul.f32 %v645, %v917
        %v926 = vmul.f32 %v646, %v916
        %v927 = vmul.f32 %v647, %v917
        %v928 = vmul.f32 %v648, %v916
        %v929 = vmul.f32 %v649, %v917
        %v930 = vmul.f32 %v650, %v916
        %v931 = vmul.f32 %v651, %v917
        %v932 = vmul.f32 %v652, %v916
        %v933 = vmul.f32 %v653, %v917
        %v934 = vadd.f32 %v900, %v918
        %v935 = vadd.f32 %v901, %v919
        %v936 = vadd.f32 %v902, %v920
        %v937 = vadd.f32 %v903, %v921
        %v938 = vadd.f32 %v904, %v922
        %v939 = vadd.f32 %v905, %v923
        %v940 = vadd.f32 %v906, %v924
        %v941 = vadd.f32 %v907, %v925
        %v942 = vadd.f32 %v908, %v926
        %v943 = vadd.f32 %v909, %v927
        %v944 = vadd.f32 %v910, %v928
        %v945 = vadd.f32 %v911, %v929
        %v946 = vadd.f32 %v912, %v930
        %v947 = vadd.f32 %v913, %v931
        %v948 = vadd.f32 %v914, %v932
        %v949 = vadd.f32 %v915, %v933
        %v950 = vperm.slane %v632, 0
        %v951 = vperm.slane %v633, 0
        %v952 = vmul.f32 %v642, %v950
        %v953 = vmul.f32 %v643, %v951
        %v954 = vmul.f32 %v644, %v950
        %v955 = vmul.f32 %v645, %v951
        %v956 = vmul.f32 %v646, %v950
        %v957 = vmul.f32 %v647, %v951
        %v958 = vmul.f32 %v648, %v950
        %v959 = vmul.f32 %v649, %v951
        %v960 = vmul.f32 %v650, %v950
        %v961 = vmul.f32 %v651, %v951
        %v962 = vmul.f32 %v652, %v950
        %v963 = vmul.f32 %v653, %v951
        %v964 = vmul.f32 %v654, %v950
        %v965 = vmul.f32 %v655, %v951
        %v966 = vmul.f32 %v656, %v950
        %v967 = vmul.f32 %v657, %v951
        %v968 = vadd.f32 %v934, %v952
        %v969 = vadd.f32 %v935, %v953
        %v970 = vadd.f32 %v936, %v954
        %v971 = vadd.f32 %v937, %v955
        %v972 = vadd.f32 %v938, %v956
        %v973 = vadd.f32 %v939, %v957
        %v974 = vadd.f32 %v940, %v958
        %v975 = vadd.f32 %v941, %v959
        %v976 = vadd.f32 %v942, %v960
        %v977 = vadd.f32 %v943, %v961
        %v978 = vadd.f32 %v944, %v962
        %v979 = vadd.f32 %v945, %v963
        %v980 = vadd.f32 %v946, %v964
        %v981 = vadd.f32 %v947, %v965
        %v982 = vadd.f32 %v948, %v966
        %v983 = vadd.f32 %v949, %v967
        %v984 = vrot.slane %v968, 1
        %v985 = vrot.slane %v969, 1
        %v986 = vrot.slane %v970, 1
        %v987 = vrot.slane %v971, 1
        %v988 = vrot.slane %v972, 1
        %v989 = vrot.slane %v973, 1
        %v990 = vrot.slane %v974, 1
        %v991 = vrot.slane %v975, 1
        %v992 = vrot.slane %v976, 1
        %v993 = vrot.slane %v977, 1
        %v994 = vrot.slane %v978, 1
        %v995 = vrot.slane %v979, 1
        %v996 = vrot.slane %v980, 1
        %v997 = vrot.slane %v981, 1
        %v998 = vrot.slane %v982, 1
        %v999 = vrot.slane %v983, 1
        %vm1000 = vcmp.lt.s32.totalorder %v659, 7
        %v1001 = vsel %vm1000, %v996, %v998
        %v1002 = vsel %vm1000, %v997, %v999
        %v1003 = vsel %vm1000, %v994, %v996
        %v1004 = vsel %vm1000, %v995, %v997
        %v1005 = vsel %vm1000, %v992, %v994
        %v1006 = vsel %vm1000, %v993, %v995
        %v1007 = vsel %vm1000, %v990, %v992
        %v1008 = vsel %vm1000, %v991, %v993
        %v1009 = vsel %vm1000, %v988, %v990
        %v1010 = vsel %vm1000, %v989, %v991
        %v1011 = vsel %vm1000, %v986, %v988
        %v1012 = vsel %vm1000, %v987, %v989
        %v1013 = vsel %vm1000, %v984, %v986
        %v1014 = vsel %vm1000, %v985, %v987
        %v1015 = vsel %vm1000, %v998, %v984
        %v1016 = vsel %vm1000, %v999, %v985
        %v1017 = vld [vmem:[%s4] sm:$0x3]
        %v1019 = vperm.slane %v1017, 0
        %v1020 = vperm.slane %v1017, 1
        %v1023 = vadd.f32 %v638, %v1019
        %v1024 = vadd.f32 %v639, %v1020
        %v1025 = vadd.f32 %v640, %v1019
        %v1026 = vadd.f32 %v641, %v1020
        %v1027 = vadd.f32 %v642, %v1019
        %v1028 = vadd.f32 %v643, %v1020
        %v1029 = vadd.f32 %v644, %v1019
        %v1030 = vadd.f32 %v645, %v1020
        %v1031 = vadd.f32 %v646, %v1019
        %v1032 = vadd.f32 %v647, %v1020
        %v1033 = vadd.f32 %v648, %v1019
        %v1034 = vadd.f32 %v649, %v1020
        %v1035 = vadd.f32 %v650, %v1019
        %v1036 = vadd.f32 %v651, %v1020
        %v1037 = vadd.f32 %v652, %v1019
        %v1038 = vadd.f32 %v653, %v1020
        %v1039 = vperm.slane %v630, 1
        %v1040 = vperm.slane %v631, 1
        %v1041 = vmul.f32 %v634, %v1039
        %v1042 = vmul.f32 %v635, %v1040
        %v1043 = vmul.f32 %v636, %v1039
        %v1044 = vmul.f32 %v637, %v1040
        %v1045 = vmul.f32 %v638, %v1039
        %v1046 = vmul.f32 %v639, %v1040
        %v1047 = vmul.f32 %v640, %v1039
        %v1048 = vmul.f32 %v641, %v1040
        %v1049 = vmul.f32 %v642, %v1039
        %v1050 = vmul.f32 %v643, %v1040
        %v1051 = vmul.f32 %v644, %v1039
        %v1052 = vmul.f32 %v645, %v1040
        %v1053 = vmul.f32 %v646, %v1039
        %v1054 = vmul.f32 %v647, %v1040
        %v1055 = vmul.f32 %v648, %v1039
        %v1056 = vmul.f32 %v649, %v1040
        %v1057 = vperm.slane %v630, 4
        %v1058 = vperm.slane %v631, 4
        %v1059 = vmul.f32 %v638, %v1057
        %v1060 = vmul.f32 %v639, %v1058
        %v1061 = vmul.f32 %v640, %v1057
        %v1062 = vmul.f32 %v641, %v1058
        %v1063 = vmul.f32 %v642, %v1057
        %v1064 = vmul.f32 %v643, %v1058
        %v1065 = vmul.f32 %v644, %v1057
        %v1066 = vmul.f32 %v645, %v1058
        %v1067 = vmul.f32 %v646, %v1057
        %v1068 = vmul.f32 %v647, %v1058
        %v1069 = vmul.f32 %v648, %v1057
        %v1070 = vmul.f32 %v649, %v1058
        %v1071 = vmul.f32 %v650, %v1057
        %v1072 = vmul.f32 %v651, %v1058
        %v1073 = vmul.f32 %v652, %v1057
        %v1074 = vmul.f32 %v653, %v1058
        %v1075 = vadd.f32 %v1041, %v1059
        %v1076 = vadd.f32 %v1042, %v1060
        %v1077 = vadd.f32 %v1043, %v1061
        %v1078 = vadd.f32 %v1044, %v1062
        %v1079 = vadd.f32 %v1045, %v1063
        %v1080 = vadd.f32 %v1046, %v1064
        %v1081 = vadd.f32 %v1047, %v1065
        %v1082 = vadd.f32 %v1048, %v1066
        %v1083 = vadd.f32 %v1049, %v1067
        %v1084 = vadd.f32 %v1050, %v1068
        %v1085 = vadd.f32 %v1051, %v1069
        %v1086 = vadd.f32 %v1052, %v1070
        %v1087 = vadd.f32 %v1053, %v1071
        %v1088 = vadd.f32 %v1054, %v1072
        %v1089 = vadd.f32 %v1055, %v1073
        %v1090 = vadd.f32 %v1056, %v1074
        %v1091 = vperm.slane %v630, 7
        %v1092 = vperm.slane %v631, 7
        %v1093 = vmul.f32 %v642, %v1091
        %v1094 = vmul.f32 %v643, %v1092
        %v1095 = vmul.f32 %v644, %v1091
        %v1096 = vmul.f32 %v645, %v1092
        %v1097 = vmul.f32 %v646, %v1091
        %v1098 = vmul.f32 %v647, %v1092
        %v1099 = vmul.f32 %v648, %v1091
        %v1100 = vmul.f32 %v649, %v1092
        %v1101 = vmul.f32 %v650, %v1091
        %v1102 = vmul.f32 %v651, %v1092
        %v1103 = vmul.f32 %v652, %v1091
        %v1104 = vmul.f32 %v653, %v1092
        %v1105 = vmul.f32 %v654, %v1091
        %v1106 = vmul.f32 %v655, %v1092
        %v1107 = vmul.f32 %v656, %v1091
        %v1108 = vmul.f32 %v657, %v1092
        %v1109 = vadd.f32 %v1075, %v1093
        %v1110 = vadd.f32 %v1076, %v1094
        %v1111 = vadd.f32 %v1077, %v1095
        %v1112 = vadd.f32 %v1078, %v1096
        %v1113 = vadd.f32 %v1079, %v1097
        %v1114 = vadd.f32 %v1080, %v1098
        %v1115 = vadd.f32 %v1081, %v1099
        %v1116 = vadd.f32 %v1082, %v1100
        %v1117 = vadd.f32 %v1083, %v1101
        %v1118 = vadd.f32 %v1084, %v1102
        %v1119 = vadd.f32 %v1085, %v1103
        %v1120 = vadd.f32 %v1086, %v1104
        %v1121 = vadd.f32 %v1087, %v1105
        %v1122 = vadd.f32 %v1088, %v1106
        %v1123 = vadd.f32 %v1089, %v1107
        %v1124 = vadd.f32 %v1090, %v1108
        %v1125 = vadd.f32 %v1023, %v1109
        %v1126 = vadd.f32 %v1024, %v1110
        %v1127 = vadd.f32 %v1025, %v1111
        %v1128 = vadd.f32 %v1026, %v1112
        %v1129 = vadd.f32 %v1027, %v1113
        %v1130 = vadd.f32 %v1028, %v1114
        %v1131 = vadd.f32 %v1029, %v1115
        %v1132 = vadd.f32 %v1030, %v1116
        %v1133 = vadd.f32 %v1031, %v1117
        %v1134 = vadd.f32 %v1032, %v1118
        %v1135 = vadd.f32 %v1033, %v1119
        %v1136 = vadd.f32 %v1034, %v1120
        %v1137 = vadd.f32 %v1035, %v1121
        %v1138 = vadd.f32 %v1036, %v1122
        %v1139 = vadd.f32 %v1037, %v1123
        %v1140 = vadd.f32 %v1038, %v1124
        %v1141 = vsel %vm763, 1, 0
        %v1142 = vsel %vm764, 1, 0
        %v1143 = vsel %vm765, 1, 0
        %v1144 = vsel %vm766, 1, 0
        %v1145 = vsel %vm767, 1, 0
        %v1146 = vsel %vm768, 1, 0
        %v1147 = vsel %vm769, 1, 0
        %v1148 = vsel %vm770, 1, 0
        %vm1149 = vcmp.eq.s32.totalorder %v1141, 1
        %vm1150 = vcmp.eq.s32.totalorder %v1142, 1
        %vm1151 = vcmp.eq.s32.totalorder %v1143, 1
        %vm1152 = vcmp.eq.s32.totalorder %v1144, 1
        %vm1153 = vcmp.eq.s32.totalorder %v1145, 1
        %vm1154 = vcmp.eq.s32.totalorder %v1146, 1
        %vm1155 = vcmp.eq.s32.totalorder %v1147, 1
        %vm1156 = vcmp.eq.s32.totalorder %v1148, 1
        %v1157 = vsel %vm1149, %v896, 0.0
        %v1158 = vsel %vm1149, %v897, 0.0
        %v1159 = vsel %vm1150, %v894, 0.0
        %v1160 = vsel %vm1150, %v895, 0.0
        %v1161 = vsel %vm1151, %v892, 0.0
        %v1162 = vsel %vm1151, %v893, 0.0
        %v1163 = vsel %vm1152, %v890, 0.0
        %v1164 = vsel %vm1152, %v891, 0.0
        %v1165 = vsel %vm1153, %v888, 0.0
        %v1166 = vsel %vm1153, %v889, 0.0
        %v1167 = vsel %vm1154, %v886, 0.0
        %v1168 = vsel %vm1154, %v887, 0.0
        %v1169 = vsel %vm1155, %v884, 0.0
        %v1170 = vsel %vm1155, %v885, 0.0
        %v1171 = vsel %vm1156, %v882, 0.0
        %v1172 = vsel %vm1156, %v883, 0.0
        %v1173 = vadd.f32 %v1125, %v1157
        %v1174 = vadd.f32 %v1126, %v1158
        %v1175 = vadd.f32 %v1127, %v1159
        %v1176 = vadd.f32 %v1128, %v1160
        %v1177 = vadd.f32 %v1129, %v1161
        %v1178 = vadd.f32 %v1130, %v1162
        %v1179 = vadd.f32 %v1131, %v1163
        %v1180 = vadd.f32 %v1132, %v1164
        %v1181 = vadd.f32 %v1133, %v1165
        %v1182 = vadd.f32 %v1134, %v1166
        %v1183 = vadd.f32 %v1135, %v1167
        %v1184 = vadd.f32 %v1136, %v1168
        %v1185 = vadd.f32 %v1137, %v1169
        %v1186 = vadd.f32 %v1138, %v1170
        %v1187 = vadd.f32 %v1139, %v1171
        %v1188 = vadd.f32 %v1140, %v1172
        %v1189 = vsel %vm771, 1, 0
        %v1190 = vsel %vm772, 1, 0
        %v1191 = vsel %vm773, 1, 0
        %v1192 = vsel %vm774, 1, 0
        %v1193 = vsel %vm775, 1, 0
        %v1194 = vsel %vm776, 1, 0
        %v1195 = vsel %vm777, 1, 0
        %v1196 = vsel %vm778, 1, 0
        %vm1197 = vcmp.eq.s32.totalorder %v1189, 1
        %vm1198 = vcmp.eq.s32.totalorder %v1190, 1
        %vm1199 = vcmp.eq.s32.totalorder %v1191, 1
        %vm1200 = vcmp.eq.s32.totalorder %v1192, 1
        %vm1201 = vcmp.eq.s32.totalorder %v1193, 1
        %vm1202 = vcmp.eq.s32.totalorder %v1194, 1
        %vm1203 = vcmp.eq.s32.totalorder %v1195, 1
        %vm1204 = vcmp.eq.s32.totalorder %v1196, 1
        %v1205 = vsel %vm1197, %v1013, 0.0
        %v1206 = vsel %vm1197, %v1014, 0.0
        %v1207 = vsel %vm1198, %v1011, 0.0
        %v1208 = vsel %vm1198, %v1012, 0.0
        %v1209 = vsel %vm1199, %v1009, 0.0
        %v1210 = vsel %vm1199, %v1010, 0.0
        %v1211 = vsel %vm1200, %v1007, 0.0
        %v1212 = vsel %vm1200, %v1008, 0.0
        %v1213 = vsel %vm1201, %v1005, 0.0
        %v1214 = vsel %vm1201, %v1006, 0.0
        %v1215 = vsel %vm1202, %v1003, 0.0
        %v1216 = vsel %vm1202, %v1004, 0.0
        %v1217 = vsel %vm1203, %v1001, 0.0
        %v1218 = vsel %vm1203, %v1002, 0.0
        %v1219 = vsel %vm1204, %v1015, 0.0
        %v1220 = vsel %vm1204, %v1016, 0.0
        %v1221 = vadd.f32 %v1173, %v1205
        %v1222 = vadd.f32 %v1174, %v1206
        %v1223 = vadd.f32 %v1175, %v1207
        %v1224 = vadd.f32 %v1176, %v1208
        %v1225 = vadd.f32 %v1177, %v1209
        %v1226 = vadd.f32 %v1178, %v1210
        %v1227 = vadd.f32 %v1179, %v1211
        %v1228 = vadd.f32 %v1180, %v1212
        %v1229 = vadd.f32 %v1181, %v1213
        %v1230 = vadd.f32 %v1182, %v1214
        %v1231 = vadd.f32 %v1183, %v1215
        %v1232 = vadd.f32 %v1184, %v1216
        %v1233 = vadd.f32 %v1185, %v1217
        %v1234 = vadd.f32 %v1186, %v1218
        %v1235 = vadd.f32 %v1187, %v1219
        %v1236 = vadd.f32 %v1188, %v1220
        %v1237 = vmul.f32 %v1221, 0.5
        %v1238 = vmul.f32 %v1222, 0.5
        %v1239 = vmul.f32 %v1223, 0.5
        %v1240 = vmul.f32 %v1224, 0.5
        %v1241 = vmul.f32 %v1225, 0.5
        %v1242 = vmul.f32 %v1226, 0.5
        %v1243 = vmul.f32 %v1227, 0.5
        %v1244 = vmul.f32 %v1228, 0.5
        %v1245 = vmul.f32 %v1229, 0.5
        %v1246 = vmul.f32 %v1230, 0.5
        %v1247 = vmul.f32 %v1231, 0.5
        %v1248 = vmul.f32 %v1232, 0.5
        %v1249 = vmul.f32 %v1233, 0.5
        %v1250 = vmul.f32 %v1234, 0.5
        %v1251 = vmul.f32 %v1235, 0.5
        %v1252 = vmul.f32 %v1236, 0.5
        %v1253 = vmul.f32 %v1221, 0.70710677
        %v1254 = vmul.f32 %v1222, 0.70710677
        %v1255 = vmul.f32 %v1223, 0.70710677
        %v1256 = vmul.f32 %v1224, 0.70710677
        %v1257 = vmul.f32 %v1225, 0.70710677
        %v1258 = vmul.f32 %v1226, 0.70710677
        %v1259 = vmul.f32 %v1227, 0.70710677
        %v1260 = vmul.f32 %v1228, 0.70710677
        %v1261 = vmul.f32 %v1229, 0.70710677
        %v1262 = vmul.f32 %v1230, 0.70710677
        %v1263 = vmul.f32 %v1231, 0.70710677
        %v1264 = vmul.f32 %v1232, 0.70710677
        %v1265 = vmul.f32 %v1233, 0.70710677
        %v1266 = vmul.f32 %v1234, 0.70710677
        %v1267 = vmul.f32 %v1235, 0.70710677
        %v1268 = vmul.f32 %v1236, 0.70710677
        %v1269 = vmul.f32 %v1253, %v1253
        %v1270 = vmin.f32 16.0, %v1269
        %v1271 = vmul.f32 %v1270, 2.1237322e-06
        %v1272 = vadd.f32 %v1271, 0.00028619796
        %v1273 = vmul.f32 %v1270, %v1272
        %v1274 = vadd.f32 %v1273, 0.0036580483
        %v1275 = vmul.f32 %v1270, %v1274
        %v1276 = vadd.f32 %v1275, 0.05243302
        %v1277 = vmul.f32 %v1270, %v1276
        %v1278 = vadd.f32 %v1277, 0.18741608
        %v1279 = vmul.f32 %v1270, %v1278
        %v1280 = vadd.f32 %v1279, 1.1283791
        %v1281 = vmul.f32 %v1253, %v1280
        %v1282 = vmul.f32 %v1270, 3.8918573e-05
        %v1283 = vadd.f32 %v1282, 0.001143296
        %v1284 = vmul.f32 %v1270, %v1283
        %v1285 = vadd.f32 %v1284, 0.014752088
        %v1286 = vmul.f32 %v1270, %v1285
        %v1287 = vadd.f32 %v1286, 0.112945676
        %v1288 = vmul.f32 %v1270, %v1287
        %v1289 = vadd.f32 %v1288, 0.4994258
        %v1290 = vmul.f32 %v1270, %v1289
        %v1291 = vadd.f32 %v1290, 1.0
        %v1292 = vrcp.pop %v1291
        %v1293 = vmul.f32 %v1291, %v1292
        %v1294 = vsub.f32 1.0, %v1293
        %v1295 = vmul.f32 %v1292, %v1294
        %v1296 = vadd.f32 %v1292, %v1295
        %vm1297 = vweird.f32 %v1291
        %vm1298 = vweird.f32 %v1292
        %vm1299 = vmor %vm1297, %vm1298
        %v1300 = vsel %vm1299, %v1292, %v1296
        %v1301 = vand.u32 2147483647, %v1291
        %vm1302 = vcmp.eq.f32.partialorder %v1301, 8.507059e+37
        %v1303 = vand.u32 %v1291, 2147483648
        %v1304 = vor.u32 1.1754944e-38, %v1303
        %v1305 = vsel %vm1302, %v1304, %v1300
        %v1306 = vmul.f32 %v1281, %v1305
        %v1307 = vmin.f32 %v1306, 1.0
        %v1308 = vmax.f32 %v1307, -1.0
        %v1309 = vmul.f32 %v1254, %v1254
        %v1310 = vmin.f32 16.0, %v1309
        %v1311 = vmul.f32 %v1310, 2.1237322e-06
        %v1312 = vadd.f32 %v1311, 0.00028619796
        %v1313 = vmul.f32 %v1310, %v1312
        %v1314 = vadd.f32 %v1313, 0.0036580483
        %v1315 = vmul.f32 %v1310, %v1314
        %v1316 = vadd.f32 %v1315, 0.05243302
        %v1317 = vmul.f32 %v1310, %v1316
        %v1318 = vadd.f32 %v1317, 0.18741608
        %v1319 = vmul.f32 %v1310, %v1318
        %v1320 = vadd.f32 %v1319, 1.1283791
        %v1321 = vmul.f32 %v1254, %v1320
        %v1322 = vmul.f32 %v1310, 3.8918573e-05
        %v1323 = vadd.f32 %v1322, 0.001143296
        %v1324 = vmul.f32 %v1310, %v1323
        %v1325 = vadd.f32 %v1324, 0.014752088
        %v1326 = vmul.f32 %v1310, %v1325
        %v1327 = vadd.f32 %v1326, 0.112945676
        %v1328 = vmul.f32 %v1310, %v1327
        %v1329 = vadd.f32 %v1328, 0.4994258
        %v1330 = vmul.f32 %v1310, %v1329
        %v1331 = vadd.f32 %v1330, 1.0
        %v1332 = vrcp.pop %v1331
        %v1333 = vmul.f32 %v1331, %v1332
        %v1334 = vsub.f32 1.0, %v1333
        %v1335 = vmul.f32 %v1332, %v1334
        %v1336 = vadd.f32 %v1332, %v1335
        %vm1337 = vweird.f32 %v1331
        %vm1338 = vweird.f32 %v1332
        %vm1339 = vmor %vm1337, %vm1338
        %v1340 = vsel %vm1339, %v1332, %v1336
        %v1341 = vand.u32 2147483647, %v1331
        %vm1342 = vcmp.eq.f32.partialorder %v1341, 8.507059e+37
        %v1343 = vand.u32 %v1331, 2147483648
        %v1344 = vor.u32 1.1754944e-38, %v1343
        %v1345 = vsel %vm1342, %v1344, %v1340
        %v1346 = vmul.f32 %v1321, %v1345
        %v1347 = vmin.f32 %v1346, 1.0
        %v1348 = vmax.f32 %v1347, -1.0
        %v1349 = vmul.f32 %v1255, %v1255
        %v1350 = vmin.f32 16.0, %v1349
        %v1351 = vmul.f32 %v1350, 2.1237322e-06
        %v1352 = vadd.f32 %v1351, 0.00028619796
        %v1353 = vmul.f32 %v1350, %v1352
        %v1354 = vadd.f32 %v1353, 0.0036580483
        %v1355 = vmul.f32 %v1350, %v1354
        %v1356 = vadd.f32 %v1355, 0.05243302
        %v1357 = vmul.f32 %v1350, %v1356
        %v1358 = vadd.f32 %v1357, 0.18741608
        %v1359 = vmul.f32 %v1350, %v1358
        %v1360 = vadd.f32 %v1359, 1.1283791
        %v1361 = vmul.f32 %v1255, %v1360
        %v1362 = vmul.f32 %v1350, 3.8918573e-05
        %v1363 = vadd.f32 %v1362, 0.001143296
        %v1364 = vmul.f32 %v1350, %v1363
        %v1365 = vadd.f32 %v1364, 0.014752088
        %v1366 = vmul.f32 %v1350, %v1365
        %v1367 = vadd.f32 %v1366, 0.112945676
        %v1368 = vmul.f32 %v1350, %v1367
        %v1369 = vadd.f32 %v1368, 0.4994258
        %v1370 = vmul.f32 %v1350, %v1369
        %v1371 = vadd.f32 %v1370, 1.0
        %v1372 = vrcp.pop %v1371
        %v1373 = vmul.f32 %v1371, %v1372
        %v1374 = vsub.f32 1.0, %v1373
        %v1375 = vmul.f32 %v1372, %v1374
        %v1376 = vadd.f32 %v1372, %v1375
        %vm1377 = vweird.f32 %v1371
        %vm1378 = vweird.f32 %v1372
        %vm1379 = vmor %vm1377, %vm1378
        %v1380 = vsel %vm1379, %v1372, %v1376
        %v1381 = vand.u32 2147483647, %v1371
        %vm1382 = vcmp.eq.f32.partialorder %v1381, 8.507059e+37
        %v1383 = vand.u32 %v1371, 2147483648
        %v1384 = vor.u32 1.1754944e-38, %v1383
        %v1385 = vsel %vm1382, %v1384, %v1380
        %v1386 = vmul.f32 %v1361, %v1385
        %v1387 = vmin.f32 %v1386, 1.0
        %v1388 = vmax.f32 %v1387, -1.0
        %v1389 = vmul.f32 %v1256, %v1256
        %v1390 = vmin.f32 16.0, %v1389
        %v1391 = vmul.f32 %v1390, 2.1237322e-06
        %v1392 = vadd.f32 %v1391, 0.00028619796
        %v1393 = vmul.f32 %v1390, %v1392
        %v1394 = vadd.f32 %v1393, 0.0036580483
        %v1395 = vmul.f32 %v1390, %v1394
        %v1396 = vadd.f32 %v1395, 0.05243302
        %v1397 = vmul.f32 %v1390, %v1396
        %v1398 = vadd.f32 %v1397, 0.18741608
        %v1399 = vmul.f32 %v1390, %v1398
        %v1400 = vadd.f32 %v1399, 1.1283791
        %v1401 = vmul.f32 %v1256, %v1400
        %v1402 = vmul.f32 %v1390, 3.8918573e-05
        %v1403 = vadd.f32 %v1402, 0.001143296
        %v1404 = vmul.f32 %v1390, %v1403
        %v1405 = vadd.f32 %v1404, 0.014752088
        %v1406 = vmul.f32 %v1390, %v1405
        %v1407 = vadd.f32 %v1406, 0.112945676
        %v1408 = vmul.f32 %v1390, %v1407
        %v1409 = vadd.f32 %v1408, 0.4994258
        %v1410 = vmul.f32 %v1390, %v1409
        %v1411 = vadd.f32 %v1410, 1.0
        %v1412 = vrcp.pop %v1411
        %v1413 = vmul.f32 %v1411, %v1412
        %v1414 = vsub.f32 1.0, %v1413
        %v1415 = vmul.f32 %v1412, %v1414
        %v1416 = vadd.f32 %v1412, %v1415
        %vm1417 = vweird.f32 %v1411
        %vm1418 = vweird.f32 %v1412
        %vm1419 = vmor %vm1417, %vm1418
        %v1420 = vsel %vm1419, %v1412, %v1416
        %v1421 = vand.u32 2147483647, %v1411
        %vm1422 = vcmp.eq.f32.partialorder %v1421, 8.507059e+37
        %v1423 = vand.u32 %v1411, 2147483648
        %v1424 = vor.u32 1.1754944e-38, %v1423
        %v1425 = vsel %vm1422, %v1424, %v1420
        %v1426 = vmul.f32 %v1401, %v1425
        %v1427 = vmin.f32 %v1426, 1.0
        %v1428 = vmax.f32 %v1427, -1.0
        %v1429 = vmul.f32 %v1257, %v1257
        %v1430 = vmin.f32 16.0, %v1429
        %v1431 = vmul.f32 %v1430, 2.1237322e-06
        %v1432 = vadd.f32 %v1431, 0.00028619796
        %v1433 = vmul.f32 %v1430, %v1432
        %v1434 = vadd.f32 %v1433, 0.0036580483
        %v1435 = vmul.f32 %v1430, %v1434
        %v1436 = vadd.f32 %v1435, 0.05243302
        %v1437 = vmul.f32 %v1430, %v1436
        %v1438 = vadd.f32 %v1437, 0.18741608
        %v1439 = vmul.f32 %v1430, %v1438
        %v1440 = vadd.f32 %v1439, 1.1283791
        %v1441 = vmul.f32 %v1257, %v1440
        %v1442 = vmul.f32 %v1430, 3.8918573e-05
        %v1443 = vadd.f32 %v1442, 0.001143296
        %v1444 = vmul.f32 %v1430, %v1443
        %v1445 = vadd.f32 %v1444, 0.014752088
        %v1446 = vmul.f32 %v1430, %v1445
        %v1447 = vadd.f32 %v1446, 0.112945676
        %v1448 = vmul.f32 %v1430, %v1447
        %v1449 = vadd.f32 %v1448, 0.4994258
        %v1450 = vmul.f32 %v1430, %v1449
        %v1451 = vadd.f32 %v1450, 1.0
        %v1452 = vrcp.pop %v1451
        %v1453 = vmul.f32 %v1451, %v1452
        %v1454 = vsub.f32 1.0, %v1453
        %v1455 = vmul.f32 %v1452, %v1454
        %v1456 = vadd.f32 %v1452, %v1455
        %vm1457 = vweird.f32 %v1451
        %vm1458 = vweird.f32 %v1452
        %vm1459 = vmor %vm1457, %vm1458
        %v1460 = vsel %vm1459, %v1452, %v1456
        %v1461 = vand.u32 2147483647, %v1451
        %vm1462 = vcmp.eq.f32.partialorder %v1461, 8.507059e+37
        %v1463 = vand.u32 %v1451, 2147483648
        %v1464 = vor.u32 1.1754944e-38, %v1463
        %v1465 = vsel %vm1462, %v1464, %v1460
        %v1466 = vmul.f32 %v1441, %v1465
        %v1467 = vmin.f32 %v1466, 1.0
        %v1468 = vmax.f32 %v1467, -1.0
        %v1469 = vmul.f32 %v1258, %v1258
        %v1470 = vmin.f32 16.0, %v1469
        %v1471 = vmul.f32 %v1470, 2.1237322e-06
        %v1472 = vadd.f32 %v1471, 0.00028619796
        %v1473 = vmul.f32 %v1470, %v1472
        %v1474 = vadd.f32 %v1473, 0.0036580483
        %v1475 = vmul.f32 %v1470, %v1474
        %v1476 = vadd.f32 %v1475, 0.05243302
        %v1477 = vmul.f32 %v1470, %v1476
        %v1478 = vadd.f32 %v1477, 0.18741608
        %v1479 = vmul.f32 %v1470, %v1478
        %v1480 = vadd.f32 %v1479, 1.1283791
        %v1481 = vmul.f32 %v1258, %v1480
        %v1482 = vmul.f32 %v1470, 3.8918573e-05
        %v1483 = vadd.f32 %v1482, 0.001143296
        %v1484 = vmul.f32 %v1470, %v1483
        %v1485 = vadd.f32 %v1484, 0.014752088
        %v1486 = vmul.f32 %v1470, %v1485
        %v1487 = vadd.f32 %v1486, 0.112945676
        %v1488 = vmul.f32 %v1470, %v1487
        %v1489 = vadd.f32 %v1488, 0.4994258
        %v1490 = vmul.f32 %v1470, %v1489
        %v1491 = vadd.f32 %v1490, 1.0
        %v1492 = vrcp.pop %v1491
        %v1493 = vmul.f32 %v1491, %v1492
        %v1494 = vsub.f32 1.0, %v1493
        %v1495 = vmul.f32 %v1492, %v1494
        %v1496 = vadd.f32 %v1492, %v1495
        %vm1497 = vweird.f32 %v1491
        %vm1498 = vweird.f32 %v1492
        %vm1499 = vmor %vm1497, %vm1498
        %v1500 = vsel %vm1499, %v1492, %v1496
        %v1501 = vand.u32 2147483647, %v1491
        %vm1502 = vcmp.eq.f32.partialorder %v1501, 8.507059e+37
        %v1503 = vand.u32 %v1491, 2147483648
        %v1504 = vor.u32 1.1754944e-38, %v1503
        %v1505 = vsel %vm1502, %v1504, %v1500
        %v1506 = vmul.f32 %v1481, %v1505
        %v1507 = vmin.f32 %v1506, 1.0
        %v1508 = vmax.f32 %v1507, -1.0
        %v1509 = vmul.f32 %v1259, %v1259
        %v1510 = vmin.f32 16.0, %v1509
        %v1511 = vmul.f32 %v1510, 2.1237322e-06
        %v1512 = vadd.f32 %v1511, 0.00028619796
        %v1513 = vmul.f32 %v1510, %v1512
        %v1514 = vadd.f32 %v1513, 0.0036580483
        %v1515 = vmul.f32 %v1510, %v1514
        %v1516 = vadd.f32 %v1515, 0.05243302
        %v1517 = vmul.f32 %v1510, %v1516
        %v1518 = vadd.f32 %v1517, 0.18741608
        %v1519 = vmul.f32 %v1510, %v1518
        %v1520 = vadd.f32 %v1519, 1.1283791
        %v1521 = vmul.f32 %v1259, %v1520
        %v1522 = vmul.f32 %v1510, 3.8918573e-05
        %v1523 = vadd.f32 %v1522, 0.001143296
        %v1524 = vmul.f32 %v1510, %v1523
        %v1525 = vadd.f32 %v1524, 0.014752088
        %v1526 = vmul.f32 %v1510, %v1525
        %v1527 = vadd.f32 %v1526, 0.112945676
        %v1528 = vmul.f32 %v1510, %v1527
        %v1529 = vadd.f32 %v1528, 0.4994258
        %v1530 = vmul.f32 %v1510, %v1529
        %v1531 = vadd.f32 %v1530, 1.0
        %v1532 = vrcp.pop %v1531
        %v1533 = vmul.f32 %v1531, %v1532
        %v1534 = vsub.f32 1.0, %v1533
        %v1535 = vmul.f32 %v1532, %v1534
        %v1536 = vadd.f32 %v1532, %v1535
        %vm1537 = vweird.f32 %v1531
        %vm1538 = vweird.f32 %v1532
        %vm1539 = vmor %vm1537, %vm1538
        %v1540 = vsel %vm1539, %v1532, %v1536
        %v1541 = vand.u32 2147483647, %v1531
        %vm1542 = vcmp.eq.f32.partialorder %v1541, 8.507059e+37
        %v1543 = vand.u32 %v1531, 2147483648
        %v1544 = vor.u32 1.1754944e-38, %v1543
        %v1545 = vsel %vm1542, %v1544, %v1540
        %v1546 = vmul.f32 %v1521, %v1545
        %v1547 = vmin.f32 %v1546, 1.0
        %v1548 = vmax.f32 %v1547, -1.0
        %v1549 = vmul.f32 %v1260, %v1260
        %v1550 = vmin.f32 16.0, %v1549
        %v1551 = vmul.f32 %v1550, 2.1237322e-06
        %v1552 = vadd.f32 %v1551, 0.00028619796
        %v1553 = vmul.f32 %v1550, %v1552
        %v1554 = vadd.f32 %v1553, 0.0036580483
        %v1555 = vmul.f32 %v1550, %v1554
        %v1556 = vadd.f32 %v1555, 0.05243302
        %v1557 = vmul.f32 %v1550, %v1556
        %v1558 = vadd.f32 %v1557, 0.18741608
        %v1559 = vmul.f32 %v1550, %v1558
        %v1560 = vadd.f32 %v1559, 1.1283791
        %v1561 = vmul.f32 %v1260, %v1560
        %v1562 = vmul.f32 %v1550, 3.8918573e-05
        %v1563 = vadd.f32 %v1562, 0.001143296
        %v1564 = vmul.f32 %v1550, %v1563
        %v1565 = vadd.f32 %v1564, 0.014752088
        %v1566 = vmul.f32 %v1550, %v1565
        %v1567 = vadd.f32 %v1566, 0.112945676
        %v1568 = vmul.f32 %v1550, %v1567
        %v1569 = vadd.f32 %v1568, 0.4994258
        %v1570 = vmul.f32 %v1550, %v1569
        %v1571 = vadd.f32 %v1570, 1.0
        %v1572 = vrcp.pop %v1571
        %v1573 = vmul.f32 %v1571, %v1572
        %v1574 = vsub.f32 1.0, %v1573
        %v1575 = vmul.f32 %v1572, %v1574
        %v1576 = vadd.f32 %v1572, %v1575
        %vm1577 = vweird.f32 %v1571
        %vm1578 = vweird.f32 %v1572
        %vm1579 = vmor %vm1577, %vm1578
        %v1580 = vsel %vm1579, %v1572, %v1576
        %v1581 = vand.u32 2147483647, %v1571
        %vm1582 = vcmp.eq.f32.partialorder %v1581, 8.507059e+37
        %v1583 = vand.u32 %v1571, 2147483648
        %v1584 = vor.u32 1.1754944e-38, %v1583
        %v1585 = vsel %vm1582, %v1584, %v1580
        %v1586 = vmul.f32 %v1561, %v1585
        %v1587 = vmin.f32 %v1586, 1.0
        %v1588 = vmax.f32 %v1587, -1.0
        %v1589 = vmul.f32 %v1261, %v1261
        %v1590 = vmin.f32 16.0, %v1589
        %v1591 = vmul.f32 %v1590, 2.1237322e-06
        %v1592 = vadd.f32 %v1591, 0.00028619796
        %v1593 = vmul.f32 %v1590, %v1592
        %v1594 = vadd.f32 %v1593, 0.0036580483
        %v1595 = vmul.f32 %v1590, %v1594
        %v1596 = vadd.f32 %v1595, 0.05243302
        %v1597 = vmul.f32 %v1590, %v1596
        %v1598 = vadd.f32 %v1597, 0.18741608
        %v1599 = vmul.f32 %v1590, %v1598
        %v1600 = vadd.f32 %v1599, 1.1283791
        %v1601 = vmul.f32 %v1261, %v1600
        %v1602 = vmul.f32 %v1590, 3.8918573e-05
        %v1603 = vadd.f32 %v1602, 0.001143296
        %v1604 = vmul.f32 %v1590, %v1603
        %v1605 = vadd.f32 %v1604, 0.014752088
        %v1606 = vmul.f32 %v1590, %v1605
        %v1607 = vadd.f32 %v1606, 0.112945676
        %v1608 = vmul.f32 %v1590, %v1607
        %v1609 = vadd.f32 %v1608, 0.4994258
        %v1610 = vmul.f32 %v1590, %v1609
        %v1611 = vadd.f32 %v1610, 1.0
        %v1612 = vrcp.pop %v1611
        %v1613 = vmul.f32 %v1611, %v1612
        %v1614 = vsub.f32 1.0, %v1613
        %v1615 = vmul.f32 %v1612, %v1614
        %v1616 = vadd.f32 %v1612, %v1615
        %vm1617 = vweird.f32 %v1611
        %vm1618 = vweird.f32 %v1612
        %vm1619 = vmor %vm1617, %vm1618
        %v1620 = vsel %vm1619, %v1612, %v1616
        %v1621 = vand.u32 2147483647, %v1611
        %vm1622 = vcmp.eq.f32.partialorder %v1621, 8.507059e+37
        %v1623 = vand.u32 %v1611, 2147483648
        %v1624 = vor.u32 1.1754944e-38, %v1623
        %v1625 = vsel %vm1622, %v1624, %v1620
        %v1626 = vmul.f32 %v1601, %v1625
        %v1627 = vmin.f32 %v1626, 1.0
        %v1628 = vmax.f32 %v1627, -1.0
        %v1629 = vmul.f32 %v1262, %v1262
        %v1630 = vmin.f32 16.0, %v1629
        %v1631 = vmul.f32 %v1630, 2.1237322e-06
        %v1632 = vadd.f32 %v1631, 0.00028619796
        %v1633 = vmul.f32 %v1630, %v1632
        %v1634 = vadd.f32 %v1633, 0.0036580483
        %v1635 = vmul.f32 %v1630, %v1634
        %v1636 = vadd.f32 %v1635, 0.05243302
        %v1637 = vmul.f32 %v1630, %v1636
        %v1638 = vadd.f32 %v1637, 0.18741608
        %v1639 = vmul.f32 %v1630, %v1638
        %v1640 = vadd.f32 %v1639, 1.1283791
        %v1641 = vmul.f32 %v1262, %v1640
        %v1642 = vmul.f32 %v1630, 3.8918573e-05
        %v1643 = vadd.f32 %v1642, 0.001143296
        %v1644 = vmul.f32 %v1630, %v1643
        %v1645 = vadd.f32 %v1644, 0.014752088
        %v1646 = vmul.f32 %v1630, %v1645
        %v1647 = vadd.f32 %v1646, 0.112945676
        %v1648 = vmul.f32 %v1630, %v1647
        %v1649 = vadd.f32 %v1648, 0.4994258
        %v1650 = vmul.f32 %v1630, %v1649
        %v1651 = vadd.f32 %v1650, 1.0
        %v1652 = vrcp.pop %v1651
        %v1653 = vmul.f32 %v1651, %v1652
        %v1654 = vsub.f32 1.0, %v1653
        %v1655 = vmul.f32 %v1652, %v1654
        %v1656 = vadd.f32 %v1652, %v1655
        %vm1657 = vweird.f32 %v1651
        %vm1658 = vweird.f32 %v1652
        %vm1659 = vmor %vm1657, %vm1658
        %v1660 = vsel %vm1659, %v1652, %v1656
        %v1661 = vand.u32 2147483647, %v1651
        %vm1662 = vcmp.eq.f32.partialorder %v1661, 8.507059e+37
        %v1663 = vand.u32 %v1651, 2147483648
        %v1664 = vor.u32 1.1754944e-38, %v1663
        %v1665 = vsel %vm1662, %v1664, %v1660
        %v1666 = vmul.f32 %v1641, %v1665
        %v1667 = vmin.f32 %v1666, 1.0
        %v1668 = vmax.f32 %v1667, -1.0
        %v1669 = vmul.f32 %v1263, %v1263
        %v1670 = vmin.f32 16.0, %v1669
        %v1671 = vmul.f32 %v1670, 2.1237322e-06
        %v1672 = vadd.f32 %v1671, 0.00028619796
        %v1673 = vmul.f32 %v1670, %v1672
        %v1674 = vadd.f32 %v1673, 0.0036580483
        %v1675 = vmul.f32 %v1670, %v1674
        %v1676 = vadd.f32 %v1675, 0.05243302
        %v1677 = vmul.f32 %v1670, %v1676
        %v1678 = vadd.f32 %v1677, 0.18741608
        %v1679 = vmul.f32 %v1670, %v1678
        %v1680 = vadd.f32 %v1679, 1.1283791
        %v1681 = vmul.f32 %v1263, %v1680
        %v1682 = vmul.f32 %v1670, 3.8918573e-05
        %v1683 = vadd.f32 %v1682, 0.001143296
        %v1684 = vmul.f32 %v1670, %v1683
        %v1685 = vadd.f32 %v1684, 0.014752088
        %v1686 = vmul.f32 %v1670, %v1685
        %v1687 = vadd.f32 %v1686, 0.112945676
        %v1688 = vmul.f32 %v1670, %v1687
        %v1689 = vadd.f32 %v1688, 0.4994258
        %v1690 = vmul.f32 %v1670, %v1689
        %v1691 = vadd.f32 %v1690, 1.0
        %v1692 = vrcp.pop %v1691
        %v1693 = vmul.f32 %v1691, %v1692
        %v1694 = vsub.f32 1.0, %v1693
        %v1695 = vmul.f32 %v1692, %v1694
        %v1696 = vadd.f32 %v1692, %v1695
        %vm1697 = vweird.f32 %v1691
        %vm1698 = vweird.f32 %v1692
        %vm1699 = vmor %vm1697, %vm1698
        %v1700 = vsel %vm1699, %v1692, %v1696
        %v1701 = vand.u32 2147483647, %v1691
        %vm1702 = vcmp.eq.f32.partialorder %v1701, 8.507059e+37
        %v1703 = vand.u32 %v1691, 2147483648
        %v1704 = vor.u32 1.1754944e-38, %v1703
        %v1705 = vsel %vm1702, %v1704, %v1700
        %v1706 = vmul.f32 %v1681, %v1705
        %v1707 = vmin.f32 %v1706, 1.0
        %v1708 = vmax.f32 %v1707, -1.0
        %v1709 = vmul.f32 %v1264, %v1264
        %v1710 = vmin.f32 16.0, %v1709
        %v1711 = vmul.f32 %v1710, 2.1237322e-06
        %v1712 = vadd.f32 %v1711, 0.00028619796
        %v1713 = vmul.f32 %v1710, %v1712
        %v1714 = vadd.f32 %v1713, 0.0036580483
        %v1715 = vmul.f32 %v1710, %v1714
        %v1716 = vadd.f32 %v1715, 0.05243302
        %v1717 = vmul.f32 %v1710, %v1716
        %v1718 = vadd.f32 %v1717, 0.18741608
        %v1719 = vmul.f32 %v1710, %v1718
        %v1720 = vadd.f32 %v1719, 1.1283791
        %v1721 = vmul.f32 %v1264, %v1720
        %v1722 = vmul.f32 %v1710, 3.8918573e-05
        %v1723 = vadd.f32 %v1722, 0.001143296
        %v1724 = vmul.f32 %v1710, %v1723
        %v1725 = vadd.f32 %v1724, 0.014752088
        %v1726 = vmul.f32 %v1710, %v1725
        %v1727 = vadd.f32 %v1726, 0.112945676
        %v1728 = vmul.f32 %v1710, %v1727
        %v1729 = vadd.f32 %v1728, 0.4994258
        %v1730 = vmul.f32 %v1710, %v1729
        %v1731 = vadd.f32 %v1730, 1.0
        %v1732 = vrcp.pop %v1731
        %v1733 = vmul.f32 %v1731, %v1732
        %v1734 = vsub.f32 1.0, %v1733
        %v1735 = vmul.f32 %v1732, %v1734
        %v1736 = vadd.f32 %v1732, %v1735
        %vm1737 = vweird.f32 %v1731
        %vm1738 = vweird.f32 %v1732
        %vm1739 = vmor %vm1737, %vm1738
        %v1740 = vsel %vm1739, %v1732, %v1736
        %v1741 = vand.u32 2147483647, %v1731
        %vm1742 = vcmp.eq.f32.partialorder %v1741, 8.507059e+37
        %v1743 = vand.u32 %v1731, 2147483648
        %v1744 = vor.u32 1.1754944e-38, %v1743
        %v1745 = vsel %vm1742, %v1744, %v1740
        %v1746 = vmul.f32 %v1721, %v1745
        %v1747 = vmin.f32 %v1746, 1.0
        %v1748 = vmax.f32 %v1747, -1.0
        %v1749 = vmul.f32 %v1265, %v1265
        %v1750 = vmin.f32 16.0, %v1749
        %v1751 = vmul.f32 %v1750, 2.1237322e-06
        %v1752 = vadd.f32 %v1751, 0.00028619796
        %v1753 = vmul.f32 %v1750, %v1752
        %v1754 = vadd.f32 %v1753, 0.0036580483
        %v1755 = vmul.f32 %v1750, %v1754
        %v1756 = vadd.f32 %v1755, 0.05243302
        %v1757 = vmul.f32 %v1750, %v1756
        %v1758 = vadd.f32 %v1757, 0.18741608
        %v1759 = vmul.f32 %v1750, %v1758
        %v1760 = vadd.f32 %v1759, 1.1283791
        %v1761 = vmul.f32 %v1265, %v1760
        %v1762 = vmul.f32 %v1750, 3.8918573e-05
        %v1763 = vadd.f32 %v1762, 0.001143296
        %v1764 = vmul.f32 %v1750, %v1763
        %v1765 = vadd.f32 %v1764, 0.014752088
        %v1766 = vmul.f32 %v1750, %v1765
        %v1767 = vadd.f32 %v1766, 0.112945676
        %v1768 = vmul.f32 %v1750, %v1767
        %v1769 = vadd.f32 %v1768, 0.4994258
        %v1770 = vmul.f32 %v1750, %v1769
        %v1771 = vadd.f32 %v1770, 1.0
        %v1772 = vrcp.pop %v1771
        %v1773 = vmul.f32 %v1771, %v1772
        %v1774 = vsub.f32 1.0, %v1773
        %v1775 = vmul.f32 %v1772, %v1774
        %v1776 = vadd.f32 %v1772, %v1775
        %vm1777 = vweird.f32 %v1771
        %vm1778 = vweird.f32 %v1772
        %vm1779 = vmor %vm1777, %vm1778
        %v1780 = vsel %vm1779, %v1772, %v1776
        %v1781 = vand.u32 2147483647, %v1771
        %vm1782 = vcmp.eq.f32.partialorder %v1781, 8.507059e+37
        %v1783 = vand.u32 %v1771, 2147483648
        %v1784 = vor.u32 1.1754944e-38, %v1783
        %v1785 = vsel %vm1782, %v1784, %v1780
        %v1786 = vmul.f32 %v1761, %v1785
        %v1787 = vmin.f32 %v1786, 1.0
        %v1788 = vmax.f32 %v1787, -1.0
        %v1789 = vmul.f32 %v1266, %v1266
        %v1790 = vmin.f32 16.0, %v1789
        %v1791 = vmul.f32 %v1790, 2.1237322e-06
        %v1792 = vadd.f32 %v1791, 0.00028619796
        %v1793 = vmul.f32 %v1790, %v1792
        %v1794 = vadd.f32 %v1793, 0.0036580483
        %v1795 = vmul.f32 %v1790, %v1794
        %v1796 = vadd.f32 %v1795, 0.05243302
        %v1797 = vmul.f32 %v1790, %v1796
        %v1798 = vadd.f32 %v1797, 0.18741608
        %v1799 = vmul.f32 %v1790, %v1798
        %v1800 = vadd.f32 %v1799, 1.1283791
        %v1801 = vmul.f32 %v1266, %v1800
        %v1802 = vmul.f32 %v1790, 3.8918573e-05
        %v1803 = vadd.f32 %v1802, 0.001143296
        %v1804 = vmul.f32 %v1790, %v1803
        %v1805 = vadd.f32 %v1804, 0.014752088
        %v1806 = vmul.f32 %v1790, %v1805
        %v1807 = vadd.f32 %v1806, 0.112945676
        %v1808 = vmul.f32 %v1790, %v1807
        %v1809 = vadd.f32 %v1808, 0.4994258
        %v1810 = vmul.f32 %v1790, %v1809
        %v1811 = vadd.f32 %v1810, 1.0
        %v1812 = vrcp.pop %v1811
        %v1813 = vmul.f32 %v1811, %v1812
        %v1814 = vsub.f32 1.0, %v1813
        %v1815 = vmul.f32 %v1812, %v1814
        %v1816 = vadd.f32 %v1812, %v1815
        %vm1817 = vweird.f32 %v1811
        %vm1818 = vweird.f32 %v1812
        %vm1819 = vmor %vm1817, %vm1818
        %v1820 = vsel %vm1819, %v1812, %v1816
        %v1821 = vand.u32 2147483647, %v1811
        %vm1822 = vcmp.eq.f32.partialorder %v1821, 8.507059e+37
        %v1823 = vand.u32 %v1811, 2147483648
        %v1824 = vor.u32 1.1754944e-38, %v1823
        %v1825 = vsel %vm1822, %v1824, %v1820
        %v1826 = vmul.f32 %v1801, %v1825
        %v1827 = vmin.f32 %v1826, 1.0
        %v1828 = vmax.f32 %v1827, -1.0
        %v1829 = vmul.f32 %v1267, %v1267
        %v1830 = vmin.f32 16.0, %v1829
        %v1831 = vmul.f32 %v1830, 2.1237322e-06
        %v1832 = vadd.f32 %v1831, 0.00028619796
        %v1833 = vmul.f32 %v1830, %v1832
        %v1834 = vadd.f32 %v1833, 0.0036580483
        %v1835 = vmul.f32 %v1830, %v1834
        %v1836 = vadd.f32 %v1835, 0.05243302
        %v1837 = vmul.f32 %v1830, %v1836
        %v1838 = vadd.f32 %v1837, 0.18741608
        %v1839 = vmul.f32 %v1830, %v1838
        %v1840 = vadd.f32 %v1839, 1.1283791
        %v1841 = vmul.f32 %v1267, %v1840
        %v1842 = vmul.f32 %v1830, 3.8918573e-05
        %v1843 = vadd.f32 %v1842, 0.001143296
        %v1844 = vmul.f32 %v1830, %v1843
        %v1845 = vadd.f32 %v1844, 0.014752088
        %v1846 = vmul.f32 %v1830, %v1845
        %v1847 = vadd.f32 %v1846, 0.112945676
        %v1848 = vmul.f32 %v1830, %v1847
        %v1849 = vadd.f32 %v1848, 0.4994258
        %v1850 = vmul.f32 %v1830, %v1849
        %v1851 = vadd.f32 %v1850, 1.0
        %v1852 = vrcp.pop %v1851
        %v1853 = vmul.f32 %v1851, %v1852
        %v1854 = vsub.f32 1.0, %v1853
        %v1855 = vmul.f32 %v1852, %v1854
        %v1856 = vadd.f32 %v1852, %v1855
        %vm1857 = vweird.f32 %v1851
        %vm1858 = vweird.f32 %v1852
        %vm1859 = vmor %vm1857, %vm1858
        %v1860 = vsel %vm1859, %v1852, %v1856
        %v1861 = vand.u32 2147483647, %v1851
        %vm1862 = vcmp.eq.f32.partialorder %v1861, 8.507059e+37
        %v1863 = vand.u32 %v1851, 2147483648
        %v1864 = vor.u32 1.1754944e-38, %v1863
        %v1865 = vsel %vm1862, %v1864, %v1860
        %v1866 = vmul.f32 %v1841, %v1865
        %v1867 = vmin.f32 %v1866, 1.0
        %v1868 = vmax.f32 %v1867, -1.0
        %v1869 = vmul.f32 %v1268, %v1268
        %v1870 = vmin.f32 16.0, %v1869
        %v1871 = vmul.f32 %v1870, 2.1237322e-06
        %v1872 = vadd.f32 %v1871, 0.00028619796
        %v1873 = vmul.f32 %v1870, %v1872
        %v1874 = vadd.f32 %v1873, 0.0036580483
        %v1875 = vmul.f32 %v1870, %v1874
        %v1876 = vadd.f32 %v1875, 0.05243302
        %v1877 = vmul.f32 %v1870, %v1876
        %v1878 = vadd.f32 %v1877, 0.18741608
        %v1879 = vmul.f32 %v1870, %v1878
        %v1880 = vadd.f32 %v1879, 1.1283791
        %v1881 = vmul.f32 %v1268, %v1880
        %v1882 = vmul.f32 %v1870, 3.8918573e-05
        %v1883 = vadd.f32 %v1882, 0.001143296
        %v1884 = vmul.f32 %v1870, %v1883
        %v1885 = vadd.f32 %v1884, 0.014752088
        %v1886 = vmul.f32 %v1870, %v1885
        %v1887 = vadd.f32 %v1886, 0.112945676
        %v1888 = vmul.f32 %v1870, %v1887
        %v1889 = vadd.f32 %v1888, 0.4994258
        %v1890 = vmul.f32 %v1870, %v1889
        %v1891 = vadd.f32 %v1890, 1.0
        %v1892 = vrcp.pop %v1891
        %v1893 = vmul.f32 %v1891, %v1892
        %v1894 = vsub.f32 1.0, %v1893
        %v1895 = vmul.f32 %v1892, %v1894
        %v1896 = vadd.f32 %v1892, %v1895
        %vm1897 = vweird.f32 %v1891
        %vm1898 = vweird.f32 %v1892
        %vm1899 = vmor %vm1897, %vm1898
        %v1900 = vsel %vm1899, %v1892, %v1896
        %v1901 = vand.u32 2147483647, %v1891
        %vm1902 = vcmp.eq.f32.partialorder %v1901, 8.507059e+37
        %v1903 = vand.u32 %v1891, 2147483648
        %v1904 = vor.u32 1.1754944e-38, %v1903
        %v1905 = vsel %vm1902, %v1904, %v1900
        %v1906 = vmul.f32 %v1881, %v1905
        %v1907 = vmin.f32 %v1906, 1.0
        %v1908 = vmax.f32 %v1907, -1.0
        %v1909 = vadd.f32 %v1308, 1.0
        %v1910 = vadd.f32 %v1348, 1.0
        %v1911 = vadd.f32 %v1388, 1.0
        %v1912 = vadd.f32 %v1428, 1.0
        %v1913 = vadd.f32 %v1468, 1.0
        %v1914 = vadd.f32 %v1508, 1.0
        %v1915 = vadd.f32 %v1548, 1.0
        %v1916 = vadd.f32 %v1588, 1.0
        %v1917 = vadd.f32 %v1628, 1.0
        %v1918 = vadd.f32 %v1668, 1.0
        %v1919 = vadd.f32 %v1708, 1.0
        %v1920 = vadd.f32 %v1748, 1.0
        %v1921 = vadd.f32 %v1788, 1.0
        %v1922 = vadd.f32 %v1828, 1.0
        %v1923 = vadd.f32 %v1868, 1.0
        %v1924 = vadd.f32 %v1908, 1.0
        %v1925 = vmul.f32 %v1237, %v1909
        %v1926 = vmul.f32 %v1238, %v1910
        %v1927 = vmul.f32 %v1239, %v1911
        %v1928 = vmul.f32 %v1240, %v1912
        %v1929 = vmul.f32 %v1241, %v1913
        %v1930 = vmul.f32 %v1242, %v1914
        %v1931 = vmul.f32 %v1243, %v1915
        %v1932 = vmul.f32 %v1244, %v1916
        %v1933 = vmul.f32 %v1245, %v1917
        %v1934 = vmul.f32 %v1246, %v1918
        %v1935 = vmul.f32 %v1247, %v1919
        %v1936 = vmul.f32 %v1248, %v1920
        %v1937 = vmul.f32 %v1249, %v1921
        %v1938 = vmul.f32 %v1250, %v1922
        %v1939 = vmul.f32 %v1251, %v1923
        %v1940 = vmul.f32 %v1252, %v1924
        %v1941 = vld [vmem:[#allocation11] sm:$0xf]
        %v1942 = vld [vmem:[#allocation11 + $0x4] sm:$0xf]
        %v1943 = vld [vmem:[#allocation11 + $0x8] sm:$0xf]
        %v1944 = vld [vmem:[#allocation11 + $0xc] sm:$0xf]
        %v1945 = vld [vmem:[#allocation11 + $0x10] sm:$0xf]
        %v1946 = vld [vmem:[#allocation11 + $0x14] sm:$0xf]
        %v1947 = vld [vmem:[#allocation11 + $0x18] sm:$0xf]
        %v1948 = vld [vmem:[#allocation11 + $0x1c] sm:$0xf]
        %v1949 = vld [vmem:[#allocation11 + $0x20] sm:$0xf]
        %v1950 = vld [vmem:[#allocation11 + $0x24] sm:$0xf]
        %v1951 = vld [vmem:[#allocation11 + $0x28] sm:$0xf]
        %v1952 = vld [vmem:[#allocation11 + $0x2c] sm:$0xf]
        %v1953 = vld [vmem:[#allocation11 + $0x30] sm:$0xf]
        %v1954 = vld [vmem:[#allocation11 + $0x34] sm:$0xf]
        %v1955 = vld [vmem:[#allocation11 + $0x38] sm:$0xf]
        %v1956 = vld [vmem:[#allocation11 + $0x3c] sm:$0xf]
        %v1957 = vld [vmem:[#allocation11 + $0x40] sm:$0xf]
        %v1958 = vld [vmem:[#allocation11 + $0x44] sm:$0xf]
        %v1959 = vld [vmem:[#allocation11 + $0x48] sm:$0xf]
        %v1960 = vld [vmem:[#allocation11 + $0x4c] sm:$0xf]
        %v1961 = vld [vmem:[#allocation11 + $0x50] sm:$0xf]
        %v1962 = vld [vmem:[#allocation11 + $0x54] sm:$0xf]
        %v1963 = vld [vmem:[#allocation11 + $0x58] sm:$0xf]
        %v1964 = vld [vmem:[#allocation11 + $0x5c] sm:$0xf]
        %v1965 = vld [vmem:[#allocation11 + $0x60] sm:$0xf]
        %v1966 = vld [vmem:[#allocation11 + $0x64] sm:$0xf]
        %v1967 = vld [vmem:[#allocation11 + $0x68] sm:$0xf]
        %v1968 = vld [vmem:[#allocation11 + $0x6c] sm:$0xf]
        %v1969 = vld [vmem:[#allocation11 + $0x70] sm:$0xf]
        %v1970 = vld [vmem:[#allocation11 + $0x74] sm:$0xf]
        %v1971 = vld [vmem:[#allocation11 + $0x78] sm:$0xf]
        %v1972 = vld [vmem:[#allocation11 + $0x7c] sm:$0xf]
        %v1973 = vpack.c.bf16 %v1927, %v1925
        %v1974 = vpack.c.bf16 %v1928, %v1926
        %v1975 = vpack.c.bf16 %v1931, %v1929
        %v1976 = vpack.c.bf16 %v1932, %v1930
        %v1977 = vpack.c.bf16 %v1935, %v1933
        %v1978 = vpack.c.bf16 %v1936, %v1934
        %v1979 = vpack.c.bf16 %v1939, %v1937
        %v1980 = vpack.c.bf16 %v1940, %v1938
        %v1981 = vld [vmem:[%s6] sm:$0x1]
        %v1983 = vperm.slane %v1981, 0
        %v2017 = vunpack.c.l.b16 %v1941
        %v2018 = vunpack.c.l.b16 %v1942
        %v2019 = vunpack.c.l.b16 %v1943
        %v2020 = vunpack.c.l.b16 %v1944
        %v2021 = vunpack.c.l.b16 %v1945
        %v2022 = vunpack.c.l.b16 %v1946
        %v2023 = vunpack.c.l.b16 %v1947
        %v2024 = vunpack.c.l.b16 %v1948
        %v2025 = vunpack.c.l.b16 %v1949
        %v2026 = vunpack.c.l.b16 %v1950
        %v2027 = vunpack.c.l.b16 %v1951
        %v2028 = vunpack.c.l.b16 %v1952
        %v2029 = vunpack.c.l.b16 %v1953
        %v2030 = vunpack.c.l.b16 %v1954
        %v2031 = vunpack.c.l.b16 %v1955
        %v2032 = vunpack.c.l.b16 %v1956
        %v2033 = vunpack.c.l.b16 %v1957
        %v2034 = vunpack.c.l.b16 %v1958
        %v2035 = vunpack.c.l.b16 %v1959
        %v2036 = vunpack.c.l.b16 %v1960
        %v2037 = vunpack.c.l.b16 %v1961
        %v2038 = vunpack.c.l.b16 %v1962
        %v2039 = vunpack.c.l.b16 %v1963
        %v2040 = vunpack.c.l.b16 %v1964
        %v2041 = vunpack.c.l.b16 %v1965
        %v2042 = vunpack.c.l.b16 %v1966
        %v2043 = vunpack.c.l.b16 %v1967
        %v2044 = vunpack.c.l.b16 %v1968
        %v2045 = vunpack.c.l.b16 %v1969
        %v2046 = vunpack.c.l.b16 %v1970
        %v2047 = vunpack.c.l.b16 %v1971
        %v2048 = vunpack.c.l.b16 %v1972
        %v2049 = vpack.c.b16 %v2018, %v2017
        %v2050 = vpack.c.b16 %v2020, %v2019
        %v2051 = vpack.c.b16 %v2022, %v2021
        %v2052 = vpack.c.b16 %v2024, %v2023
        %v2053 = vpack.c.b16 %v2026, %v2025
        %v2054 = vpack.c.b16 %v2028, %v2027
        %v2055 = vpack.c.b16 %v2030, %v2029
        %v2056 = vpack.c.b16 %v2032, %v2031
        %v2057 = vpack.c.b16 %v2034, %v2033
        %v2058 = vpack.c.b16 %v2036, %v2035
        %v2059 = vpack.c.b16 %v2038, %v2037
        %v2060 = vpack.c.b16 %v2040, %v2039
        %v2061 = vpack.c.b16 %v2042, %v2041
        %v2062 = vpack.c.b16 %v2044, %v2043
        %v2063 = vpack.c.b16 %v2046, %v2045
        %v2064 = vpack.c.b16 %v2048, %v2047
        %2081 = vmatpush.bf16.msra.mxu0 %v2056
        %2082 = vmatpush.bf16.msra.mxu0 %v2055
        %2083 = vmatpush.bf16.msra.mxu0 %v2054
        %2084 = vmatpush.bf16.msra.mxu0 %v2053
        %2085 = vmatpush.bf16.msra.mxu0 %v2052
        %2086 = vmatpush.bf16.msra.mxu0 %v2051
        %2087 = vmatpush.bf16.msra.mxu0 %v2050
        %2088 = vmatpush.bf16.msra.mxu0 %v2049
        %2089 = vmatmul.bf16.gmra.mxu0 %v1973
        %v2090 = vpop.f32.mrf.mxu0
        %v2091 = vadd.f32 %v1983, %v2090
        %v2092 = vpop.f32.mrf.mxu0
        %v2093 = vadd.f32 %v1983, %v2092
        %2094 = vmatmul.bf16.gmra.mxu0 %v1975
        %v2095 = vpop.f32.mrf.mxu0
        %v2096 = vadd.f32 %v1983, %v2095
        %v2097 = vpop.f32.mrf.mxu0
        %v2098 = vadd.f32 %v1983, %v2097
        %2099 = vmatmul.bf16.gmra.mxu0 %v1977
        %v2100 = vpop.f32.mrf.mxu0
        %v2101 = vadd.f32 %v1983, %v2100
        %v2102 = vpop.f32.mrf.mxu0
        %v2103 = vadd.f32 %v1983, %v2102
        %2104 = vmatmul.bf16.gmra.mxu0 %v1979
        %v2105 = vpop.f32.mrf.mxu0
        %v2106 = vadd.f32 %v1983, %v2105
        %v2107 = vpop.f32.mrf.mxu0
        %v2108 = vadd.f32 %v1983, %v2107
        %2109 = vdwg.mxu0
        %2110 = vmatpush.bf16.msra.mxu0 %v2064
        %2111 = vmatpush.bf16.msra.mxu0 %v2063
        %2112 = vmatpush.bf16.msra.mxu0 %v2062
        %2113 = vmatpush.bf16.msra.mxu0 %v2061
        %2114 = vmatpush.bf16.msra.mxu0 %v2060
        %2115 = vmatpush.bf16.msra.mxu0 %v2059
        %2116 = vmatpush.bf16.msra.mxu0 %v2058
        %2117 = vmatpush.bf16.msra.mxu0 %v2057
        %2118 = vmatmul.bf16.gmra.mxu0 %v1974
        %v2119 = vpop.f32.mrf.mxu0
        %v2120 = vadd.f32 %v2091, %v2119
        %v2121 = vpop.f32.mrf.mxu0
        %v2122 = vadd.f32 %v2093, %v2121
        %2123 = vmatmul.bf16.gmra.mxu0 %v1976
        %v2124 = vpop.f32.mrf.mxu0
        %v2125 = vadd.f32 %v2096, %v2124
        %v2126 = vpop.f32.mrf.mxu0
        %v2127 = vadd.f32 %v2098, %v2126
        %2128 = vmatmul.bf16.gmra.mxu0 %v1978
        %v2129 = vpop.f32.mrf.mxu0
        %v2130 = vadd.f32 %v2101, %v2129
        %v2131 = vpop.f32.mrf.mxu0
        %v2132 = vadd.f32 %v2103, %v2131
        %2133 = vmatmul.bf16.gmra.mxu0 %v1980
        %v2134 = vpop.f32.mrf.mxu0
        %v2135 = vadd.f32 %v2106, %v2134
        %v2136 = vpop.f32.mrf.mxu0
        %v2137 = vadd.f32 %v2108, %v2136
        %2138 = vdwg.mxu0
        %2139 = vst [vmem:[%s376] sm:$0xff] %v2120
        %2140 = vst [vmem:[%s376 + $0x8] sm:$0xff] %v2122
        %2141 = vst [vmem:[%s376 + $0x10] sm:$0xff] %v2125
        %2142 = vst [vmem:[%s376 + $0x18] sm:$0xff] %v2127
        %2143 = vst [vmem:[%s376 + $0x20] sm:$0xff] %v2130
        %2144 = vst [vmem:[%s376 + $0x28] sm:$0xff] %v2132
        %2145 = vst [vmem:[%s376 + $0x30] sm:$0xff] %v2135
        %2146 = vst [vmem:[%s376 + $0x38] sm:$0xff] %v2137
        %s2147 = sand.u32 %s200, 1
        %s2148 = scalar_lea.sflag [#allocation5], %s2147
        %s2149 = sand.u32 %s200, 1
        %s2150 = smul.addr %s2149, 64
        %s2151 = scalar_lea.vmem [#allocation12], %s2150
        // Predicated region
        $region77: #{tpu_custom_call.1} parent=47 // pred_check
          %p2152 = pneg %p210
        $region78: #{tpu_custom_call.1} parent=47 // pred_check_branch
          %2154 = sbr.rel (%p2152) target = $region80
        $region79: #{tpu_custom_call.1} parent=47 // pred_region
          %s2155 = smul.u32 8, %s31
          %2157 = vsyncadd %s2148, 0
          %s2158 = smul.addr %s30, 32
          %s2159 = sadd.s32 %s2155, %s2158
          %s2160 = smul.addr %s2159, 8
          %s2161 = scalar_lea.hbm %s7, %s2160
          %s2162 = sshll.u32 %s2151, 4
          %s2163 = int_to_ptr.vmem [resolvable:$true] %s2162
          %s2164 = sshll.u32 %s2161, 4
          %s2165 = int_to_ptr.hbm [resolvable:$true] %s2164
          %2170 = dma.vmem_to_hbm [thread:$0]  %s2163, 1024, %s2165, %s2148, 128, 128, 8
        $region80: #{tpu_custom_call.1} parent=47 // pred_fallthru
          _
      $region48: #{tpu_custom_call.1} parent=5 // pred_fallthru
        _
      %p2171 = scmp.le.s32.totalorder 2, %s21
      // Predicated region
      $region81: #{tpu_custom_call.1} parent=5 // pred_check
        %p2172 = pneg %p2171
      $region82: #{tpu_custom_call.1} parent=5 // pred_check_branch
        %2174 = sbr.rel (%p2172) target = $region84
      $region83: #{tpu_custom_call.1} parent=5 // pred_region
        %s2175 = ssub.s32 %s21, 2
        // Predicated region
        $region85: #{tpu_custom_call.1} parent=83 // pred_check
          %p2176 = pneg %p216
        $region86: #{tpu_custom_call.1} parent=83 // pred_check_branch
          %2178 = sbr.rel (%p2176) target = $region88
        $region87: #{tpu_custom_call.1} parent=83 // pred_region
          %s2179 = sand.u32 %s201, 1
          %s2180 = scalar_lea.sflag [#allocation5], %s2179
          %s2181 = sand.u32 %s201, 1
          %s2182 = smul.addr %s2181, 64
          %s2183 = scalar_lea.vmem [#allocation12], %s2182
          %2185 = dma.done %s2180, 1024
        $region88: #{tpu_custom_call.1} parent=83 // pred_fallthru
          _
      $region84: #{tpu_custom_call.1} parent=5 // pred_fallthru
        _
    $region6: #{tpu_custom_call.1} parent=1 // loop_footer
      %s25 = sadd.s32 1, %s21
    $region7: #{tpu_custom_call.1} parent=1 // loop_footer_branch
      %20 = sbr.rel target = $region3
    $region8: #{tpu_custom_call.1} parent=1 // loop_exit
      _
    %2186 = vsyncpa [#allocation4], 1
    %s2187 = scalar_lea.sflag [#allocation4], 1
    %2188 = vsyncpa %s2187, 1
    %2189 = vsyncpa [#allocation7], 1
    %2190 = vsyncpa [#allocation10], 1
    %2191 = vsyncpa [#allocation5], 1
    %s2192 = scalar_lea.sflag [#allocation5], 1
    %2193 = vsyncpa %s2192, 1

</llo_original>
